<compile_context>
chip_gen: v6e
topology: v6e:2x2x1
jax: 0.10.0
libtpu: 0.0.40
codegen_flags: <defaults>
</compile_context>

<pallas_src>
import jax
import jax.numpy as jnp
from jax.experimental import pallas as pl
from jax.experimental.pallas import tpu as pltpu

# ---- small synthetic CLIP-text config --------------------------------------
B, S, D = 2, 8, 128          # batch, context length, transformer width
H = 4                        # attention heads
HD = D // H                  # head dim
MLP = 4 * D                  # mlp hidden
V = 64                       # vocab size
E = 64                       # text projection output dim
E_PAD = 128                  # lane-dense padded projection width (sliced to E)
LAYERS = 2
EPS = 1e-5
NEG_INF = -1e30
R = B * S                    # flattened row count for 2-D matmuls


def _layernorm(x, g, b):
    mu = jnp.mean(x, axis=-1, keepdims=True)
    var = jnp.mean((x - mu) ** 2, axis=-1, keepdims=True)
    return (x - mu) * jax.lax.rsqrt(var + EPS) * g + b


# ---- fused Pallas kernel -----------------------------------------------------
def encode_text_kernel(x0_ref, mask_ref, onehot_ref,
                       ln1g_ref, ln1b_ref, wqkv_ref, bqkv_ref, wo_ref, bo_ref,
                       ln2g_ref, ln2b_ref, w1_ref, b1_ref, w2_ref, b2_ref,
                       lnfg_ref, lnfb_ref, proj_ref,
                       o_ref):
    """Whole encode_text in one kernel invocation: all LAYERS residual blocks
    (static unroll, stacked weights indexed ref[l]) + final LN -> EOT select ->
    padded text projection.  Activations never leave registers/VMEM values."""
    x = x0_ref[...].reshape(R, D)                       # (R, D) f32
    mask = mask_ref[...]                                # (S, S) causal -inf mask

    for l in range(LAYERS):
        # ---- LayerNorm 1 + fused QKV: one (R,D)@(D,3D) bf16 matmul, f32 acc ----
        h = _layernorm(x, ln1g_ref[l], ln1b_ref[l])
        qkv = jnp.dot(h.astype(jnp.bfloat16), wqkv_ref[l],
                      preferred_element_type=jnp.float32) + bqkv_ref[l]
        qkv = qkv.reshape(B, S, 3 * D).astype(jnp.bfloat16)
        q = qkv[:, :, 0 * D:1 * D]                      # 1/sqrt(HD) folded into wqkv
        k = qkv[:, :, 1 * D:2 * D]
        v = qkv[:, :, 2 * D:3 * D]

        # ---- causal MHA ----
        # Per-head bf16 score matmuls (HD=32 lane slices; a head-batched 4-D
        # einsum would force layout-hostile 32-lane transposes at this width),
        # then ONE batched masked softmax over all heads at once.
        s_all = jnp.concatenate(
            [jnp.einsum('bqd,bkd->bqk',
                        q[:, :, hh * HD:(hh + 1) * HD],
                        k[:, :, hh * HD:(hh + 1) * HD],
                        preferred_element_type=jnp.float32)
             for hh in range(H)], axis=0) + mask        # (H*B, S, S) f32
        s_all = s_all - jnp.max(s_all, axis=-1, keepdims=True)
        p_all = jnp.exp(s_all)
        p_all = (p_all * pl.reciprocal(jnp.sum(p_all, axis=-1, keepdims=True),
                                       approx=True)).astype(jnp.bfloat16)
        # Per-head bf16 PV matmuls; head outputs concatenated in registers
        # along the lane axis (no VMEM staging / masked partial stores).
        heads = jnp.concatenate(
            [jnp.einsum('bqk,bkd->bqd',
                        p_all[hh * B:(hh + 1) * B],
                        v[:, :, hh * HD:(hh + 1) * HD],
                        preferred_element_type=jnp.float32)
             for hh in range(H)], axis=-1)              # (B, S, D) f32
        attn = jnp.dot(heads.reshape(R, D).astype(jnp.bfloat16), wo_ref[l],
                       preferred_element_type=jnp.float32) + bo_ref[l]
        x = x + attn

        # ---- LayerNorm 2 + MLP (QuickGELU, as in CLIP) ----
        h2 = _layernorm(x, ln2g_ref[l], ln2b_ref[l])
        z = jnp.dot(h2.astype(jnp.bfloat16), w1_ref[l],
                    preferred_element_type=jnp.float32) + b1_ref[l]
        z = z * jax.nn.sigmoid(1.702 * z)               # QuickGELU (f32)
        z = jnp.dot(z.astype(jnp.bfloat16), w2_ref[l],
                    preferred_element_type=jnp.float32) + b2_ref[l]
        x = x + z

    # ---- final LN -> EOT-token select (one-hot matmul) -> padded projection ----
    hf = _layernorm(x, lnfg_ref[...], lnfb_ref[...])    # (R, D)
    sel = jnp.dot(onehot_ref[...], hf,
                  preferred_element_type=jnp.float32)   # (B, D), exact select
    o_ref[...] = jnp.dot(sel.astype(jnp.bfloat16), proj_ref[...],
                         preferred_element_type=jnp.float32)   # (B, E_PAD)


# ---- wrapper -----------------------------------------------------------------
def _const_spec(shape):
    zeros = (0,) * len(shape)
    return pl.BlockSpec(tuple(shape), lambda i, _z=zeros: _z)


def encode_text(tokens, params):
    # token embedding gather + positional add: plain-JAX glue
    # TODO(synk): the embedding-table gather has no clean tiny-Pallas equivalent.
    x0 = params['tok_emb'][tokens] + params['pos_emb']          # (B, S, D) f32

    # EOT position = argmax over token ids (CLIP convention). Build a
    # block-diagonal (B, B*S) one-hot so selection inside the kernel is a
    # single 2-D matmul over the flattened (B*S, D) activations.
    eot = jax.nn.one_hot(jnp.argmax(tokens, axis=-1), S, dtype=jnp.float32)
    onehot = jnp.einsum('bc,bs->bcs', jnp.eye(B, dtype=jnp.float32),
                        eot).reshape(B, R)

    args = (x0, params['mask'], onehot,
            params['ln1g'], params['ln1b'], params['wqkv'], params['bqkv'],
            params['wo'], params['bo'], params['ln2g'], params['ln2b'],
            params['w1'], params['b1'], params['w2'], params['b2'],
            params['lnfg'], params['lnfb'], params['proj'])
    in_specs = [_const_spec(a.shape) for a in args]

    # advisory cost estimate (matmul flops + exp/sigmoid transcendentals)
    flops = LAYERS * (2 * R * D * 3 * D            # qkv
                      + 2 * R * D * D              # out-proj
                      + 2 * 2 * R * D * MLP        # mlp up + down
                      + 2 * 2 * B * S * S * HD * H)  # scores + pv
    flops += 2 * B * R * D + 2 * B * D * E_PAD     # eot select + projection
    transcendentals = LAYERS * (H * B * S * S + R * MLP)
    bytes_accessed = sum(int(a.size) * a.dtype.itemsize for a in args) + B * E_PAD * 4

    out = pl.pallas_call(
        encode_text_kernel,
        out_shape=jax.ShapeDtypeStruct((B, E_PAD), jnp.float32),
        grid=(1,),                                  # single step: weights fully VMEM-resident
        in_specs=in_specs,
        out_specs=_const_spec((B, E_PAD)),
        compiler_params=pltpu.CompilerParams(
            dimension_semantics=("arbitrary",)),
        cost_estimate=pl.CostEstimate(flops=flops,
                                      transcendentals=transcendentals,
                                      bytes_accessed=bytes_accessed),
    )(*args)
    return out[:, :E]                               # drop lane padding


# ---- deterministic parameter init (stacked per-layer, bf16 matmul weights) ---
def init_params(key):
    k_tok, k_pos, k_proj, k_layers = jax.random.split(key, 4)
    lkeys = jax.random.split(k_layers, LAYERS * 4)

    def stack_f32(shape, scale, kidx):
        return jnp.stack(
            [scale * jax.random.normal(lkeys[4 * i + kidx], shape, jnp.float32)
             for i in range(LAYERS)], axis=0)

    # fold the 1/sqrt(HD) attention scale into the Q columns of wqkv / bqkv
    q_scale = 1.0 / (HD ** 0.5)
    wqkv = stack_f32((D, 3 * D), D ** -0.5, 0).at[:, :, :D].multiply(q_scale)
    bqkv = jnp.zeros((LAYERS, 1, 3 * D), jnp.float32).at[:, :, :D].multiply(q_scale)

    # lane-dense padded text projection: cols [E:E_PAD) are zero, sliced off in wrapper
    proj = jnp.zeros((D, E_PAD), jnp.float32).at[:, :E].set(
        (D ** -0.5) * jax.random.normal(k_proj, (D, E), jnp.float32))

    return {
        'tok_emb': 0.02 * jax.random.normal(k_tok, (V, D), jnp.float32),
        'pos_emb': 0.01 * jax.random.normal(k_pos, (S, D), jnp.float32),
        'mask': jnp.triu(jnp.full((S, S), NEG_INF, jnp.float32), k=1),
        'lnfg': jnp.ones((1, D), jnp.float32),
        'lnfb': jnp.zeros((1, D), jnp.float32),
        'proj': proj.astype(jnp.bfloat16),
        # stacked per-layer parameters [LAYERS, ...]
        'ln1g': jnp.ones((LAYERS, 1, D), jnp.float32),
        'ln1b': jnp.zeros((LAYERS, 1, D), jnp.float32),
        'wqkv': wqkv.astype(jnp.bfloat16),
        'bqkv': bqkv,
        'wo': stack_f32((D, D), D ** -0.5, 1).astype(jnp.bfloat16),
        'bo': jnp.zeros((LAYERS, 1, D), jnp.float32),
        'ln2g': jnp.ones((LAYERS, 1, D), jnp.float32),
        'ln2b': jnp.zeros((LAYERS, 1, D), jnp.float32),
        'w1': stack_f32((D, MLP), D ** -0.5, 2).astype(jnp.bfloat16),
        'b1': jnp.zeros((LAYERS, 1, MLP), jnp.float32),
        'w2': stack_f32((MLP, D), MLP ** -0.5, 3).astype(jnp.bfloat16),
        'b2': jnp.zeros((LAYERS, 1, D), jnp.float32),
    }


if __name__ == "__main__":
    root = jax.random.PRNGKey(0)
    pkey, tkey = jax.random.split(root)
    params = init_params(pkey)

    # deterministic token ids; last position is the EOT token (highest id)
    text = jax.random.randint(tkey, (B, S), minval=1, maxval=V - 1, dtype=jnp.int32)
    text = text.at[:, -1].set(V - 1)

    feats = encode_text(text, params)
    feats = jax.block_until_ready(feats)
    assert feats.shape == (B, E) and feats.dtype == jnp.float32
    assert bool(jnp.all(jnp.isfinite(feats)))
    print("KERNEL_OK")
</pallas_src>

<mosaic_0001>
module attributes {stable_mosaic.version = 11 : i64} {
  func.func @encode_text_kernel(%arg0: i32, %arg1: memref<2x8x128xf32, #tpu.memory_space<vmem>>, %arg2: memref<8x8xf32, #tpu.memory_space<vmem>>, %arg3: memref<2x16xf32, #tpu.memory_space<vmem>>, %arg4: memref<2x1x128xf32, #tpu.memory_space<vmem>>, %arg5: memref<2x1x128xf32, #tpu.memory_space<vmem>>, %arg6: memref<2x128x384xbf16, #tpu.memory_space<vmem>>, %arg7: memref<2x1x384xf32, #tpu.memory_space<vmem>>, %arg8: memref<2x128x128xbf16, #tpu.memory_space<vmem>>, %arg9: memref<2x1x128xf32, #tpu.memory_space<vmem>>, %arg10: memref<2x1x128xf32, #tpu.memory_space<vmem>>, %arg11: memref<2x1x128xf32, #tpu.memory_space<vmem>>, %arg12: memref<2x128x512xbf16, #tpu.memory_space<vmem>>, %arg13: memref<2x1x512xf32, #tpu.memory_space<vmem>>, %arg14: memref<2x512x128xbf16, #tpu.memory_space<vmem>>, %arg15: memref<2x1x128xf32, #tpu.memory_space<vmem>>, %arg16: memref<1x128xf32, #tpu.memory_space<vmem>>, %arg17: memref<1x128xf32, #tpu.memory_space<vmem>>, %arg18: memref<128x128xbf16, #tpu.memory_space<vmem>>, %arg19: memref<2x128xf32, #tpu.memory_space<vmem>>) attributes {dimension_semantics = [#tpu.dimension_semantics<arbitrary>], iteration_bounds = array<i64: 1>, scalar_prefetch = 0 : i64, scratch_operands = 0 : i64, tpu.core_type = #tpu.core_type<tc>, window_params = [{pipeline_mode = #tpu.pipeline_mode<synchronous>, transform_indices = @transform_0, window_bounds = array<i64: 2, 8, 128>}, {pipeline_mode = #tpu.pipeline_mode<synchronous>, transform_indices = @transform_1, window_bounds = array<i64: 8, 8>}, {pipeline_mode = #tpu.pipeline_mode<synchronous>, transform_indices = @transform_2, window_bounds = array<i64: 2, 16>}, {pipeline_mode = #tpu.pipeline_mode<synchronous>, transform_indices = @transform_3, window_bounds = array<i64: 2, 1, 128>}, {pipeline_mode = #tpu.pipeline_mode<synchronous>, transform_indices = @transform_4, window_bounds = array<i64: 2, 1, 128>}, {pipeline_mode = #tpu.pipeline_mode<synchronous>, transform_indices = @transform_5, window_bounds = array<i64: 2, 128, 384>}, {pipeline_mode = #tpu.pipeline_mode<synchronous>, transform_indices = @transform_6, window_bounds = array<i64: 2, 1, 384>}, {pipeline_mode = #tpu.pipeline_mode<synchronous>, transform_indices = @transform_7, window_bounds = array<i64: 2, 128, 128>}, {pipeline_mode = #tpu.pipeline_mode<synchronous>, transform_indices = @transform_8, window_bounds = array<i64: 2, 1, 128>}, {pipeline_mode = #tpu.pipeline_mode<synchronous>, transform_indices = @transform_9, window_bounds = array<i64: 2, 1, 128>}, {pipeline_mode = #tpu.pipeline_mode<synchronous>, transform_indices = @transform_10, window_bounds = array<i64: 2, 1, 128>}, {pipeline_mode = #tpu.pipeline_mode<synchronous>, transform_indices = @transform_11, window_bounds = array<i64: 2, 128, 512>}, {pipeline_mode = #tpu.pipeline_mode<synchronous>, transform_indices = @transform_12, window_bounds = array<i64: 2, 1, 512>}, {pipeline_mode = #tpu.pipeline_mode<synchronous>, transform_indices = @transform_13, window_bounds = array<i64: 2, 512, 128>}, {pipeline_mode = #tpu.pipeline_mode<synchronous>, transform_indices = @transform_14, window_bounds = array<i64: 2, 1, 128>}, {pipeline_mode = #tpu.pipeline_mode<synchronous>, transform_indices = @transform_15, window_bounds = array<i64: 1, 128>}, {pipeline_mode = #tpu.pipeline_mode<synchronous>, transform_indices = @transform_16, window_bounds = array<i64: 1, 128>}, {pipeline_mode = #tpu.pipeline_mode<synchronous>, transform_indices = @transform_17, window_bounds = array<i64: 128, 128>}, {pipeline_mode = #tpu.pipeline_mode<synchronous>, transform_indices = @transform_18, window_bounds = array<i64: 2, 128>}]} {
    %c0 = arith.constant 0 : index
    %c0_0 = arith.constant 0 : index
    %c0_1 = arith.constant 0 : index
    %0 = vector.load %arg1[%c0, %c0_0, %c0_1] : memref<2x8x128xf32, #tpu.memory_space<vmem>>, vector<2x8x128xf32>
    %1 = vector.shape_cast %0 : vector<2x8x128xf32> to vector<16x128xf32>
    %c0_2 = arith.constant 0 : index
    %c0_3 = arith.constant 0 : index
    %2 = vector.load %arg2[%c0_2, %c0_3] : memref<8x8xf32, #tpu.memory_space<vmem>>, vector<8x8xf32>
    %c0_4 = arith.constant 0 : index
    %c0_5 = arith.constant 0 : index
    %c0_6 = arith.constant 0 : index
    %3 = vector.load %arg4[%c0_4, %c0_5, %c0_6] : memref<2x1x128xf32, #tpu.memory_space<vmem>>, vector<1x1x128xf32>
    %4 = vector.shape_cast %3 : vector<1x1x128xf32> to vector<1x128xf32>
    %c0_7 = arith.constant 0 : index
    %c0_8 = arith.constant 0 : index
    %c0_9 = arith.constant 0 : index
    %5 = vector.load %arg5[%c0_7, %c0_8, %c0_9] : memref<2x1x128xf32, #tpu.memory_space<vmem>>, vector<1x1x128xf32>
    %6 = vector.shape_cast %5 : vector<1x1x128xf32> to vector<1x128xf32>
    %cst = arith.constant dense<0.000000e+00> : vector<16xf32>
    %7 = vector.multi_reduction <add>, %1, %cst [1] : vector<16x128xf32> to vector<16xf32>
    %8 = vector.shape_cast %7 : vector<16xf32> to vector<16x1xf32>
    %cst_10 = arith.constant 1.280000e+02 : f32
    %9 = vector.broadcast %cst_10 : f32 to vector<16x1xf32>
    %10 = arith.divf %8, %9 : vector<16x1xf32>
    %11 = vector.broadcast %10 : vector<16x1xf32> to vector<16x128xf32>
    %12 = arith.subf %1, %11 : vector<16x128xf32>
    %13 = arith.mulf %12, %12 : vector<16x128xf32>
    %cst_11 = arith.constant dense<0.000000e+00> : vector<16xf32>
    %14 = vector.multi_reduction <add>, %13, %cst_11 [1] : vector<16x128xf32> to vector<16xf32>
    %15 = vector.shape_cast %14 : vector<16xf32> to vector<16x1xf32>
    %cst_12 = arith.constant 1.280000e+02 : f32
    %16 = vector.broadcast %cst_12 : f32 to vector<16x1xf32>
    %17 = arith.divf %15, %16 : vector<16x1xf32>
    %18 = vector.broadcast %10 : vector<16x1xf32> to vector<16x128xf32>
    %19 = arith.subf %1, %18 : vector<16x128xf32>
    %cst_13 = arith.constant 9.99999974E-6 : f32
    %20 = vector.broadcast %cst_13 : f32 to vector<16x1xf32>
    %21 = arith.addf %17, %20 : vector<16x1xf32>
    %22 = math.rsqrt %21 : vector<16x1xf32>
    %23 = vector.broadcast %22 : vector<16x1xf32> to vector<16x128xf32>
    %24 = arith.mulf %19, %23 : vector<16x128xf32>
    %25 = vector.broadcast %4 : vector<1x128xf32> to vector<16x128xf32>
    %26 = arith.mulf %24, %25 : vector<16x128xf32>
    %27 = vector.broadcast %6 : vector<1x128xf32> to vector<16x128xf32>
    %28 = arith.addf %26, %27 : vector<16x128xf32>
    %29 = arith.truncf %28 : vector<16x128xf32> to vector<16x128xbf16>
    %c0_14 = arith.constant 0 : index
    %c0_15 = arith.constant 0 : index
    %c0_16 = arith.constant 0 : index
    %30 = vector.load %arg6[%c0_14, %c0_15, %c0_16] : memref<2x128x384xbf16, #tpu.memory_space<vmem>>, vector<1x128x384xbf16>
    %31 = vector.shape_cast %30 : vector<1x128x384xbf16> to vector<128x384xbf16>
    %cst_17 = arith.constant dense<0.000000e+00> : vector<16x384xf32>
    %32 = tpu.matmul %29, %31, %cst_17 {dimension_numbers = #tpu.dot_dimension_numbers<[1], [0], [0], [1], [0, 0, 1, 1], [], []>} : vector<16x128xbf16>, vector<128x384xbf16>, vector<16x384xf32> -> vector<16x384xf32>
    %c0_18 = arith.constant 0 : index
    %c0_19 = arith.constant 0 : index
    %c0_20 = arith.constant 0 : index
    %33 = vector.load %arg7[%c0_18, %c0_19, %c0_20] : memref<2x1x384xf32, #tpu.memory_space<vmem>>, vector<1x1x384xf32>
    %34 = vector.shape_cast %33 : vector<1x1x384xf32> to vector<1x384xf32>
    %35 = vector.broadcast %34 : vector<1x384xf32> to vector<16x384xf32>
    %36 = arith.addf %32, %35 : vector<16x384xf32>
    %37 = vector.shape_cast %36 : vector<16x384xf32> to vector<2x8x384xf32>
    %38 = arith.truncf %37 : vector<2x8x384xf32> to vector<2x8x384xbf16>
    %39 = vector.extract_strided_slice %38 {offsets = [0, 0, 0], sizes = [2, 8, 128], strides = [1, 1, 1]} : vector<2x8x384xbf16> to vector<2x8x128xbf16>
    %40 = vector.extract_strided_slice %38 {offsets = [0, 0, 128], sizes = [2, 8, 128], strides = [1, 1, 1]} : vector<2x8x384xbf16> to vector<2x8x128xbf16>
    %41 = vector.extract_strided_slice %38 {offsets = [0, 0, 256], sizes = [2, 8, 128], strides = [1, 1, 1]} : vector<2x8x384xbf16> to vector<2x8x128xbf16>
    %42 = vector.extract_strided_slice %39 {offsets = [0, 0, 0], sizes = [2, 8, 32], strides = [1, 1, 1]} : vector<2x8x128xbf16> to vector<2x8x32xbf16>
    %43 = vector.extract_strided_slice %40 {offsets = [0, 0, 0], sizes = [2, 8, 32], strides = [1, 1, 1]} : vector<2x8x128xbf16> to vector<2x8x32xbf16>
    "tpu.trace_start"() <{level = 10 : i32, message = "bqd,bkd->bqk"}> : () -> ()
    %cst_21 = arith.constant dense<0.000000e+00> : vector<2x8x8xf32>
    %44 = tpu.matmul %42, %43, %cst_21 {dimension_numbers = #tpu.dot_dimension_numbers<[2], [2], [1], [1], [0, 0, 0, 1, 1, 1], [0], [0]>} : vector<2x8x32xbf16>, vector<2x8x32xbf16>, vector<2x8x8xf32> -> vector<2x8x8xf32>
    "tpu.trace_stop"() : () -> ()
    %45 = vector.extract_strided_slice %39 {offsets = [0, 0, 32], sizes = [2, 8, 32], strides = [1, 1, 1]} : vector<2x8x128xbf16> to vector<2x8x32xbf16>
    %46 = vector.extract_strided_slice %40 {offsets = [0, 0, 32], sizes = [2, 8, 32], strides = [1, 1, 1]} : vector<2x8x128xbf16> to vector<2x8x32xbf16>
    "tpu.trace_start"() <{level = 10 : i32, message = "bqd,bkd->bqk"}> : () -> ()
    %cst_22 = arith.constant dense<0.000000e+00> : vector<2x8x8xf32>
    %47 = tpu.matmul %45, %46, %cst_22 {dimension_numbers = #tpu.dot_dimension_numbers<[2], [2], [1], [1], [0, 0, 0, 1, 1, 1], [0], [0]>} : vector<2x8x32xbf16>, vector<2x8x32xbf16>, vector<2x8x8xf32> -> vector<2x8x8xf32>
    "tpu.trace_stop"() : () -> ()
    %48 = vector.extract_strided_slice %39 {offsets = [0, 0, 64], sizes = [2, 8, 32], strides = [1, 1, 1]} : vector<2x8x128xbf16> to vector<2x8x32xbf16>
    %49 = vector.extract_strided_slice %40 {offsets = [0, 0, 64], sizes = [2, 8, 32], strides = [1, 1, 1]} : vector<2x8x128xbf16> to vector<2x8x32xbf16>
    "tpu.trace_start"() <{level = 10 : i32, message = "bqd,bkd->bqk"}> : () -> ()
    %cst_23 = arith.constant dense<0.000000e+00> : vector<2x8x8xf32>
    %50 = tpu.matmul %48, %49, %cst_23 {dimension_numbers = #tpu.dot_dimension_numbers<[2], [2], [1], [1], [0, 0, 0, 1, 1, 1], [0], [0]>} : vector<2x8x32xbf16>, vector<2x8x32xbf16>, vector<2x8x8xf32> -> vector<2x8x8xf32>
    "tpu.trace_stop"() : () -> ()
    %51 = vector.extract_strided_slice %39 {offsets = [0, 0, 96], sizes = [2, 8, 32], strides = [1, 1, 1]} : vector<2x8x128xbf16> to vector<2x8x32xbf16>
    %52 = vector.extract_strided_slice %40 {offsets = [0, 0, 96], sizes = [2, 8, 32], strides = [1, 1, 1]} : vector<2x8x128xbf16> to vector<2x8x32xbf16>
    "tpu.trace_start"() <{level = 10 : i32, message = "bqd,bkd->bqk"}> : () -> ()
    %cst_24 = arith.constant dense<0.000000e+00> : vector<2x8x8xf32>
    %53 = tpu.matmul %51, %52, %cst_24 {dimension_numbers = #tpu.dot_dimension_numbers<[2], [2], [1], [1], [0, 0, 0, 1, 1, 1], [0], [0]>} : vector<2x8x32xbf16>, vector<2x8x32xbf16>, vector<2x8x8xf32> -> vector<2x8x8xf32>
    "tpu.trace_stop"() : () -> ()
    %54 = tpu.concatenate %44, %47, %50, %53 in 0 : vector<2x8x8xf32>, vector<2x8x8xf32>, vector<2x8x8xf32>, vector<2x8x8xf32> -> vector<8x8x8xf32>
    %55 = vector.shape_cast %2 : vector<8x8xf32> to vector<1x8x8xf32>
    %56 = vector.broadcast %55 : vector<1x8x8xf32> to vector<8x8x8xf32>
    %57 = arith.addf %54, %56 : vector<8x8x8xf32>
    %cst_25 = arith.constant dense<0xFF800000> : vector<8x8xf32>
    %58 = vector.multi_reduction <maximumf>, %57, %cst_25 [2] : vector<8x8x8xf32> to vector<8x8xf32>
    %59 = vector.shape_cast %58 : vector<8x8xf32> to vector<8x8x1xf32>
    %60 = vector.broadcast %59 : vector<8x8x1xf32> to vector<8x8x8xf32>
    %61 = arith.subf %57, %60 : vector<8x8x8xf32>
    %62 = math.exp %61 : vector<8x8x8xf32>
    %cst_26 = arith.constant dense<0.000000e+00> : vector<8x8xf32>
    %63 = vector.multi_reduction <add>, %62, %cst_26 [2] : vector<8x8x8xf32> to vector<8x8xf32>
    %64 = vector.shape_cast %63 : vector<8x8xf32> to vector<8x8x1xf32>
    %65 = tpu.reciprocal %64 {approx = true} : vector<8x8x1xf32> -> vector<8x8x1xf32>
    %66 = vector.broadcast %65 : vector<8x8x1xf32> to vector<8x8x8xf32>
    %67 = arith.mulf %62, %66 : vector<8x8x8xf32>
    %68 = arith.truncf %67 : vector<8x8x8xf32> to vector<8x8x8xbf16>
    %69 = vector.extract_strided_slice %68 {offsets = [0, 0, 0], sizes = [2, 8, 8], strides = [1, 1, 1]} : vector<8x8x8xbf16> to vector<2x8x8xbf16>
    %70 = vector.extract_strided_slice %41 {offsets = [0, 0, 0], sizes = [2, 8, 32], strides = [1, 1, 1]} : vector<2x8x128xbf16> to vector<2x8x32xbf16>
    "tpu.trace_start"() <{level = 10 : i32, message = "bqk,bkd->bqd"}> : () -> ()
    %cst_27 = arith.constant dense<0.000000e+00> : vector<2x8x32xf32>
    %71 = tpu.matmul %69, %70, %cst_27 {dimension_numbers = #tpu.dot_dimension_numbers<[2], [1], [1], [2], [0, 0, 0, 1, 1, 2], [0], [0]>} : vector<2x8x8xbf16>, vector<2x8x32xbf16>, vector<2x8x32xf32> -> vector<2x8x32xf32>
    "tpu.trace_stop"() : () -> ()
    %72 = vector.extract_strided_slice %68 {offsets = [2, 0, 0], sizes = [2, 8, 8], strides = [1, 1, 1]} : vector<8x8x8xbf16> to vector<2x8x8xbf16>
    %73 = vector.extract_strided_slice %41 {offsets = [0, 0, 32], sizes = [2, 8, 32], strides = [1, 1, 1]} : vector<2x8x128xbf16> to vector<2x8x32xbf16>
    "tpu.trace_start"() <{level = 10 : i32, message = "bqk,bkd->bqd"}> : () -> ()
    %cst_28 = arith.constant dense<0.000000e+00> : vector<2x8x32xf32>
    %74 = tpu.matmul %72, %73, %cst_28 {dimension_numbers = #tpu.dot_dimension_numbers<[2], [1], [1], [2], [0, 0, 0, 1, 1, 2], [0], [0]>} : vector<2x8x8xbf16>, vector<2x8x32xbf16>, vector<2x8x32xf32> -> vector<2x8x32xf32>
    "tpu.trace_stop"() : () -> ()
    %75 = vector.extract_strided_slice %68 {offsets = [4, 0, 0], sizes = [2, 8, 8], strides = [1, 1, 1]} : vector<8x8x8xbf16> to vector<2x8x8xbf16>
    %76 = vector.extract_strided_slice %41 {offsets = [0, 0, 64], sizes = [2, 8, 32], strides = [1, 1, 1]} : vector<2x8x128xbf16> to vector<2x8x32xbf16>
    "tpu.trace_start"() <{level = 10 : i32, message = "bqk,bkd->bqd"}> : () -> ()
    %cst_29 = arith.constant dense<0.000000e+00> : vector<2x8x32xf32>
    %77 = tpu.matmul %75, %76, %cst_29 {dimension_numbers = #tpu.dot_dimension_numbers<[2], [1], [1], [2], [0, 0, 0, 1, 1, 2], [0], [0]>} : vector<2x8x8xbf16>, vector<2x8x32xbf16>, vector<2x8x32xf32> -> vector<2x8x32xf32>
    "tpu.trace_stop"() : () -> ()
    %78 = vector.extract_strided_slice %68 {offsets = [6, 0, 0], sizes = [2, 8, 8], strides = [1, 1, 1]} : vector<8x8x8xbf16> to vector<2x8x8xbf16>
    %79 = vector.extract_strided_slice %41 {offsets = [0, 0, 96], sizes = [2, 8, 32], strides = [1, 1, 1]} : vector<2x8x128xbf16> to vector<2x8x32xbf16>
    "tpu.trace_start"() <{level = 10 : i32, message = "bqk,bkd->bqd"}> : () -> ()
    %cst_30 = arith.constant dense<0.000000e+00> : vector<2x8x32xf32>
    %80 = tpu.matmul %78, %79, %cst_30 {dimension_numbers = #tpu.dot_dimension_numbers<[2], [1], [1], [2], [0, 0, 0, 1, 1, 2], [0], [0]>} : vector<2x8x8xbf16>, vector<2x8x32xbf16>, vector<2x8x32xf32> -> vector<2x8x32xf32>
    "tpu.trace_stop"() : () -> ()
    %81 = tpu.concatenate %71, %74, %77, %80 in 2 : vector<2x8x32xf32>, vector<2x8x32xf32>, vector<2x8x32xf32>, vector<2x8x32xf32> -> vector<2x8x128xf32>
    %82 = vector.shape_cast %81 : vector<2x8x128xf32> to vector<16x128xf32>
    %83 = arith.truncf %82 : vector<16x128xf32> to vector<16x128xbf16>
    %c0_31 = arith.constant 0 : index
    %c0_32 = arith.constant 0 : index
    %c0_33 = arith.constant 0 : index
    %84 = vector.load %arg8[%c0_31, %c0_32, %c0_33] : memref<2x128x128xbf16, #tpu.memory_space<vmem>>, vector<1x128x128xbf16>
    %85 = vector.shape_cast %84 : vector<1x128x128xbf16> to vector<128x128xbf16>
    %cst_34 = arith.constant dense<0.000000e+00> : vector<16x128xf32>
    %86 = tpu.matmul %83, %85, %cst_34 {dimension_numbers = #tpu.dot_dimension_numbers<[1], [0], [0], [1], [0, 0, 1, 1], [], []>} : vector<16x128xbf16>, vector<128x128xbf16>, vector<16x128xf32> -> vector<16x128xf32>
    %c0_35 = arith.constant 0 : index
    %c0_36 = arith.constant 0 : index
    %c0_37 = arith.constant 0 : index
    %87 = vector.load %arg9[%c0_35, %c0_36, %c0_37] : memref<2x1x128xf32, #tpu.memory_space<vmem>>, vector<1x1x128xf32>
    %88 = vector.shape_cast %87 : vector<1x1x128xf32> to vector<1x128xf32>
    %89 = vector.broadcast %88 : vector<1x128xf32> to vector<16x128xf32>
    %90 = arith.addf %86, %89 : vector<16x128xf32>
    %91 = arith.addf %1, %90 : vector<16x128xf32>
    %c0_38 = arith.constant 0 : index
    %c0_39 = arith.constant 0 : index
    %c0_40 = arith.constant 0 : index
    %92 = vector.load %arg10[%c0_38, %c0_39, %c0_40] : memref<2x1x128xf32, #tpu.memory_space<vmem>>, vector<1x1x128xf32>
    %93 = vector.shape_cast %92 : vector<1x1x128xf32> to vector<1x128xf32>
    %c0_41 = arith.constant 0 : index
    %c0_42 = arith.constant 0 : index
    %c0_43 = arith.constant 0 : index
    %94 = vector.load %arg11[%c0_41, %c0_42, %c0_43] : memref<2x1x128xf32, #tpu.memory_space<vmem>>, vector<1x1x128xf32>
    %95 = vector.shape_cast %94 : vector<1x1x128xf32> to vector<1x128xf32>
    %cst_44 = arith.constant dense<0.000000e+00> : vector<16xf32>
    %96 = vector.multi_reduction <add>, %91, %cst_44 [1] : vector<16x128xf32> to vector<16xf32>
    %97 = vector.shape_cast %96 : vector<16xf32> to vector<16x1xf32>
    %cst_45 = arith.constant 1.280000e+02 : f32
    %98 = vector.broadcast %cst_45 : f32 to vector<16x1xf32>
    %99 = arith.divf %97, %98 : vector<16x1xf32>
    %100 = vector.broadcast %99 : vector<16x1xf32> to vector<16x128xf32>
    %101 = arith.subf %91, %100 : vector<16x128xf32>
    %102 = arith.mulf %101, %101 : vector<16x128xf32>
    %cst_46 = arith.constant dense<0.000000e+00> : vector<16xf32>
    %103 = vector.multi_reduction <add>, %102, %cst_46 [1] : vector<16x128xf32> to vector<16xf32>
    %104 = vector.shape_cast %103 : vector<16xf32> to vector<16x1xf32>
    %cst_47 = arith.constant 1.280000e+02 : f32
    %105 = vector.broadcast %cst_47 : f32 to vector<16x1xf32>
    %106 = arith.divf %104, %105 : vector<16x1xf32>
    %107 = vector.broadcast %99 : vector<16x1xf32> to vector<16x128xf32>
    %108 = arith.subf %91, %107 : vector<16x128xf32>
    %cst_48 = arith.constant 9.99999974E-6 : f32
    %109 = vector.broadcast %cst_48 : f32 to vector<16x1xf32>
    %110 = arith.addf %106, %109 : vector<16x1xf32>
    %111 = math.rsqrt %110 : vector<16x1xf32>
    %112 = vector.broadcast %111 : vector<16x1xf32> to vector<16x128xf32>
    %113 = arith.mulf %108, %112 : vector<16x128xf32>
    %114 = vector.broadcast %93 : vector<1x128xf32> to vector<16x128xf32>
    %115 = arith.mulf %113, %114 : vector<16x128xf32>
    %116 = vector.broadcast %95 : vector<1x128xf32> to vector<16x128xf32>
    %117 = arith.addf %115, %116 : vector<16x128xf32>
    %118 = arith.truncf %117 : vector<16x128xf32> to vector<16x128xbf16>
    %c0_49 = arith.constant 0 : index
    %c0_50 = arith.constant 0 : index
    %c0_51 = arith.constant 0 : index
    %119 = vector.load %arg12[%c0_49, %c0_50, %c0_51] : memref<2x128x512xbf16, #tpu.memory_space<vmem>>, vector<1x128x512xbf16>
    %120 = vector.shape_cast %119 : vector<1x128x512xbf16> to vector<128x512xbf16>
    %cst_52 = arith.constant dense<0.000000e+00> : vector<16x512xf32>
    %121 = tpu.matmul %118, %120, %cst_52 {dimension_numbers = #tpu.dot_dimension_numbers<[1], [0], [0], [1], [0, 0, 1, 1], [], []>} : vector<16x128xbf16>, vector<128x512xbf16>, vector<16x512xf32> -> vector<16x512xf32>
    %c0_53 = arith.constant 0 : index
    %c0_54 = arith.constant 0 : index
    %c0_55 = arith.constant 0 : index
    %122 = vector.load %arg13[%c0_53, %c0_54, %c0_55] : memref<2x1x512xf32, #tpu.memory_space<vmem>>, vector<1x1x512xf32>
    %123 = vector.shape_cast %122 : vector<1x1x512xf32> to vector<1x512xf32>
    %124 = vector.broadcast %123 : vector<1x512xf32> to vector<16x512xf32>
    %125 = arith.addf %121, %124 : vector<16x512xf32>
    %cst_56 = arith.constant 1.702000e+00 : f32
    %126 = vector.broadcast %cst_56 : f32 to vector<16x512xf32>
    %127 = arith.mulf %126, %125 : vector<16x512xf32>
    %128 = arith.negf %127 : vector<16x512xf32>
    %129 = math.exp %128 : vector<16x512xf32>
    %cst_57 = arith.constant 1.000000e+00 : f32
    %130 = vector.broadcast %cst_57 : f32 to vector<16x512xf32>
    %131 = arith.addf %130, %129 : vector<16x512xf32>
    %132 = arith.divf %130, %131 : vector<16x512xf32>
    %133 = arith.mulf %125, %132 : vector<16x512xf32>
    %134 = arith.truncf %133 : vector<16x512xf32> to vector<16x512xbf16>
    %c0_58 = arith.constant 0 : index
    %c0_59 = arith.constant 0 : index
    %c0_60 = arith.constant 0 : index
    %135 = vector.load %arg14[%c0_58, %c0_59, %c0_60] : memref<2x512x128xbf16, #tpu.memory_space<vmem>>, vector<1x512x128xbf16>
    %136 = vector.shape_cast %135 : vector<1x512x128xbf16> to vector<512x128xbf16>
    %cst_61 = arith.constant dense<0.000000e+00> : vector<16x128xf32>
    %137 = tpu.matmul %134, %136, %cst_61 {dimension_numbers = #tpu.dot_dimension_numbers<[1], [0], [0], [1], [0, 0, 1, 1], [], []>} : vector<16x512xbf16>, vector<512x128xbf16>, vector<16x128xf32> -> vector<16x128xf32>
    %c0_62 = arith.constant 0 : index
    %c0_63 = arith.constant 0 : index
    %c0_64 = arith.constant 0 : index
    %138 = vector.load %arg15[%c0_62, %c0_63, %c0_64] : memref<2x1x128xf32, #tpu.memory_space<vmem>>, vector<1x1x128xf32>
    %139 = vector.shape_cast %138 : vector<1x1x128xf32> to vector<1x128xf32>
    %140 = vector.broadcast %139 : vector<1x128xf32> to vector<16x128xf32>
    %141 = arith.addf %137, %140 : vector<16x128xf32>
    %142 = arith.addf %91, %141 : vector<16x128xf32>
    %c1 = arith.constant 1 : index
    %c0_65 = arith.constant 0 : index
    %c0_66 = arith.constant 0 : index
    %143 = vector.load %arg4[%c1, %c0_65, %c0_66] : memref<2x1x128xf32, #tpu.memory_space<vmem>>, vector<1x1x128xf32>
    %144 = vector.shape_cast %143 : vector<1x1x128xf32> to vector<1x128xf32>
    %c1_67 = arith.constant 1 : index
    %c0_68 = arith.constant 0 : index
    %c0_69 = arith.constant 0 : index
    %145 = vector.load %arg5[%c1_67, %c0_68, %c0_69] : memref<2x1x128xf32, #tpu.memory_space<vmem>>, vector<1x1x128xf32>
    %146 = vector.shape_cast %145 : vector<1x1x128xf32> to vector<1x128xf32>
    %cst_70 = arith.constant dense<0.000000e+00> : vector<16xf32>
    %147 = vector.multi_reduction <add>, %142, %cst_70 [1] : vector<16x128xf32> to vector<16xf32>
    %148 = vector.shape_cast %147 : vector<16xf32> to vector<16x1xf32>
    %cst_71 = arith.constant 1.280000e+02 : f32
    %149 = vector.broadcast %cst_71 : f32 to vector<16x1xf32>
    %150 = arith.divf %148, %149 : vector<16x1xf32>
    %151 = vector.broadcast %150 : vector<16x1xf32> to vector<16x128xf32>
    %152 = arith.subf %142, %151 : vector<16x128xf32>
    %153 = arith.mulf %152, %152 : vector<16x128xf32>
    %cst_72 = arith.constant dense<0.000000e+00> : vector<16xf32>
    %154 = vector.multi_reduction <add>, %153, %cst_72 [1] : vector<16x128xf32> to vector<16xf32>
    %155 = vector.shape_cast %154 : vector<16xf32> to vector<16x1xf32>
    %cst_73 = arith.constant 1.280000e+02 : f32
    %156 = vector.broadcast %cst_73 : f32 to vector<16x1xf32>
    %157 = arith.divf %155, %156 : vector<16x1xf32>
    %158 = vector.broadcast %150 : vector<16x1xf32> to vector<16x128xf32>
    %159 = arith.subf %142, %158 : vector<16x128xf32>
    %cst_74 = arith.constant 9.99999974E-6 : f32
    %160 = vector.broadcast %cst_74 : f32 to vector<16x1xf32>
    %161 = arith.addf %157, %160 : vector<16x1xf32>
    %162 = math.rsqrt %161 : vector<16x1xf32>
    %163 = vector.broadcast %162 : vector<16x1xf32> to vector<16x128xf32>
    %164 = arith.mulf %159, %163 : vector<16x128xf32>
    %165 = vector.broadcast %144 : vector<1x128xf32> to vector<16x128xf32>
    %166 = arith.mulf %164, %165 : vector<16x128xf32>
    %167 = vector.broadcast %146 : vector<1x128xf32> to vector<16x128xf32>
    %168 = arith.addf %166, %167 : vector<16x128xf32>
    %169 = arith.truncf %168 : vector<16x128xf32> to vector<16x128xbf16>
    %c1_75 = arith.constant 1 : index
    %c0_76 = arith.constant 0 : index
    %c0_77 = arith.constant 0 : index
    %170 = vector.load %arg6[%c1_75, %c0_76, %c0_77] : memref<2x128x384xbf16, #tpu.memory_space<vmem>>, vector<1x128x384xbf16>
    %171 = vector.shape_cast %170 : vector<1x128x384xbf16> to vector<128x384xbf16>
    %cst_78 = arith.constant dense<0.000000e+00> : vector<16x384xf32>
    %172 = tpu.matmul %169, %171, %cst_78 {dimension_numbers = #tpu.dot_dimension_numbers<[1], [0], [0], [1], [0, 0, 1, 1], [], []>} : vector<16x128xbf16>, vector<128x384xbf16>, vector<16x384xf32> -> vector<16x384xf32>
    %c1_79 = arith.constant 1 : index
    %c0_80 = arith.constant 0 : index
    %c0_81 = arith.constant 0 : index
    %173 = vector.load %arg7[%c1_79, %c0_80, %c0_81] : memref<2x1x384xf32, #tpu.memory_space<vmem>>, vector<1x1x384xf32>
    %174 = vector.shape_cast %173 : vector<1x1x384xf32> to vector<1x384xf32>
    %175 = vector.broadcast %174 : vector<1x384xf32> to vector<16x384xf32>
    %176 = arith.addf %172, %175 : vector<16x384xf32>
    %177 = vector.shape_cast %176 : vector<16x384xf32> to vector<2x8x384xf32>
    %178 = arith.truncf %177 : vector<2x8x384xf32> to vector<2x8x384xbf16>
    %179 = vector.extract_strided_slice %178 {offsets = [0, 0, 0], sizes = [2, 8, 128], strides = [1, 1, 1]} : vector<2x8x384xbf16> to vector<2x8x128xbf16>
    %180 = vector.extract_strided_slice %178 {offsets = [0, 0, 128], sizes = [2, 8, 128], strides = [1, 1, 1]} : vector<2x8x384xbf16> to vector<2x8x128xbf16>
    %181 = vector.extract_strided_slice %178 {offsets = [0, 0, 256], sizes = [2, 8, 128], strides = [1, 1, 1]} : vector<2x8x384xbf16> to vector<2x8x128xbf16>
    %182 = vector.extract_strided_slice %179 {offsets = [0, 0, 0], sizes = [2, 8, 32], strides = [1, 1, 1]} : vector<2x8x128xbf16> to vector<2x8x32xbf16>
    %183 = vector.extract_strided_slice %180 {offsets = [0, 0, 0], sizes = [2, 8, 32], strides = [1, 1, 1]} : vector<2x8x128xbf16> to vector<2x8x32xbf16>
    "tpu.trace_start"() <{level = 10 : i32, message = "bqd,bkd->bqk"}> : () -> ()
    %cst_82 = arith.constant dense<0.000000e+00> : vector<2x8x8xf32>
    %184 = tpu.matmul %182, %183, %cst_82 {dimension_numbers = #tpu.dot_dimension_numbers<[2], [2], [1], [1], [0, 0, 0, 1, 1, 1], [0], [0]>} : vector<2x8x32xbf16>, vector<2x8x32xbf16>, vector<2x8x8xf32> -> vector<2x8x8xf32>
    "tpu.trace_stop"() : () -> ()
    %185 = vector.extract_strided_slice %179 {offsets = [0, 0, 32], sizes = [2, 8, 32], strides = [1, 1, 1]} : vector<2x8x128xbf16> to vector<2x8x32xbf16>
    %186 = vector.extract_strided_slice %180 {offsets = [0, 0, 32], sizes = [2, 8, 32], strides = [1, 1, 1]} : vector<2x8x128xbf16> to vector<2x8x32xbf16>
    "tpu.trace_start"() <{level = 10 : i32, message = "bqd,bkd->bqk"}> : () -> ()
    %cst_83 = arith.constant dense<0.000000e+00> : vector<2x8x8xf32>
    %187 = tpu.matmul %185, %186, %cst_83 {dimension_numbers = #tpu.dot_dimension_numbers<[2], [2], [1], [1], [0, 0, 0, 1, 1, 1], [0], [0]>} : vector<2x8x32xbf16>, vector<2x8x32xbf16>, vector<2x8x8xf32> -> vector<2x8x8xf32>
    "tpu.trace_stop"() : () -> ()
    %188 = vector.extract_strided_slice %179 {offsets = [0, 0, 64], sizes = [2, 8, 32], strides = [1, 1, 1]} : vector<2x8x128xbf16> to vector<2x8x32xbf16>
    %189 = vector.extract_strided_slice %180 {offsets = [0, 0, 64], sizes = [2, 8, 32], strides = [1, 1, 1]} : vector<2x8x128xbf16> to vector<2x8x32xbf16>
    "tpu.trace_start"() <{level = 10 : i32, message = "bqd,bkd->bqk"}> : () -> ()
    %cst_84 = arith.constant dense<0.000000e+00> : vector<2x8x8xf32>
    %190 = tpu.matmul %188, %189, %cst_84 {dimension_numbers = #tpu.dot_dimension_numbers<[2], [2], [1], [1], [0, 0, 0, 1, 1, 1], [0], [0]>} : vector<2x8x32xbf16>, vector<2x8x32xbf16>, vector<2x8x8xf32> -> vector<2x8x8xf32>
    "tpu.trace_stop"() : () -> ()
    %191 = vector.extract_strided_slice %179 {offsets = [0, 0, 96], sizes = [2, 8, 32], strides = [1, 1, 1]} : vector<2x8x128xbf16> to vector<2x8x32xbf16>
    %192 = vector.extract_strided_slice %180 {offsets = [0, 0, 96], sizes = [2, 8, 32], strides = [1, 1, 1]} : vector<2x8x128xbf16> to vector<2x8x32xbf16>
    "tpu.trace_start"() <{level = 10 : i32, message = "bqd,bkd->bqk"}> : () -> ()
    %cst_85 = arith.constant dense<0.000000e+00> : vector<2x8x8xf32>
    %193 = tpu.matmul %191, %192, %cst_85 {dimension_numbers = #tpu.dot_dimension_numbers<[2], [2], [1], [1], [0, 0, 0, 1, 1, 1], [0], [0]>} : vector<2x8x32xbf16>, vector<2x8x32xbf16>, vector<2x8x8xf32> -> vector<2x8x8xf32>
    "tpu.trace_stop"() : () -> ()
    %194 = tpu.concatenate %184, %187, %190, %193 in 0 : vector<2x8x8xf32>, vector<2x8x8xf32>, vector<2x8x8xf32>, vector<2x8x8xf32> -> vector<8x8x8xf32>
    %195 = vector.shape_cast %2 : vector<8x8xf32> to vector<1x8x8xf32>
    %196 = vector.broadcast %195 : vector<1x8x8xf32> to vector<8x8x8xf32>
    %197 = arith.addf %194, %196 : vector<8x8x8xf32>
    %cst_86 = arith.constant dense<0xFF800000> : vector<8x8xf32>
    %198 = vector.multi_reduction <maximumf>, %197, %cst_86 [2] : vector<8x8x8xf32> to vector<8x8xf32>
    %199 = vector.shape_cast %198 : vector<8x8xf32> to vector<8x8x1xf32>
    %200 = vector.broadcast %199 : vector<8x8x1xf32> to vector<8x8x8xf32>
    %201 = arith.subf %197, %200 : vector<8x8x8xf32>
    %202 = math.exp %201 : vector<8x8x8xf32>
    %cst_87 = arith.constant dense<0.000000e+00> : vector<8x8xf32>
    %203 = vector.multi_reduction <add>, %202, %cst_87 [2] : vector<8x8x8xf32> to vector<8x8xf32>
    %204 = vector.shape_cast %203 : vector<8x8xf32> to vector<8x8x1xf32>
    %205 = tpu.reciprocal %204 {approx = true} : vector<8x8x1xf32> -> vector<8x8x1xf32>
    %206 = vector.broadcast %205 : vector<8x8x1xf32> to vector<8x8x8xf32>
    %207 = arith.mulf %202, %206 : vector<8x8x8xf32>
    %208 = arith.truncf %207 : vector<8x8x8xf32> to vector<8x8x8xbf16>
    %209 = vector.extract_strided_slice %208 {offsets = [0, 0, 0], sizes = [2, 8, 8], strides = [1, 1, 1]} : vector<8x8x8xbf16> to vector<2x8x8xbf16>
    %210 = vector.extract_strided_slice %181 {offsets = [0, 0, 0], sizes = [2, 8, 32], strides = [1, 1, 1]} : vector<2x8x128xbf16> to vector<2x8x32xbf16>
    "tpu.trace_start"() <{level = 10 : i32, message = "bqk,bkd->bqd"}> : () -> ()
    %cst_88 = arith.constant dense<0.000000e+00> : vector<2x8x32xf32>
    %211 = tpu.matmul %209, %210, %cst_88 {dimension_numbers = #tpu.dot_dimension_numbers<[2], [1], [1], [2], [0, 0, 0, 1, 1, 2], [0], [0]>} : vector<2x8x8xbf16>, vector<2x8x32xbf16>, vector<2x8x32xf32> -> vector<2x8x32xf32>
    "tpu.trace_stop"() : () -> ()
    %212 = vector.extract_strided_slice %208 {offsets = [2, 0, 0], sizes = [2, 8, 8], strides = [1, 1, 1]} : vector<8x8x8xbf16> to vector<2x8x8xbf16>
    %213 = vector.extract_strided_slice %181 {offsets = [0, 0, 32], sizes = [2, 8, 32], strides = [1, 1, 1]} : vector<2x8x128xbf16> to vector<2x8x32xbf16>
    "tpu.trace_start"() <{level = 10 : i32, message = "bqk,bkd->bqd"}> : () -> ()
    %cst_89 = arith.constant dense<0.000000e+00> : vector<2x8x32xf32>
    %214 = tpu.matmul %212, %213, %cst_89 {dimension_numbers = #tpu.dot_dimension_numbers<[2], [1], [1], [2], [0, 0, 0, 1, 1, 2], [0], [0]>} : vector<2x8x8xbf16>, vector<2x8x32xbf16>, vector<2x8x32xf32> -> vector<2x8x32xf32>
    "tpu.trace_stop"() : () -> ()
    %215 = vector.extract_strided_slice %208 {offsets = [4, 0, 0], sizes = [2, 8, 8], strides = [1, 1, 1]} : vector<8x8x8xbf16> to vector<2x8x8xbf16>
    %216 = vector.extract_strided_slice %181 {offsets = [0, 0, 64], sizes = [2, 8, 32], strides = [1, 1, 1]} : vector<2x8x128xbf16> to vector<2x8x32xbf16>
    "tpu.trace_start"() <{level = 10 : i32, message = "bqk,bkd->bqd"}> : () -> ()
    %cst_90 = arith.constant dense<0.000000e+00> : vector<2x8x32xf32>
    %217 = tpu.matmul %215, %216, %cst_90 {dimension_numbers = #tpu.dot_dimension_numbers<[2], [1], [1], [2], [0, 0, 0, 1, 1, 2], [0], [0]>} : vector<2x8x8xbf16>, vector<2x8x32xbf16>, vector<2x8x32xf32> -> vector<2x8x32xf32>
    "tpu.trace_stop"() : () -> ()
    %218 = vector.extract_strided_slice %208 {offsets = [6, 0, 0], sizes = [2, 8, 8], strides = [1, 1, 1]} : vector<8x8x8xbf16> to vector<2x8x8xbf16>
    %219 = vector.extract_strided_slice %181 {offsets = [0, 0, 96], sizes = [2, 8, 32], strides = [1, 1, 1]} : vector<2x8x128xbf16> to vector<2x8x32xbf16>
    "tpu.trace_start"() <{level = 10 : i32, message = "bqk,bkd->bqd"}> : () -> ()
    %cst_91 = arith.constant dense<0.000000e+00> : vector<2x8x32xf32>
    %220 = tpu.matmul %218, %219, %cst_91 {dimension_numbers = #tpu.dot_dimension_numbers<[2], [1], [1], [2], [0, 0, 0, 1, 1, 2], [0], [0]>} : vector<2x8x8xbf16>, vector<2x8x32xbf16>, vector<2x8x32xf32> -> vector<2x8x32xf32>
    "tpu.trace_stop"() : () -> ()
    %221 = tpu.concatenate %211, %214, %217, %220 in 2 : vector<2x8x32xf32>, vector<2x8x32xf32>, vector<2x8x32xf32>, vector<2x8x32xf32> -> vector<2x8x128xf32>
    %222 = vector.shape_cast %221 : vector<2x8x128xf32> to vector<16x128xf32>
    %223 = arith.truncf %222 : vector<16x128xf32> to vector<16x128xbf16>
    %c1_92 = arith.constant 1 : index
    %c0_93 = arith.constant 0 : index
    %c0_94 = arith.constant 0 : index
    %224 = vector.load %arg8[%c1_92, %c0_93, %c0_94] : memref<2x128x128xbf16, #tpu.memory_space<vmem>>, vector<1x128x128xbf16>
    %225 = vector.shape_cast %224 : vector<1x128x128xbf16> to vector<128x128xbf16>
    %cst_95 = arith.constant dense<0.000000e+00> : vector<16x128xf32>
    %226 = tpu.matmul %223, %225, %cst_95 {dimension_numbers = #tpu.dot_dimension_numbers<[1], [0], [0], [1], [0, 0, 1, 1], [], []>} : vector<16x128xbf16>, vector<128x128xbf16>, vector<16x128xf32> -> vector<16x128xf32>
    %c1_96 = arith.constant 1 : index
    %c0_97 = arith.constant 0 : index
    %c0_98 = arith.constant 0 : index
    %227 = vector.load %arg9[%c1_96, %c0_97, %c0_98] : memref<2x1x128xf32, #tpu.memory_space<vmem>>, vector<1x1x128xf32>
    %228 = vector.shape_cast %227 : vector<1x1x128xf32> to vector<1x128xf32>
    %229 = vector.broadcast %228 : vector<1x128xf32> to vector<16x128xf32>
    %230 = arith.addf %226, %229 : vector<16x128xf32>
    %231 = arith.addf %142, %230 : vector<16x128xf32>
    %c1_99 = arith.constant 1 : index
    %c0_100 = arith.constant 0 : index
    %c0_101 = arith.constant 0 : index
    %232 = vector.load %arg10[%c1_99, %c0_100, %c0_101] : memref<2x1x128xf32, #tpu.memory_space<vmem>>, vector<1x1x128xf32>
    %233 = vector.shape_cast %232 : vector<1x1x128xf32> to vector<1x128xf32>
    %c1_102 = arith.constant 1 : index
    %c0_103 = arith.constant 0 : index
    %c0_104 = arith.constant 0 : index
    %234 = vector.load %arg11[%c1_102, %c0_103, %c0_104] : memref<2x1x128xf32, #tpu.memory_space<vmem>>, vector<1x1x128xf32>
    %235 = vector.shape_cast %234 : vector<1x1x128xf32> to vector<1x128xf32>
    %cst_105 = arith.constant dense<0.000000e+00> : vector<16xf32>
    %236 = vector.multi_reduction <add>, %231, %cst_105 [1] : vector<16x128xf32> to vector<16xf32>
    %237 = vector.shape_cast %236 : vector<16xf32> to vector<16x1xf32>
    %cst_106 = arith.constant 1.280000e+02 : f32
    %238 = vector.broadcast %cst_106 : f32 to vector<16x1xf32>
    %239 = arith.divf %237, %238 : vector<16x1xf32>
    %240 = vector.broadcast %239 : vector<16x1xf32> to vector<16x128xf32>
    %241 = arith.subf %231, %240 : vector<16x128xf32>
    %242 = arith.mulf %241, %241 : vector<16x128xf32>
    %cst_107 = arith.constant dense<0.000000e+00> : vector<16xf32>
    %243 = vector.multi_reduction <add>, %242, %cst_107 [1] : vector<16x128xf32> to vector<16xf32>
    %244 = vector.shape_cast %243 : vector<16xf32> to vector<16x1xf32>
    %cst_108 = arith.constant 1.280000e+02 : f32
    %245 = vector.broadcast %cst_108 : f32 to vector<16x1xf32>
    %246 = arith.divf %244, %245 : vector<16x1xf32>
    %247 = vector.broadcast %239 : vector<16x1xf32> to vector<16x128xf32>
    %248 = arith.subf %231, %247 : vector<16x128xf32>
    %cst_109 = arith.constant 9.99999974E-6 : f32
    %249 = vector.broadcast %cst_109 : f32 to vector<16x1xf32>
    %250 = arith.addf %246, %249 : vector<16x1xf32>
    %251 = math.rsqrt %250 : vector<16x1xf32>
    %252 = vector.broadcast %251 : vector<16x1xf32> to vector<16x128xf32>
    %253 = arith.mulf %248, %252 : vector<16x128xf32>
    %254 = vector.broadcast %233 : vector<1x128xf32> to vector<16x128xf32>
    %255 = arith.mulf %253, %254 : vector<16x128xf32>
    %256 = vector.broadcast %235 : vector<1x128xf32> to vector<16x128xf32>
    %257 = arith.addf %255, %256 : vector<16x128xf32>
    %258 = arith.truncf %257 : vector<16x128xf32> to vector<16x128xbf16>
    %c1_110 = arith.constant 1 : index
    %c0_111 = arith.constant 0 : index
    %c0_112 = arith.constant 0 : index
    %259 = vector.load %arg12[%c1_110, %c0_111, %c0_112] : memref<2x128x512xbf16, #tpu.memory_space<vmem>>, vector<1x128x512xbf16>
    %260 = vector.shape_cast %259 : vector<1x128x512xbf16> to vector<128x512xbf16>
    %cst_113 = arith.constant dense<0.000000e+00> : vector<16x512xf32>
    %261 = tpu.matmul %258, %260, %cst_113 {dimension_numbers = #tpu.dot_dimension_numbers<[1], [0], [0], [1], [0, 0, 1, 1], [], []>} : vector<16x128xbf16>, vector<128x512xbf16>, vector<16x512xf32> -> vector<16x512xf32>
    %c1_114 = arith.constant 1 : index
    %c0_115 = arith.constant 0 : index
    %c0_116 = arith.constant 0 : index
    %262 = vector.load %arg13[%c1_114, %c0_115, %c0_116] : memref<2x1x512xf32, #tpu.memory_space<vmem>>, vector<1x1x512xf32>
    %263 = vector.shape_cast %262 : vector<1x1x512xf32> to vector<1x512xf32>
    %264 = vector.broadcast %263 : vector<1x512xf32> to vector<16x512xf32>
    %265 = arith.addf %261, %264 : vector<16x512xf32>
    %cst_117 = arith.constant 1.702000e+00 : f32
    %266 = vector.broadcast %cst_117 : f32 to vector<16x512xf32>
    %267 = arith.mulf %266, %265 : vector<16x512xf32>
    %268 = arith.negf %267 : vector<16x512xf32>
    %269 = math.exp %268 : vector<16x512xf32>
    %cst_118 = arith.constant 1.000000e+00 : f32
    %270 = vector.broadcast %cst_118 : f32 to vector<16x512xf32>
    %271 = arith.addf %270, %269 : vector<16x512xf32>
    %272 = arith.divf %270, %271 : vector<16x512xf32>
    %273 = arith.mulf %265, %272 : vector<16x512xf32>
    %274 = arith.truncf %273 : vector<16x512xf32> to vector<16x512xbf16>
    %c1_119 = arith.constant 1 : index
    %c0_120 = arith.constant 0 : index
    %c0_121 = arith.constant 0 : index
    %275 = vector.load %arg14[%c1_119, %c0_120, %c0_121] : memref<2x512x128xbf16, #tpu.memory_space<vmem>>, vector<1x512x128xbf16>
    %276 = vector.shape_cast %275 : vector<1x512x128xbf16> to vector<512x128xbf16>
    %cst_122 = arith.constant dense<0.000000e+00> : vector<16x128xf32>
    %277 = tpu.matmul %274, %276, %cst_122 {dimension_numbers = #tpu.dot_dimension_numbers<[1], [0], [0], [1], [0, 0, 1, 1], [], []>} : vector<16x512xbf16>, vector<512x128xbf16>, vector<16x128xf32> -> vector<16x128xf32>
    %c1_123 = arith.constant 1 : index
    %c0_124 = arith.constant 0 : index
    %c0_125 = arith.constant 0 : index
    %278 = vector.load %arg15[%c1_123, %c0_124, %c0_125] : memref<2x1x128xf32, #tpu.memory_space<vmem>>, vector<1x1x128xf32>
    %279 = vector.shape_cast %278 : vector<1x1x128xf32> to vector<1x128xf32>
    %280 = vector.broadcast %279 : vector<1x128xf32> to vector<16x128xf32>
    %281 = arith.addf %277, %280 : vector<16x128xf32>
    %282 = arith.addf %231, %281 : vector<16x128xf32>
    %c0_126 = arith.constant 0 : index
    %c0_127 = arith.constant 0 : index
    %283 = vector.load %arg16[%c0_126, %c0_127] : memref<1x128xf32, #tpu.memory_space<vmem>>, vector<1x128xf32>
    %c0_128 = arith.constant 0 : index
    %c0_129 = arith.constant 0 : index
    %284 = vector.load %arg17[%c0_128, %c0_129] : memref<1x128xf32, #tpu.memory_space<vmem>>, vector<1x128xf32>
    %cst_130 = arith.constant dense<0.000000e+00> : vector<16xf32>
    %285 = vector.multi_reduction <add>, %282, %cst_130 [1] : vector<16x128xf32> to vector<16xf32>
    %286 = vector.shape_cast %285 : vector<16xf32> to vector<16x1xf32>
    %cst_131 = arith.constant 1.280000e+02 : f32
    %287 = vector.broadcast %cst_131 : f32 to vector<16x1xf32>
    %288 = arith.divf %286, %287 : vector<16x1xf32>
    %289 = vector.broadcast %288 : vector<16x1xf32> to vector<16x128xf32>
    %290 = arith.subf %282, %289 : vector<16x128xf32>
    %291 = arith.mulf %290, %290 : vector<16x128xf32>
    %cst_132 = arith.constant dense<0.000000e+00> : vector<16xf32>
    %292 = vector.multi_reduction <add>, %291, %cst_132 [1] : vector<16x128xf32> to vector<16xf32>
    %293 = vector.shape_cast %292 : vector<16xf32> to vector<16x1xf32>
    %cst_133 = arith.constant 1.280000e+02 : f32
    %294 = vector.broadcast %cst_133 : f32 to vector<16x1xf32>
    %295 = arith.divf %293, %294 : vector<16x1xf32>
    %296 = vector.broadcast %288 : vector<16x1xf32> to vector<16x128xf32>
    %297 = arith.subf %282, %296 : vector<16x128xf32>
    %cst_134 = arith.constant 9.99999974E-6 : f32
    %298 = vector.broadcast %cst_134 : f32 to vector<16x1xf32>
    %299 = arith.addf %295, %298 : vector<16x1xf32>
    %300 = math.rsqrt %299 : vector<16x1xf32>
    %301 = vector.broadcast %300 : vector<16x1xf32> to vector<16x128xf32>
    %302 = arith.mulf %297, %301 : vector<16x128xf32>
    %303 = vector.broadcast %283 : vector<1x128xf32> to vector<16x128xf32>
    %304 = arith.mulf %302, %303 : vector<16x128xf32>
    %305 = vector.broadcast %284 : vector<1x128xf32> to vector<16x128xf32>
    %306 = arith.addf %304, %305 : vector<16x128xf32>
    %c0_135 = arith.constant 0 : index
    %c0_136 = arith.constant 0 : index
    %307 = vector.load %arg3[%c0_135, %c0_136] : memref<2x16xf32, #tpu.memory_space<vmem>>, vector<2x16xf32>
    %cst_137 = arith.constant dense<0.000000e+00> : vector<2x128xf32>
    %308 = tpu.matmul %307, %306, %cst_137 {dimension_numbers = #tpu.dot_dimension_numbers<[1], [0], [0], [1], [0, 0, 1, 1], [], []>} : vector<2x16xf32>, vector<16x128xf32>, vector<2x128xf32> -> vector<2x128xf32>
    %309 = arith.truncf %308 : vector<2x128xf32> to vector<2x128xbf16>
    %c0_138 = arith.constant 0 : index
    %c0_139 = arith.constant 0 : index
    %310 = vector.load %arg18[%c0_138, %c0_139] : memref<128x128xbf16, #tpu.memory_space<vmem>>, vector<128x128xbf16>
    %cst_140 = arith.constant dense<0.000000e+00> : vector<2x128xf32>
    %311 = tpu.matmul %309, %310, %cst_140 {dimension_numbers = #tpu.dot_dimension_numbers<[1], [0], [0], [1], [0, 0, 1, 1], [], []>} : vector<2x128xbf16>, vector<128x128xbf16>, vector<2x128xf32> -> vector<2x128xf32>
    %c0_141 = arith.constant 0 : index
    %c0_142 = arith.constant 0 : index
    %312 = vector.load %arg19[%c0_141, %c0_142] : memref<2x128xf32, #tpu.memory_space<vmem>>, vector<2x128xf32>
    tpu.vector_store %arg19[%c0_141, %c0_142], %311 {strides = array<i32>} : memref<2x128xf32, #tpu.memory_space<vmem>>, vector<2x128xf32>,
    return
  }
  func.func @transform_0(%arg0: i32) -> (i32, i32, i32) {
    %c0_i32 = arith.constant 0 : i32
    %c0_i32_0 = arith.constant 0 : i32
    %c0_i32_1 = arith.constant 0 : i32
    %c0_i32_2 = arith.constant 0 : i32
    return %c0_i32, %c0_i32_0, %c0_i32_1 : i32, i32, i32
  }
  func.func @transform_1(%arg0: i32) -> (i32, i32) {
    %c0_i32 = arith.constant 0 : i32
    %c0_i32_0 = arith.constant 0 : i32
    %c0_i32_1 = arith.constant 0 : i32
    return %c0_i32, %c0_i32_0 : i32, i32
  }
  func.func @transform_2(%arg0: i32) -> (i32, i32) {
    %c0_i32 = arith.constant 0 : i32
    %c0_i32_0 = arith.constant 0 : i32
    %c0_i32_1 = arith.constant 0 : i32
    return %c0_i32, %c0_i32_0 : i32, i32
  }
  func.func @transform_3(%arg0: i32) -> (i32, i32, i32) {
    %c0_i32 = arith.constant 0 : i32
    %c0_i32_0 = arith.constant 0 : i32
    %c0_i32_1 = arith.constant 0 : i32
    %c0_i32_2 = arith.constant 0 : i32
    return %c0_i32, %c0_i32_0, %c0_i32_1 : i32, i32, i32
  }
  func.func @transform_4(%arg0: i32) -> (i32, i32, i32) {
    %c0_i32 = arith.constant 0 : i32
    %c0_i32_0 = arith.constant 0 : i32
    %c0_i32_1 = arith.constant 0 : i32
    %c0_i32_2 = arith.constant 0 : i32
    return %c0_i32, %c0_i32_0, %c0_i32_1 : i32, i32, i32
  }
  func.func @transform_5(%arg0: i32) -> (i32, i32, i32) {
    %c0_i32 = arith.constant 0 : i32
    %c0_i32_0 = arith.constant 0 : i32
    %c0_i32_1 = arith.constant 0 : i32
    %c0_i32_2 = arith.constant 0 : i32
    return %c0_i32, %c0_i32_0, %c0_i32_1 : i32, i32, i32
  }
  func.func @transform_6(%arg0: i32) -> (i32, i32, i32) {
    %c0_i32 = arith.constant 0 : i32
    %c0_i32_0 = arith.constant 0 : i32
    %c0_i32_1 = arith.constant 0 : i32
    %c0_i32_2 = arith.constant 0 : i32
    return %c0_i32, %c0_i32_0, %c0_i32_1 : i32, i32, i32
  }
  func.func @transform_7(%arg0: i32) -> (i32, i32, i32) {
    %c0_i32 = arith.constant 0 : i32
    %c0_i32_0 = arith.constant 0 : i32
    %c0_i32_1 = arith.constant 0 : i32
    %c0_i32_2 = arith.constant 0 : i32
    return %c0_i32, %c0_i32_0, %c0_i32_1 : i32, i32, i32
  }
  func.func @transform_8(%arg0: i32) -> (i32, i32, i32) {
    %c0_i32 = arith.constant 0 : i32
    %c0_i32_0 = arith.constant 0 : i32
    %c0_i32_1 = arith.constant 0 : i32
    %c0_i32_2 = arith.constant 0 : i32
    return %c0_i32, %c0_i32_0, %c0_i32_1 : i32, i32, i32
  }
  func.func @transform_9(%arg0: i32) -> (i32, i32, i32) {
    %c0_i32 = arith.constant 0 : i32
    %c0_i32_0 = arith.constant 0 : i32
    %c0_i32_1 = arith.constant 0 : i32
    %c0_i32_2 = arith.constant 0 : i32
    return %c0_i32, %c0_i32_0, %c0_i32_1 : i32, i32, i32
  }
  func.func @transform_10(%arg0: i32) -> (i32, i32, i32) {
    %c0_i32 = arith.constant 0 : i32
    %c0_i32_0 = arith.constant 0 : i32
    %c0_i32_1 = arith.constant 0 : i32
    %c0_i32_2 = arith.constant 0 : i32
    return %c0_i32, %c0_i32_0, %c0_i32_1 : i32, i32, i32
  }
  func.func @transform_11(%arg0: i32) -> (i32, i32, i32) {
    %c0_i32 = arith.constant 0 : i32
    %c0_i32_0 = arith.constant 0 : i32
    %c0_i32_1 = arith.constant 0 : i32
    %c0_i32_2 = arith.constant 0 : i32
    return %c0_i32, %c0_i32_0, %c0_i32_1 : i32, i32, i32
  }
  func.func @transform_12(%arg0: i32) -> (i32, i32, i32) {
    %c0_i32 = arith.constant 0 : i32
    %c0_i32_0 = arith.constant 0 : i32
    %c0_i32_1 = arith.constant 0 : i32
    %c0_i32_2 = arith.constant 0 : i32
    return %c0_i32, %c0_i32_0, %c0_i32_1 : i32, i32, i32
  }
  func.func @transform_13(%arg0: i32) -> (i32, i32, i32) {
    %c0_i32 = arith.constant 0 : i32
    %c0_i32_0 = arith.constant 0 : i32
    %c0_i32_1 = arith.constant 0 : i32
    %c0_i32_2 = arith.constant 0 : i32
    return %c0_i32, %c0_i32_0, %c0_i32_1 : i32, i32, i32
  }
  func.func @transform_14(%arg0: i32) -> (i32, i32, i32) {
    %c0_i32 = arith.constant 0 : i32
    %c0_i32_0 = arith.constant 0 : i32
    %c0_i32_1 = arith.constant 0 : i32
    %c0_i32_2 = arith.constant 0 : i32
    return %c0_i32, %c0_i32_0, %c0_i32_1 : i32, i32, i32
  }
  func.func @transform_15(%arg0: i32) -> (i32, i32) {
    %c0_i32 = arith.constant 0 : i32
    %c0_i32_0 = arith.constant 0 : i32
    %c0_i32_1 = arith.constant 0 : i32
    return %c0_i32, %c0_i32_0 : i32, i32
  }
  func.func @transform_16(%arg0: i32) -> (i32, i32) {
    %c0_i32 = arith.constant 0 : i32
    %c0_i32_0 = arith.constant 0 : i32
    %c0_i32_1 = arith.constant 0 : i32
    return %c0_i32, %c0_i32_0 : i32, i32
  }
  func.func @transform_17(%arg0: i32) -> (i32, i32) {
    %c0_i32 = arith.constant 0 : i32
    %c0_i32_0 = arith.constant 0 : i32
    %c0_i32_1 = arith.constant 0 : i32
    return %c0_i32, %c0_i32_0 : i32, i32
  }
  func.func @transform_18(%arg0: i32) -> (i32, i32) {
    %c0_i32 = arith.constant 0 : i32
    %c0_i32_0 = arith.constant 0 : i32
    %c0_i32_1 = arith.constant 0 : i32
    return %c0_i32, %c0_i32_0 : i32, i32
  }
}

</mosaic_0001>

<llo_original>
// kernel: tpu_custom_call.1
$region0: #{tpu_custom_call.1}
  #allocation0 [shape = 'u32[]', space=smem, size = 0x4, offset = 0x4, fixed_abs, tag = 'smem constant byte address 0x4 - core index']
  #allocation1 [shape = 'u32[144,128]{1,0:T(1,128)}', space=vmem, size = 0x12000, scoped, tag = 'internal scratch']
  %s0 = inlined_call_operand.hbm [shape: f32[2,8,128], index: 0, kind: input, shape index: {}]
  %s1 = inlined_call_operand.hbm [shape: f32[8,8], index: 1, kind: input, shape index: {}]
  %s2 = inlined_call_operand.vmem [shape: f32[2,16], index: 2, kind: input, shape index: {}]
  %s3 = inlined_call_operand.hbm [shape: f32[2,1,128], index: 3, kind: input, shape index: {}]
  %s4 = inlined_call_operand.hbm [shape: f32[2,1,128], index: 4, kind: input, shape index: {}]
  %s5 = inlined_call_operand.hbm [shape: bf16[2,128,384], index: 5, kind: input, shape index: {}]
  %s6 = inlined_call_operand.vmem [shape: f32[2,1,384], index: 6, kind: input, shape index: {}]
  %s7 = inlined_call_operand.hbm [shape: bf16[2,128,128], index: 7, kind: input, shape index: {}]
  %s8 = inlined_call_operand.hbm [shape: f32[2,1,128], index: 8, kind: input, shape index: {}]
  %s9 = inlined_call_operand.hbm [shape: f32[2,1,128], index: 9, kind: input, shape index: {}]
  %s10 = inlined_call_operand.vmem [shape: f32[2,1,128], index: 10, kind: input, shape index: {}]
  %s11 = inlined_call_operand.hbm [shape: bf16[2,128,512], index: 11, kind: input, shape index: {}]
  %s12 = inlined_call_operand.vmem [shape: f32[2,1,512], index: 12, kind: input, shape index: {}]
  %s13 = inlined_call_operand.hbm [shape: bf16[2,512,128], index: 13, kind: input, shape index: {}]
  %s14 = inlined_call_operand.vmem [shape: f32[2,1,128], index: 14, kind: input, shape index: {}]
  %s15 = inlined_call_operand.vmem [shape: f32[1,128], index: 15, kind: input, shape index: {}]
  %s16 = inlined_call_operand.vmem [shape: f32[1,128], index: 16, kind: input, shape index: {}]
  %s17 = inlined_call_operand.hbm [shape: bf16[128,128], index: 17, kind: input, shape index: {}]
  %s18 = inlined_call_operand.hbm [shape: f32[2,128], index: 18, kind: output, shape index: {}]
  %s19 = sld [smem:[#allocation0]]
  $region126: #{tpu_custom_call.1} parent=0
    _
  %s21 = ssub.s32 1, %s19
  %s22 = scalar_select 0, %s21, %s19
  $region1: #{tpu_custom_call.1} parent=0
    #allocation2 [shape = 'u8[8192]{0}', space=vmem, size = 0x2000, scoped, tag = 'input window, operand 0, single buffered']
    #allocation3 [shape = 's32[1]{0}', space=sflag, size = 0x4, scoped, tag = 'scoped memory for tpu_custom_call.1']
    #allocation4 [shape = 's32[1]{0}', space=sflag, size = 0x4, scoped, tag = 'scoped memory for tpu_custom_call.1']
    #allocation5 [shape = 'u8[4096]{0}', space=vmem, size = 0x1000, scoped, tag = 'input window, operand 1, single buffered']
    #allocation6 [shape = 's32[1]{0}', space=sflag, size = 0x4, scoped, tag = 'scoped memory for tpu_custom_call.1']
    #allocation7 [shape = 'u8[1024]{0}', space=vmem, size = 0x400, scoped, tag = 'input window, operand 3, single buffered']
    #allocation8 [shape = 'u8[1024]{0}', space=vmem, size = 0x400, scoped, tag = 'input window, operand 4, single buffered']
    #allocation9 [shape = 's32[1]{0}', space=sflag, size = 0x4, scoped, tag = 'scoped memory for tpu_custom_call.1']
    #allocation10 [shape = 'u8[196608]{0}', space=vmem, size = 0x30000, scoped, tag = 'input window, operand 5, single buffered']
    #allocation11 [shape = 'u8[65536]{0}', space=vmem, size = 0x10000, scoped, tag = 'input window, operand 7, single buffered']
    #allocation12 [shape = 's32[1]{0}', space=sflag, size = 0x4, scoped, tag = 'scoped memory for tpu_custom_call.1']
    #allocation13 [shape = 'u8[1024]{0}', space=vmem, size = 0x400, scoped, tag = 'input window, operand 8, single buffered']
    #allocation14 [shape = 'u8[1024]{0}', space=vmem, size = 0x400, scoped, tag = 'input window, operand 9, single buffered']
    #allocation15 [shape = 's32[1]{0}', space=sflag, size = 0x4, scoped, tag = 'scoped memory for tpu_custom_call.1']
    #allocation16 [shape = 'u8[262144]{0}', space=vmem, size = 0x40000, scoped, tag = 'input window, operand 11, single buffered']
    #allocation17 [shape = 'u8[262144]{0}', space=vmem, size = 0x40000, scoped, tag = 'input window, operand 13, single buffered']
    #allocation18 [shape = 's32[1]{0}', space=sflag, size = 0x4, scoped, tag = 'scoped memory for tpu_custom_call.1']
    #allocation19 [shape = 'u8[32768]{0}', space=vmem, size = 0x8000, scoped, tag = 'input window, operand 17, single buffered']
    #allocation20 [shape = 'u8[1024]{0}', space=vmem, size = 0x400, scoped, tag = 'output window, operand 0, single buffered']
    %23 = vsyncpa [#allocation3], 0
    %24 = vsyncpa [#allocation6], 0
    %25 = vsyncpa [#allocation9], 0
    %26 = vsyncpa [#allocation12], 0
    %27 = vsyncpa [#allocation15], 0
    %28 = vsyncpa [#allocation18], 0
    %29 = vsyncpa [#allocation4], 0
    // Predicated region
    $region2: #{tpu_custom_call.1} parent=1 // pred_check
      _
    $region3: #{tpu_custom_call.1} parent=1 // pred_check_branch
      %31 = sbr.rel (0) target = $region5
    $region4: #{tpu_custom_call.1} parent=1 // pred_region
      %s33 = ssub.s32 256, 256
      %34 = vsyncadd [#allocation3], %s33
      %s35 = sshll.u32 [#allocation2], 4
      %s36 = int_to_ptr.vmem [resolvable:$true] %s35
      %41 = dma.hbm_to_vmem [thread:$0]  %s0, 256, %s36, [#allocation3], 128, 128, 8
    $region5: #{tpu_custom_call.1} parent=1 // pred_fallthru
      _
    // Predicated region
    $region6: #{tpu_custom_call.1} parent=1 // pred_check
      _
    $region7: #{tpu_custom_call.1} parent=1 // pred_check_branch
      %43 = sbr.rel (0) target = $region9
    $region8: #{tpu_custom_call.1} parent=1 // pred_region
      %s45 = ssub.s32 128, 128
      %46 = vsyncadd [#allocation6], %s45
      %s48 = sshll.u32 [#allocation5], 4
      %s49 = int_to_ptr.vmem [resolvable:$true] %s48
      %51 = dma.hbm_to_vmem [thread:$0]  %s1, 128, %s49, [#allocation6]
    $region9: #{tpu_custom_call.1} parent=1 // pred_fallthru
      _
    // Predicated region
    $region10: #{tpu_custom_call.1} parent=1 // pred_check
      _
    $region11: #{tpu_custom_call.1} parent=1 // pred_check_branch
      %53 = sbr.rel (0) target = $region13
    $region12: #{tpu_custom_call.1} parent=1 // pred_region
      _
    $region13: #{tpu_custom_call.1} parent=1 // pred_fallthru
      _
    // Predicated region
    $region14: #{tpu_custom_call.1} parent=1 // pred_check
      _
    $region15: #{tpu_custom_call.1} parent=1 // pred_check_branch
      %55 = sbr.rel (0) target = $region17
    $region16: #{tpu_custom_call.1} parent=1 // pred_region
      %s57 = ssub.s32 32, 32
      %58 = vsyncadd [#allocation6], %s57
      %s59 = sshll.u32 [#allocation7], 4
      %s60 = int_to_ptr.vmem [resolvable:$true] %s59
      %65 = dma.hbm_to_vmem [thread:$0]  %s3, 32, %s60, [#allocation6], 16, 16, 1
    $region17: #{tpu_custom_call.1} parent=1 // pred_fallthru
      _
    // Predicated region
    $region18: #{tpu_custom_call.1} parent=1 // pred_check
      _
    $region19: #{tpu_custom_call.1} parent=1 // pred_check_branch
      %67 = sbr.rel (0) target = $region21
    $region20: #{tpu_custom_call.1} parent=1 // pred_region
      %s69 = ssub.s32 32, 32
      %70 = vsyncadd [#allocation9], %s69
      %s71 = sshll.u32 [#allocation8], 4
      %s72 = int_to_ptr.vmem [resolvable:$true] %s71
      %77 = dma.hbm_to_vmem [thread:$0]  %s4, 32, %s72, [#allocation9], 16, 16, 1
    $region21: #{tpu_custom_call.1} parent=1 // pred_fallthru
      _
    // Predicated region
    $region22: #{tpu_custom_call.1} parent=1 // pred_check
      _
    $region23: #{tpu_custom_call.1} parent=1 // pred_check_branch
      %79 = sbr.rel (0) target = $region25
    $region24: #{tpu_custom_call.1} parent=1 // pred_region
      %s81 = ssub.s32 6144, 6144
      %82 = vsyncadd [#allocation9], %s81
      %s83 = sshll.u32 [#allocation10], 4
      %s84 = int_to_ptr.vmem [resolvable:$true] %s83
      %89 = dma.hbm_to_vmem [thread:$0]  %s5, 6144, %s84, [#allocation9], 192, 192, 12
    $region25: #{tpu_custom_call.1} parent=1 // pred_fallthru
      _
    // Predicated region
    $region26: #{tpu_custom_call.1} parent=1 // pred_check
      _
    $region27: #{tpu_custom_call.1} parent=1 // pred_check_branch
      %91 = sbr.rel (0) target = $region29
    $region28: #{tpu_custom_call.1} parent=1 // pred_region
      _
    $region29: #{tpu_custom_call.1} parent=1 // pred_fallthru
      _
    // Predicated region
    $region30: #{tpu_custom_call.1} parent=1 // pred_check
      _
    $region31: #{tpu_custom_call.1} parent=1 // pred_check_branch
      %93 = sbr.rel (0) target = $region33
    $region32: #{tpu_custom_call.1} parent=1 // pred_region
      %s95 = ssub.s32 2048, 2048
      %96 = vsyncadd [#allocation12], %s95
      %s97 = sshll.u32 [#allocation11], 4
      %s98 = int_to_ptr.vmem [resolvable:$true] %s97
      %103 = dma.hbm_to_vmem [thread:$0]  %s7, 2048, %s98, [#allocation12], 64, 64, 4
    $region33: #{tpu_custom_call.1} parent=1 // pred_fallthru
      _
    // Predicated region
    $region34: #{tpu_custom_call.1} parent=1 // pred_check
      _
    $region35: #{tpu_custom_call.1} parent=1 // pred_check_branch
      %105 = sbr.rel (0) target = $region37
    $region36: #{tpu_custom_call.1} parent=1 // pred_region
      %s107 = ssub.s32 32, 32
      %108 = vsyncadd [#allocation12], %s107
      %s109 = sshll.u32 [#allocation13], 4
      %s110 = int_to_ptr.vmem [resolvable:$true] %s109
      %115 = dma.hbm_to_vmem [thread:$0]  %s8, 32, %s110, [#allocation12], 16, 16, 1
    $region37: #{tpu_custom_call.1} parent=1 // pred_fallthru
      _
    // Predicated region
    $region38: #{tpu_custom_call.1} parent=1 // pred_check
      _
    $region39: #{tpu_custom_call.1} parent=1 // pred_check_branch
      %117 = sbr.rel (0) target = $region41
    $region40: #{tpu_custom_call.1} parent=1 // pred_region
      %s119 = ssub.s32 32, 32
      %120 = vsyncadd [#allocation15], %s119
      %s121 = sshll.u32 [#allocation14], 4
      %s122 = int_to_ptr.vmem [resolvable:$true] %s121
      %127 = dma.hbm_to_vmem [thread:$0]  %s9, 32, %s122, [#allocation15], 16, 16, 1
    $region41: #{tpu_custom_call.1} parent=1 // pred_fallthru
      _
    // Predicated region
    $region42: #{tpu_custom_call.1} parent=1 // pred_check
      _
    $region43: #{tpu_custom_call.1} parent=1 // pred_check_branch
      %129 = sbr.rel (0) target = $region45
    $region44: #{tpu_custom_call.1} parent=1 // pred_region
      _
    $region45: #{tpu_custom_call.1} parent=1 // pred_fallthru
      _
    // Predicated region
    $region46: #{tpu_custom_call.1} parent=1 // pred_check
      _
    $region47: #{tpu_custom_call.1} parent=1 // pred_check_branch
      %131 = sbr.rel (0) target = $region49
    $region48: #{tpu_custom_call.1} parent=1 // pred_region
      %s133 = ssub.s32 8192, 8192
      %134 = vsyncadd [#allocation15], %s133
      %s135 = sshll.u32 [#allocation16], 4
      %s136 = int_to_ptr.vmem [resolvable:$true] %s135
      %141 = dma.hbm_to_vmem [thread:$0]  %s11, 8192, %s136, [#allocation15], 256, 256, 16
    $region49: #{tpu_custom_call.1} parent=1 // pred_fallthru
      _
    // Predicated region
    $region50: #{tpu_custom_call.1} parent=1 // pred_check
      _
    $region51: #{tpu_custom_call.1} parent=1 // pred_check_branch
      %143 = sbr.rel (0) target = $region53
    $region52: #{tpu_custom_call.1} parent=1 // pred_region
      _
    $region53: #{tpu_custom_call.1} parent=1 // pred_fallthru
      _
    // Predicated region
    $region54: #{tpu_custom_call.1} parent=1 // pred_check
      _
    $region55: #{tpu_custom_call.1} parent=1 // pred_check_branch
      %145 = sbr.rel (0) target = $region57
    $region56: #{tpu_custom_call.1} parent=1 // pred_region
      %s147 = ssub.s32 8192, 8192
      %148 = vsyncadd [#allocation18], %s147
      %s149 = sshll.u32 [#allocation17], 4
      %s150 = int_to_ptr.vmem [resolvable:$true] %s149
      %155 = dma.hbm_to_vmem [thread:$0]  %s13, 8192, %s150, [#allocation18], 64, 64, 4
    $region57: #{tpu_custom_call.1} parent=1 // pred_fallthru
      _
    // Predicated region
    $region58: #{tpu_custom_call.1} parent=1 // pred_check
      _
    $region59: #{tpu_custom_call.1} parent=1 // pred_check_branch
      %157 = sbr.rel (0) target = $region61
    $region60: #{tpu_custom_call.1} parent=1 // pred_region
      _
    $region61: #{tpu_custom_call.1} parent=1 // pred_fallthru
      _
    // Predicated region
    $region62: #{tpu_custom_call.1} parent=1 // pred_check
      _
    $region63: #{tpu_custom_call.1} parent=1 // pred_check_branch
      %159 = sbr.rel (0) target = $region65
    $region64: #{tpu_custom_call.1} parent=1 // pred_region
      _
    $region65: #{tpu_custom_call.1} parent=1 // pred_fallthru
      _
    // Predicated region
    $region66: #{tpu_custom_call.1} parent=1 // pred_check
      _
    $region67: #{tpu_custom_call.1} parent=1 // pred_check_branch
      %161 = sbr.rel (0) target = $region69
    $region68: #{tpu_custom_call.1} parent=1 // pred_region
      _
    $region69: #{tpu_custom_call.1} parent=1 // pred_fallthru
      _
    // Predicated region
    $region70: #{tpu_custom_call.1} parent=1 // pred_check
      _
    $region71: #{tpu_custom_call.1} parent=1 // pred_check_branch
      %163 = sbr.rel (0) target = $region73
    $region72: #{tpu_custom_call.1} parent=1 // pred_region
      %s165 = ssub.s32 1024, 1024
      %166 = vsyncadd [#allocation18], %s165
      %s167 = sshll.u32 [#allocation19], 4
      %s168 = int_to_ptr.vmem [resolvable:$true] %s167
      %173 = dma.hbm_to_vmem [thread:$0]  %s17, 1024, %s168, [#allocation18], 64, 64, 4
    $region73: #{tpu_custom_call.1} parent=1 // pred_fallthru
      _
    // Predicated region
    $region74: #{tpu_custom_call.1} parent=1 // pred_check
      _
    $region75: #{tpu_custom_call.1} parent=1 // pred_check_branch
      %175 = sbr.rel (0) target = $region77
    $region76: #{tpu_custom_call.1} parent=1 // pred_region
      %176 = dma.done [#allocation3], 256
    $region77: #{tpu_custom_call.1} parent=1 // pred_fallthru
      _
    // Predicated region
    $region78: #{tpu_custom_call.1} parent=1 // pred_check
      _
    $region79: #{tpu_custom_call.1} parent=1 // pred_check_branch
      %178 = sbr.rel (0) target = $region81
    $region80: #{tpu_custom_call.1} parent=1 // pred_region
      %179 = dma.done [#allocation6], 128
    $region81: #{tpu_custom_call.1} parent=1 // pred_fallthru
      _
    // Predicated region
    $region82: #{tpu_custom_call.1} parent=1 // pred_check
      _
    $region83: #{tpu_custom_call.1} parent=1 // pred_check_branch
      %181 = sbr.rel (0) target = $region85
    $region84: #{tpu_custom_call.1} parent=1 // pred_region
      %182 = dma.done [#allocation6], 32
    $region85: #{tpu_custom_call.1} parent=1 // pred_fallthru
      _
    // Predicated region
    $region86: #{tpu_custom_call.1} parent=1 // pred_check
      _
    $region87: #{tpu_custom_call.1} parent=1 // pred_check_branch
      %184 = sbr.rel (0) target = $region89
    $region88: #{tpu_custom_call.1} parent=1 // pred_region
      %185 = dma.done [#allocation9], 32
    $region89: #{tpu_custom_call.1} parent=1 // pred_fallthru
      _
    // Predicated region
    $region90: #{tpu_custom_call.1} parent=1 // pred_check
      _
    $region91: #{tpu_custom_call.1} parent=1 // pred_check_branch
      %187 = sbr.rel (0) target = $region93
    $region92: #{tpu_custom_call.1} parent=1 // pred_region
      %188 = dma.done [#allocation9], 6144
    $region93: #{tpu_custom_call.1} parent=1 // pred_fallthru
      _
    // Predicated region
    $region94: #{tpu_custom_call.1} parent=1 // pred_check
      _
    $region95: #{tpu_custom_call.1} parent=1 // pred_check_branch
      %190 = sbr.rel (0) target = $region97
    $region96: #{tpu_custom_call.1} parent=1 // pred_region
      %191 = dma.done [#allocation12], 2048
    $region97: #{tpu_custom_call.1} parent=1 // pred_fallthru
      _
    // Predicated region
    $region98: #{tpu_custom_call.1} parent=1 // pred_check
      _
    $region99: #{tpu_custom_call.1} parent=1 // pred_check_branch
      %193 = sbr.rel (0) target = $region101
    $region100: #{tpu_custom_call.1} parent=1 // pred_region
      %194 = dma.done [#allocation12], 32
    $region101: #{tpu_custom_call.1} parent=1 // pred_fallthru
      _
    // Predicated region
    $region102: #{tpu_custom_call.1} parent=1 // pred_check
      _
    $region103: #{tpu_custom_call.1} parent=1 // pred_check_branch
      %196 = sbr.rel (0) target = $region105
    $region104: #{tpu_custom_call.1} parent=1 // pred_region
      %197 = dma.done [#allocation15], 32
    $region105: #{tpu_custom_call.1} parent=1 // pred_fallthru
      _
    // Predicated region
    $region106: #{tpu_custom_call.1} parent=1 // pred_check
      _
    $region107: #{tpu_custom_call.1} parent=1 // pred_check_branch
      %199 = sbr.rel (0) target = $region109
    $region108: #{tpu_custom_call.1} parent=1 // pred_region
      %200 = dma.done [#allocation15], 8192
    $region109: #{tpu_custom_call.1} parent=1 // pred_fallthru
      _
    // Predicated region
    $region110: #{tpu_custom_call.1} parent=1 // pred_check
      _
    $region111: #{tpu_custom_call.1} parent=1 // pred_check_branch
      %202 = sbr.rel (0) target = $region113
    $region112: #{tpu_custom_call.1} parent=1 // pred_region
      %203 = dma.done [#allocation18], 8192
    $region113: #{tpu_custom_call.1} parent=1 // pred_fallthru
      _
    // Predicated region
    $region114: #{tpu_custom_call.1} parent=1 // pred_check
      _
    $region115: #{tpu_custom_call.1} parent=1 // pred_check_branch
      %205 = sbr.rel (0) target = $region117
    $region116: #{tpu_custom_call.1} parent=1 // pred_region
      %206 = dma.done [#allocation18], 1024
    $region117: #{tpu_custom_call.1} parent=1 // pred_fallthru
      _
    %v208 = vld [vmem:[#allocation2] sm:$0xff]
    %v209 = vld [vmem:[#allocation2 + $0x8] sm:$0xff]
    %v210 = vld [vmem:[#allocation5] sm:$0xff]
    %v211 = vld [vmem:[#allocation7] sm:$0x1]
    %v212 = vld [vmem:[#allocation8] sm:$0x1]
    %213 = vadd.xlane.f32.xlu0 %v208
    %v214 = vpop.xlane.xlu0 %213
    %215 = vadd.xlane.f32.xlu0 %v209
    %v216 = vpop.xlane.xlu0 %215
    %v217 = vrcp.pop 128.0
    %v218 = vmul.f32 %v214, %v217
    %v219 = vmul.f32 %v216, %v217
    %v220 = vsub.f32 %v208, %v218
    %v221 = vsub.f32 %v209, %v219
    %v222 = vmul.f32 %v220, %v220
    %v223 = vmul.f32 %v221, %v221
    %224 = vadd.xlane.f32.xlu0 %v222
    %v225 = vpop.xlane.xlu0 %224
    %226 = vadd.xlane.f32.xlu0 %v223
    %v227 = vpop.xlane.xlu0 %226
    %v228 = vmul.f32 %v225, %v217
    %v229 = vmul.f32 %v227, %v217
    %v230 = vadd.f32 %v228, 1e-05
    %v231 = vadd.f32 %v229, 1e-05
    %v232 = vrsqrt.pop %v230
    %v233 = vrsqrt.pop %v231
    %v234 = vmul.f32 %v220, %v232
    %v235 = vmul.f32 %v221, %v233
    %v237 = vlaneseq
    %v238 = vshrl.u32 %v237, 7
    %v239 = vsub.s32 0, %v238
    %v240 = vrot.slane %v211, %v239
    %v242 = vmul.f32 %v234, %v240
    %v243 = vmul.f32 %v235, %v240
    %v245 = vlaneseq
    %v246 = vshrl.u32 %v245, 7
    %v247 = vsub.s32 0, %v246
    %v248 = vrot.slane %v212, %v247
    %v250 = vadd.f32 %v242, %v248
    %v251 = vadd.f32 %v243, %v248
    %v252 = vpack.c.bf16 %v251, %v250
    %v253 = vld [vmem:[#allocation10] sm:$0xff]
    %v254 = vld [vmem:[#allocation10 + $0x8] sm:$0xf]
    %v255 = vld [vmem:[#allocation10 + $0xc] sm:$0xff]
    %v256 = vld [vmem:[#allocation10 + $0x14] sm:$0xf]
    %v257 = vld [vmem:[#allocation10 + $0x18] sm:$0xff]
    %v258 = vld [vmem:[#allocation10 + $0x20] sm:$0xf]
    %v259 = vld [vmem:[#allocation10 + $0x24] sm:$0xff]
    %v260 = vld [vmem:[#allocation10 + $0x2c] sm:$0xf]
    %v261 = vld [vmem:[#allocation10 + $0x30] sm:$0xff]
    %v262 = vld [vmem:[#allocation10 + $0x38] sm:$0xf]
    %v263 = vld [vmem:[#allocation10 + $0x3c] sm:$0xff]
    %v264 = vld [vmem:[#allocation10 + $0x44] sm:$0xf]
    %v265 = vld [vmem:[#allocation10 + $0x48] sm:$0xff]
    %v266 = vld [vmem:[#allocation10 + $0x50] sm:$0xf]
    %v267 = vld [vmem:[#allocation10 + $0x54] sm:$0xff]
    %v268 = vld [vmem:[#allocation10 + $0x5c] sm:$0xf]
    %v269 = vld [vmem:[#allocation10 + $0x60] sm:$0xff]
    %v270 = vld [vmem:[#allocation10 + $0x68] sm:$0xf]
    %v271 = vld [vmem:[#allocation10 + $0x6c] sm:$0xff]
    %v272 = vld [vmem:[#allocation10 + $0x74] sm:$0xf]
    %v273 = vld [vmem:[#allocation10 + $0x78] sm:$0xff]
    %v274 = vld [vmem:[#allocation10 + $0x80] sm:$0xf]
    %v275 = vld [vmem:[#allocation10 + $0x84] sm:$0xff]
    %v276 = vld [vmem:[#allocation10 + $0x8c] sm:$0xf]
    %v277 = vld [vmem:[#allocation10 + $0x90] sm:$0xff]
    %v278 = vld [vmem:[#allocation10 + $0x98] sm:$0xf]
    %v279 = vld [vmem:[#allocation10 + $0x9c] sm:$0xff]
    %v280 = vld [vmem:[#allocation10 + $0xa4] sm:$0xf]
    %v281 = vld [vmem:[#allocation10 + $0xa8] sm:$0xff]
    %v282 = vld [vmem:[#allocation10 + $0xb0] sm:$0xf]
    %v283 = vld [vmem:[#allocation10 + $0xb4] sm:$0xff]
    %v284 = vld [vmem:[#allocation10 + $0xbc] sm:$0xf]
    %v285 = vld [vmem:[%s6] sm:$0x7]
    %v287 = vlaneseq
    %v288 = vshrl.u32 %v287, 7
    %v289 = vsub.s32 0, %v288
    %v290 = vrot.slane %v285, %v289
    %v291 = vlaneseq
    %v292 = vshrl.u32 %v291, 7
    %v293 = vsub.s32 1, %v292
    %v294 = vrot.slane %v285, %v293
    %v295 = vlaneseq
    %v296 = vshrl.u32 %v295, 7
    %v297 = vsub.s32 2, %v296
    %v298 = vrot.slane %v285, %v297
    %v334 = vunpack.c.l.b16 %v253
    %v335 = vunpack.c.h.b16 %v253
    %v336 = vunpack.c.l.b16 %v254
    %v337 = vunpack.c.l.b16 %v255
    %v338 = vunpack.c.h.b16 %v255
    %v339 = vunpack.c.l.b16 %v256
    %v340 = vunpack.c.l.b16 %v257
    %v341 = vunpack.c.h.b16 %v257
    %v342 = vunpack.c.l.b16 %v258
    %v343 = vunpack.c.l.b16 %v259
    %v344 = vunpack.c.h.b16 %v259
    %v345 = vunpack.c.l.b16 %v260
    %v346 = vunpack.c.l.b16 %v261
    %v347 = vunpack.c.h.b16 %v261
    %v348 = vunpack.c.l.b16 %v262
    %v349 = vunpack.c.l.b16 %v263
    %v350 = vunpack.c.h.b16 %v263
    %v351 = vunpack.c.l.b16 %v264
    %v352 = vunpack.c.l.b16 %v265
    %v353 = vunpack.c.h.b16 %v265
    %v354 = vunpack.c.l.b16 %v266
    %v355 = vunpack.c.l.b16 %v267
    %v356 = vunpack.c.h.b16 %v267
    %v357 = vunpack.c.l.b16 %v268
    %v358 = vunpack.c.l.b16 %v269
    %v359 = vunpack.c.h.b16 %v269
    %v360 = vunpack.c.l.b16 %v270
    %v361 = vunpack.c.l.b16 %v271
    %v362 = vunpack.c.h.b16 %v271
    %v363 = vunpack.c.l.b16 %v272
    %v364 = vunpack.c.l.b16 %v273
    %v365 = vunpack.c.h.b16 %v273
    %v366 = vunpack.c.l.b16 %v274
    %v367 = vunpack.c.l.b16 %v275
    %v368 = vunpack.c.h.b16 %v275
    %v369 = vunpack.c.l.b16 %v276
    %v370 = vunpack.c.l.b16 %v277
    %v371 = vunpack.c.h.b16 %v277
    %v372 = vunpack.c.l.b16 %v278
    %v373 = vunpack.c.l.b16 %v279
    %v374 = vunpack.c.h.b16 %v279
    %v375 = vunpack.c.l.b16 %v280
    %v376 = vunpack.c.l.b16 %v281
    %v377 = vunpack.c.h.b16 %v281
    %v378 = vunpack.c.l.b16 %v282
    %v379 = vunpack.c.l.b16 %v283
    %v380 = vunpack.c.h.b16 %v283
    %v381 = vunpack.c.l.b16 %v284
    %v382 = vpack.c.b16 %v337, %v334
    %v383 = vpack.c.b16 %v338, %v335
    %v384 = vpack.c.b16 %v339, %v336
    %v385 = vpack.c.b16 %v343, %v340
    %v386 = vpack.c.b16 %v344, %v341
    %v387 = vpack.c.b16 %v345, %v342
    %v388 = vpack.c.b16 %v349, %v346
    %v389 = vpack.c.b16 %v350, %v347
    %v390 = vpack.c.b16 %v351, %v348
    %v391 = vpack.c.b16 %v355, %v352
    %v392 = vpack.c.b16 %v356, %v353
    %v393 = vpack.c.b16 %v357, %v354
    %v394 = vpack.c.b16 %v361, %v358
    %v395 = vpack.c.b16 %v362, %v359
    %v396 = vpack.c.b16 %v363, %v360
    %v397 = vpack.c.b16 %v367, %v364
    %v398 = vpack.c.b16 %v368, %v365
    %v399 = vpack.c.b16 %v369, %v366
    %v400 = vpack.c.b16 %v373, %v370
    %v401 = vpack.c.b16 %v374, %v371
    %v402 = vpack.c.b16 %v375, %v372
    %v403 = vpack.c.b16 %v379, %v376
    %v404 = vpack.c.b16 %v380, %v377
    %v405 = vpack.c.b16 %v381, %v378
    %430 = vmatprep.subr.bf16.mxu0 %v404
    %431 = vmatpush1.bf16.msra.mxu0 %v403
    %432 = vmatprep.subr.bf16.mxu0 %v401
    %433 = vmatpush1.bf16.msra.mxu0 %v400
    %434 = vmatprep.subr.bf16.mxu0 %v398
    %435 = vmatpush1.bf16.msra.mxu0 %v397
    %436 = vmatprep.subr.bf16.mxu0 %v395
    %437 = vmatpush1.bf16.msra.mxu0 %v394
    %438 = vmatprep.subr.bf16.mxu0 %v392
    %439 = vmatpush1.bf16.msra.mxu0 %v391
    %440 = vmatprep.subr.bf16.mxu0 %v389
    %441 = vmatpush1.bf16.msra.mxu0 %v388
    %442 = vmatprep.subr.bf16.mxu0 %v386
    %443 = vmatpush1.bf16.msra.mxu0 %v385
    %444 = vmatprep.subr.bf16.mxu0 %v383
    %445 = vmatpush1.bf16.msra.mxu0 %v382
    %446 = vmatprep.subr.bf16.mxu0 0
    %447 = vmatpush2.bf16.msra.mxu0 0
    %448 = vmatprep.subr.bf16.mxu0 0
    %449 = vmatpush2.bf16.msra.mxu0 0
    %450 = vmatprep.subr.bf16.mxu0 0
    %451 = vmatpush2.bf16.msra.mxu0 0
    %452 = vmatprep.subr.bf16.mxu0 0
    %453 = vmatpush2.bf16.msra.mxu0 0
    %454 = vmatprep.subr.bf16.mxu0 0
    %455 = vmatpush2.bf16.msra.mxu0 0
    %456 = vmatprep.subr.bf16.mxu0 0
    %457 = vmatpush2.bf16.msra.mxu0 0
    %458 = vmatprep.subr.bf16.mxu0 0
    %459 = vmatpush2.bf16.msra.mxu0 0
    %460 = vmatprep.subr.bf16.mxu0 0
    %461 = vmatpush2.bf16.msra.mxu0 0
    %462 = vmatprep.mubr.bf16.mxu0 0
    %463 = vmatmul.mubr.bf16.gmra.mxu0 %v252
    %v464 = vpop.f32.mrf.mxu0
    %v465 = vadd.f32 %v290, %v464
    %v466 = vpop.f32.mrf.mxu0
    %v467 = vadd.f32 %v294, %v466
    %v468 = vpop.f32.mrf.mxu0
    %v469 = vadd.f32 %v290, %v468
    %v470 = vpop.f32.mrf.mxu0
    %v471 = vadd.f32 %v294, %v470
    %472 = vdwg.mxu0
    %473 = vmatprep.subr.bf16.mxu0 0
    %474 = vmatpush1.bf16.msra.mxu0 %v405
    %475 = vmatprep.subr.bf16.mxu0 0
    %476 = vmatpush1.bf16.msra.mxu0 %v402
    %477 = vmatprep.subr.bf16.mxu0 0
    %478 = vmatpush1.bf16.msra.mxu0 %v399
    %479 = vmatprep.subr.bf16.mxu0 0
    %480 = vmatpush1.bf16.msra.mxu0 %v396
    %481 = vmatprep.subr.bf16.mxu0 0
    %482 = vmatpush1.bf16.msra.mxu0 %v393
    %483 = vmatprep.subr.bf16.mxu0 0
    %484 = vmatpush1.bf16.msra.mxu0 %v390
    %485 = vmatprep.subr.bf16.mxu0 0
    %486 = vmatpush1.bf16.msra.mxu0 %v387
    %487 = vmatprep.subr.bf16.mxu0 0
    %488 = vmatpush1.bf16.msra.mxu0 %v384
    %489 = vmatprep.subr.bf16.mxu0 0
    %490 = vmatpush2.bf16.msra.mxu0 0
    %491 = vmatprep.subr.bf16.mxu0 0
    %492 = vmatpush2.bf16.msra.mxu0 0
    %493 = vmatprep.subr.bf16.mxu0 0
    %494 = vmatpush2.bf16.msra.mxu0 0
    %495 = vmatprep.subr.bf16.mxu0 0
    %496 = vmatpush2.bf16.msra.mxu0 0
    %497 = vmatprep.subr.bf16.mxu0 0
    %498 = vmatpush2.bf16.msra.mxu0 0
    %499 = vmatprep.subr.bf16.mxu0 0
    %500 = vmatpush2.bf16.msra.mxu0 0
    %501 = vmatprep.subr.bf16.mxu0 0
    %502 = vmatpush2.bf16.msra.mxu0 0
    %503 = vmatprep.subr.bf16.mxu0 0
    %504 = vmatpush2.bf16.msra.mxu0 0
    %505 = vmatprep.mubr.bf16.mxu0 0
    %506 = vmatmul.mubr.bf16.gmra.mxu0 %v252
    %v507 = vpop.f32.mrf.mxu0
    %v508 = vadd.f32 %v298, %v507
    %v509 = vpop.f32.mrf.mxu0
    %v510 = vpop.f32.mrf.mxu0
    %v511 = vadd.f32 %v298, %v510
    %v512 = vpop.f32.mrf.mxu0
    %513 = vdwg.mxu0
    %v514 = vpack.c.bf16 %v465, %v465
    %v515 = vpack.c.bf16 %v467, %v467
    %v516 = vpack.c.bf16 %v508, %v508
    %v517 = vpack.c.bf16 %v469, %v469
    %v518 = vpack.c.bf16 %v471, %v471
    %v519 = vpack.c.bf16 %v511, %v511
    %vm520 = vcmask 261120
    %v522 = vsel %vm520, %v514, 0
    %v525 = vsel %vm520, %v515, 0
    %527 = vmatprep.subr.bf16.mxu0 0
    %528 = vmatpush1.bf16.xpose.msra.mxu0 0
    %529 = vmatprep.subr.bf16.mxu0 0
    %530 = vmatpush1.bf16.xpose.msra.mxu0 0
    %531 = vmatprep.subr.bf16.mxu0 0
    %532 = vmatpush1.bf16.xpose.msra.mxu0 0
    %533 = vmatprep.subr.bf16.mxu0 0
    %534 = vmatpush1.bf16.xpose.msra.mxu0 0
    %535 = vmatprep.subr.bf16.mxu0 0
    %536 = vmatpush1.bf16.xpose.msra.mxu0 0
    %537 = vmatprep.subr.bf16.mxu0 0
    %538 = vmatpush1.bf16.xpose.msra.mxu0 0
    %539 = vmatprep.subr.bf16.mxu0 0
    %540 = vmatpush1.bf16.xpose.msra.mxu0 0
    %541 = vmatprep.subr.bf16.mxu0 0
    %542 = vmatpush1.bf16.xpose.msra.mxu0 %v525
    %543 = vmatprep.subr.bf16.mxu0 0
    %544 = vmatpush2.bf16.xpose.msra.mxu0 0
    %545 = vmatprep.subr.bf16.mxu0 0
    %546 = vmatpush2.bf16.xpose.msra.mxu0 0
    %547 = vmatprep.subr.bf16.mxu0 0
    %548 = vmatpush2.bf16.xpose.msra.mxu0 0
    %549 = vmatprep.subr.bf16.mxu0 0
    %550 = vmatpush2.bf16.xpose.msra.mxu0 0
    %551 = vmatprep.subr.bf16.mxu0 0
    %552 = vmatpush2.bf16.xpose.msra.mxu0 0
    %553 = vmatprep.subr.bf16.mxu0 0
    %554 = vmatpush2.bf16.xpose.msra.mxu0 0
    %555 = vmatprep.subr.bf16.mxu0 0
    %556 = vmatpush2.bf16.xpose.msra.mxu0 0
    %557 = vmatprep.subr.bf16.mxu0 0
    %558 = vmatpush2.bf16.xpose.msra.mxu0 0
    %559 = vmatprep.mubr.bf16.mxu0 0
    %560 = vmatmul.mubr.bf16.gmra.mxu0 %v522
    %v561 = vpop.f32.mrf.mxu0
    %v562 = vadd.f32 0.0, %v561
    %v563 = vpop.f32.mrf.mxu0
    %v564 = vpop.f32.mrf.mxu0
    %v565 = vpop.f32.mrf.mxu0
    %566 = vdwg.mxu0
    %v568 = vsel %vm520, %v517, 0
    %v571 = vsel %vm520, %v518, 0
    %573 = vmatprep.subr.bf16.mxu0 0
    %574 = vmatpush1.bf16.xpose.msra.mxu0 0
    %575 = vmatprep.subr.bf16.mxu0 0
    %576 = vmatpush1.bf16.xpose.msra.mxu0 0
    %577 = vmatprep.subr.bf16.mxu0 0
    %578 = vmatpush1.bf16.xpose.msra.mxu0 0
    %579 = vmatprep.subr.bf16.mxu0 0
    %580 = vmatpush1.bf16.xpose.msra.mxu0 0
    %581 = vmatprep.subr.bf16.mxu0 0
    %582 = vmatpush1.bf16.xpose.msra.mxu0 0
    %583 = vmatprep.subr.bf16.mxu0 0
    %584 = vmatpush1.bf16.xpose.msra.mxu0 0
    %585 = vmatprep.subr.bf16.mxu0 0
    %586 = vmatpush1.bf16.xpose.msra.mxu0 0
    %587 = vmatprep.subr.bf16.mxu0 0
    %588 = vmatpush1.bf16.xpose.msra.mxu0 %v571
    %589 = vmatprep.subr.bf16.mxu0 0
    %590 = vmatpush2.bf16.xpose.msra.mxu0 0
    %591 = vmatprep.subr.bf16.mxu0 0
    %592 = vmatpush2.bf16.xpose.msra.mxu0 0
    %593 = vmatprep.subr.bf16.mxu0 0
    %594 = vmatpush2.bf16.xpose.msra.mxu0 0
    %595 = vmatprep.subr.bf16.mxu0 0
    %596 = vmatpush2.bf16.xpose.msra.mxu0 0
    %597 = vmatprep.subr.bf16.mxu0 0
    %598 = vmatpush2.bf16.xpose.msra.mxu0 0
    %599 = vmatprep.subr.bf16.mxu0 0
    %600 = vmatpush2.bf16.xpose.msra.mxu0 0
    %601 = vmatprep.subr.bf16.mxu0 0
    %602 = vmatpush2.bf16.xpose.msra.mxu0 0
    %603 = vmatprep.subr.bf16.mxu0 0
    %604 = vmatpush2.bf16.xpose.msra.mxu0 0
    %605 = vmatprep.mubr.bf16.mxu0 0
    %606 = vmatmul.mubr.bf16.gmra.mxu0 %v568
    %v607 = vpop.f32.mrf.mxu0
    %v608 = vadd.f32 0.0, %v607
    %v609 = vpop.f32.mrf.mxu0
    %v610 = vpop.f32.mrf.mxu0
    %v611 = vpop.f32.mrf.mxu0
    %612 = vdwg.mxu0
    %614 = vrot.lane.b32.xlu0 %v514, 96
    %v615 = vpop.permute.xlu0 %614
    %617 = vrot.lane.b32.xlu0 %v515, 96
    %v618 = vpop.permute.xlu0 %617
    %v620 = vsel %vm520, %v615, 0
    %v623 = vsel %vm520, %v618, 0
    %625 = vmatprep.subr.bf16.mxu0 0
    %626 = vmatpush1.bf16.xpose.msra.mxu0 0
    %627 = vmatprep.subr.bf16.mxu0 0
    %628 = vmatpush1.bf16.xpose.msra.mxu0 0
    %629 = vmatprep.subr.bf16.mxu0 0
    %630 = vmatpush1.bf16.xpose.msra.mxu0 0
    %631 = vmatprep.subr.bf16.mxu0 0
    %632 = vmatpush1.bf16.xpose.msra.mxu0 0
    %633 = vmatprep.subr.bf16.mxu0 0
    %634 = vmatpush1.bf16.xpose.msra.mxu0 0
    %635 = vmatprep.subr.bf16.mxu0 0
    %636 = vmatpush1.bf16.xpose.msra.mxu0 0
    %637 = vmatprep.subr.bf16.mxu0 0
    %638 = vmatpush1.bf16.xpose.msra.mxu0 0
    %639 = vmatprep.subr.bf16.mxu0 0
    %640 = vmatpush1.bf16.xpose.msra.mxu0 %v623
    %641 = vmatprep.subr.bf16.mxu0 0
    %642 = vmatpush2.bf16.xpose.msra.mxu0 0
    %643 = vmatprep.subr.bf16.mxu0 0
    %644 = vmatpush2.bf16.xpose.msra.mxu0 0
    %645 = vmatprep.subr.bf16.mxu0 0
    %646 = vmatpush2.bf16.xpose.msra.mxu0 0
    %647 = vmatprep.subr.bf16.mxu0 0
    %648 = vmatpush2.bf16.xpose.msra.mxu0 0
    %649 = vmatprep.subr.bf16.mxu0 0
    %650 = vmatpush2.bf16.xpose.msra.mxu0 0
    %651 = vmatprep.subr.bf16.mxu0 0
    %652 = vmatpush2.bf16.xpose.msra.mxu0 0
    %653 = vmatprep.subr.bf16.mxu0 0
    %654 = vmatpush2.bf16.xpose.msra.mxu0 0
    %655 = vmatprep.subr.bf16.mxu0 0
    %656 = vmatpush2.bf16.xpose.msra.mxu0 0
    %657 = vmatprep.mubr.bf16.mxu0 0
    %658 = vmatmul.mubr.bf16.gmra.mxu0 %v620
    %v659 = vpop.f32.mrf.mxu0
    %v660 = vadd.f32 0.0, %v659
    %v661 = vpop.f32.mrf.mxu0
    %v662 = vpop.f32.mrf.mxu0
    %v663 = vpop.f32.mrf.mxu0
    %664 = vdwg.mxu0
    %666 = vrot.lane.b32.xlu0 %v517, 96
    %v667 = vpop.permute.xlu0 %666
    %669 = vrot.lane.b32.xlu0 %v518, 96
    %v670 = vpop.permute.xlu0 %669
    %v672 = vsel %vm520, %v667, 0
    %v675 = vsel %vm520, %v670, 0
    %677 = vmatprep.subr.bf16.mxu0 0
    %678 = vmatpush1.bf16.xpose.msra.mxu0 0
    %679 = vmatprep.subr.bf16.mxu0 0
    %680 = vmatpush1.bf16.xpose.msra.mxu0 0
    %681 = vmatprep.subr.bf16.mxu0 0
    %682 = vmatpush1.bf16.xpose.msra.mxu0 0
    %683 = vmatprep.subr.bf16.mxu0 0
    %684 = vmatpush1.bf16.xpose.msra.mxu0 0
    %685 = vmatprep.subr.bf16.mxu0 0
    %686 = vmatpush1.bf16.xpose.msra.mxu0 0
    %687 = vmatprep.subr.bf16.mxu0 0
    %688 = vmatpush1.bf16.xpose.msra.mxu0 0
    %689 = vmatprep.subr.bf16.mxu0 0
    %690 = vmatpush1.bf16.xpose.msra.mxu0 0
    %691 = vmatprep.subr.bf16.mxu0 0
    %692 = vmatpush1.bf16.xpose.msra.mxu0 %v675
    %693 = vmatprep.subr.bf16.mxu0 0
    %694 = vmatpush2.bf16.xpose.msra.mxu0 0
    %695 = vmatprep.subr.bf16.mxu0 0
    %696 = vmatpush2.bf16.xpose.msra.mxu0 0
    %697 = vmatprep.subr.bf16.mxu0 0
    %698 = vmatpush2.bf16.xpose.msra.mxu0 0
    %699 = vmatprep.subr.bf16.mxu0 0
    %700 = vmatpush2.bf16.xpose.msra.mxu0 0
    %701 = vmatprep.subr.bf16.mxu0 0
    %702 = vmatpush2.bf16.xpose.msra.mxu0 0
    %703 = vmatprep.subr.bf16.mxu0 0
    %704 = vmatpush2.bf16.xpose.msra.mxu0 0
    %705 = vmatprep.subr.bf16.mxu0 0
    %706 = vmatpush2.bf16.xpose.msra.mxu0 0
    %707 = vmatprep.subr.bf16.mxu0 0
    %708 = vmatpush2.bf16.xpose.msra.mxu0 0
    %709 = vmatprep.mubr.bf16.mxu0 0
    %710 = vmatmul.mubr.bf16.gmra.mxu0 %v672
    %v711 = vpop.f32.mrf.mxu0
    %v712 = vadd.f32 0.0, %v711
    %v713 = vpop.f32.mrf.mxu0
    %v714 = vpop.f32.mrf.mxu0
    %v715 = vpop.f32.mrf.mxu0
    %716 = vdwg.mxu0
    %717 = vrot.lane.b32.xlu0 %v514, 64
    %v718 = vpop.permute.xlu0 %717
    %719 = vrot.lane.b32.xlu0 %v515, 64
    %v720 = vpop.permute.xlu0 %719
    %v722 = vsel %vm520, %v718, 0
    %v725 = vsel %vm520, %v720, 0
    %727 = vmatprep.subr.bf16.mxu0 0
    %728 = vmatpush1.bf16.xpose.msra.mxu0 0
    %729 = vmatprep.subr.bf16.mxu0 0
    %730 = vmatpush1.bf16.xpose.msra.mxu0 0
    %731 = vmatprep.subr.bf16.mxu0 0
    %732 = vmatpush1.bf16.xpose.msra.mxu0 0
    %733 = vmatprep.subr.bf16.mxu0 0
    %734 = vmatpush1.bf16.xpose.msra.mxu0 0
    %735 = vmatprep.subr.bf16.mxu0 0
    %736 = vmatpush1.bf16.xpose.msra.mxu0 0
    %737 = vmatprep.subr.bf16.mxu0 0
    %738 = vmatpush1.bf16.xpose.msra.mxu0 0
    %739 = vmatprep.subr.bf16.mxu0 0
    %740 = vmatpush1.bf16.xpose.msra.mxu0 0
    %741 = vmatprep.subr.bf16.mxu0 0
    %742 = vmatpush1.bf16.xpose.msra.mxu0 %v725
    %743 = vmatprep.subr.bf16.mxu0 0
    %744 = vmatpush2.bf16.xpose.msra.mxu0 0
    %745 = vmatprep.subr.bf16.mxu0 0
    %746 = vmatpush2.bf16.xpose.msra.mxu0 0
    %747 = vmatprep.subr.bf16.mxu0 0
    %748 = vmatpush2.bf16.xpose.msra.mxu0 0
    %749 = vmatprep.subr.bf16.mxu0 0
    %750 = vmatpush2.bf16.xpose.msra.mxu0 0
    %751 = vmatprep.subr.bf16.mxu0 0
    %752 = vmatpush2.bf16.xpose.msra.mxu0 0
    %753 = vmatprep.subr.bf16.mxu0 0
    %754 = vmatpush2.bf16.xpose.msra.mxu0 0
    %755 = vmatprep.subr.bf16.mxu0 0
    %756 = vmatpush2.bf16.xpose.msra.mxu0 0
    %757 = vmatprep.subr.bf16.mxu0 0
    %758 = vmatpush2.bf16.xpose.msra.mxu0 0
    %759 = vmatprep.mubr.bf16.mxu0 0
    %760 = vmatmul.mubr.bf16.gmra.mxu0 %v722
    %v761 = vpop.f32.mrf.mxu0
    %v762 = vadd.f32 0.0, %v761
    %v763 = vpop.f32.mrf.mxu0
    %v764 = vpop.f32.mrf.mxu0
    %v765 = vpop.f32.mrf.mxu0
    %766 = vdwg.mxu0
    %767 = vrot.lane.b32.xlu0 %v517, 64
    %v768 = vpop.permute.xlu0 %767
    %769 = vrot.lane.b32.xlu0 %v518, 64
    %v770 = vpop.permute.xlu0 %769
    %v772 = vsel %vm520, %v768, 0
    %v775 = vsel %vm520, %v770, 0
    %777 = vmatprep.subr.bf16.mxu0 0
    %778 = vmatpush1.bf16.xpose.msra.mxu0 0
    %779 = vmatprep.subr.bf16.mxu0 0
    %780 = vmatpush1.bf16.xpose.msra.mxu0 0
    %781 = vmatprep.subr.bf16.mxu0 0
    %782 = vmatpush1.bf16.xpose.msra.mxu0 0
    %783 = vmatprep.subr.bf16.mxu0 0
    %784 = vmatpush1.bf16.xpose.msra.mxu0 0
    %785 = vmatprep.subr.bf16.mxu0 0
    %786 = vmatpush1.bf16.xpose.msra.mxu0 0
    %787 = vmatprep.subr.bf16.mxu0 0
    %788 = vmatpush1.bf16.xpose.msra.mxu0 0
    %789 = vmatprep.subr.bf16.mxu0 0
    %790 = vmatpush1.bf16.xpose.msra.mxu0 0
    %791 = vmatprep.subr.bf16.mxu0 0
    %792 = vmatpush1.bf16.xpose.msra.mxu0 %v775
    %793 = vmatprep.subr.bf16.mxu0 0
    %794 = vmatpush2.bf16.xpose.msra.mxu0 0
    %795 = vmatprep.subr.bf16.mxu0 0
    %796 = vmatpush2.bf16.xpose.msra.mxu0 0
    %797 = vmatprep.subr.bf16.mxu0 0
    %798 = vmatpush2.bf16.xpose.msra.mxu0 0
    %799 = vmatprep.subr.bf16.mxu0 0
    %800 = vmatpush2.bf16.xpose.msra.mxu0 0
    %801 = vmatprep.subr.bf16.mxu0 0
    %802 = vmatpush2.bf16.xpose.msra.mxu0 0
    %803 = vmatprep.subr.bf16.mxu0 0
    %804 = vmatpush2.bf16.xpose.msra.mxu0 0
    %805 = vmatprep.subr.bf16.mxu0 0
    %806 = vmatpush2.bf16.xpose.msra.mxu0 0
    %807 = vmatprep.subr.bf16.mxu0 0
    %808 = vmatpush2.bf16.xpose.msra.mxu0 0
    %809 = vmatprep.mubr.bf16.mxu0 0
    %810 = vmatmul.mubr.bf16.gmra.mxu0 %v772
    %v811 = vpop.f32.mrf.mxu0
    %v812 = vadd.f32 0.0, %v811
    %v813 = vpop.f32.mrf.mxu0
    %v814 = vpop.f32.mrf.mxu0
    %v815 = vpop.f32.mrf.mxu0
    %816 = vdwg.mxu0
    %817 = vrot.lane.b32.xlu0 %v514, 32
    %v818 = vpop.permute.xlu0 %817
    %819 = vrot.lane.b32.xlu0 %v515, 32
    %v820 = vpop.permute.xlu0 %819
    %v822 = vsel %vm520, %v818, 0
    %v825 = vsel %vm520, %v820, 0
    %827 = vmatprep.subr.bf16.mxu0 0
    %828 = vmatpush1.bf16.xpose.msra.mxu0 0
    %829 = vmatprep.subr.bf16.mxu0 0
    %830 = vmatpush1.bf16.xpose.msra.mxu0 0
    %831 = vmatprep.subr.bf16.mxu0 0
    %832 = vmatpush1.bf16.xpose.msra.mxu0 0
    %833 = vmatprep.subr.bf16.mxu0 0
    %834 = vmatpush1.bf16.xpose.msra.mxu0 0
    %835 = vmatprep.subr.bf16.mxu0 0
    %836 = vmatpush1.bf16.xpose.msra.mxu0 0
    %837 = vmatprep.subr.bf16.mxu0 0
    %838 = vmatpush1.bf16.xpose.msra.mxu0 0
    %839 = vmatprep.subr.bf16.mxu0 0
    %840 = vmatpush1.bf16.xpose.msra.mxu0 0
    %841 = vmatprep.subr.bf16.mxu0 0
    %842 = vmatpush1.bf16.xpose.msra.mxu0 %v825
    %843 = vmatprep.subr.bf16.mxu0 0
    %844 = vmatpush2.bf16.xpose.msra.mxu0 0
    %845 = vmatprep.subr.bf16.mxu0 0
    %846 = vmatpush2.bf16.xpose.msra.mxu0 0
    %847 = vmatprep.subr.bf16.mxu0 0
    %848 = vmatpush2.bf16.xpose.msra.mxu0 0
    %849 = vmatprep.subr.bf16.mxu0 0
    %850 = vmatpush2.bf16.xpose.msra.mxu0 0
    %851 = vmatprep.subr.bf16.mxu0 0
    %852 = vmatpush2.bf16.xpose.msra.mxu0 0
    %853 = vmatprep.subr.bf16.mxu0 0
    %854 = vmatpush2.bf16.xpose.msra.mxu0 0
    %855 = vmatprep.subr.bf16.mxu0 0
    %856 = vmatpush2.bf16.xpose.msra.mxu0 0
    %857 = vmatprep.subr.bf16.mxu0 0
    %858 = vmatpush2.bf16.xpose.msra.mxu0 0
    %859 = vmatprep.mubr.bf16.mxu0 0
    %860 = vmatmul.mubr.bf16.gmra.mxu0 %v822
    %v861 = vpop.f32.mrf.mxu0
    %v862 = vadd.f32 0.0, %v861
    %v863 = vpop.f32.mrf.mxu0
    %v864 = vpop.f32.mrf.mxu0
    %v865 = vpop.f32.mrf.mxu0
    %866 = vdwg.mxu0
    %867 = vrot.lane.b32.xlu0 %v517, 32
    %v868 = vpop.permute.xlu0 %867
    %869 = vrot.lane.b32.xlu0 %v518, 32
    %v870 = vpop.permute.xlu0 %869
    %v872 = vsel %vm520, %v868, 0
    %v875 = vsel %vm520, %v870, 0
    %877 = vmatprep.subr.bf16.mxu0 0
    %878 = vmatpush1.bf16.xpose.msra.mxu0 0
    %879 = vmatprep.subr.bf16.mxu0 0
    %880 = vmatpush1.bf16.xpose.msra.mxu0 0
    %881 = vmatprep.subr.bf16.mxu0 0
    %882 = vmatpush1.bf16.xpose.msra.mxu0 0
    %883 = vmatprep.subr.bf16.mxu0 0
    %884 = vmatpush1.bf16.xpose.msra.mxu0 0
    %885 = vmatprep.subr.bf16.mxu0 0
    %886 = vmatpush1.bf16.xpose.msra.mxu0 0
    %887 = vmatprep.subr.bf16.mxu0 0
    %888 = vmatpush1.bf16.xpose.msra.mxu0 0
    %889 = vmatprep.subr.bf16.mxu0 0
    %890 = vmatpush1.bf16.xpose.msra.mxu0 0
    %891 = vmatprep.subr.bf16.mxu0 0
    %892 = vmatpush1.bf16.xpose.msra.mxu0 %v875
    %893 = vmatprep.subr.bf16.mxu0 0
    %894 = vmatpush2.bf16.xpose.msra.mxu0 0
    %895 = vmatprep.subr.bf16.mxu0 0
    %896 = vmatpush2.bf16.xpose.msra.mxu0 0
    %897 = vmatprep.subr.bf16.mxu0 0
    %898 = vmatpush2.bf16.xpose.msra.mxu0 0
    %899 = vmatprep.subr.bf16.mxu0 0
    %900 = vmatpush2.bf16.xpose.msra.mxu0 0
    %901 = vmatprep.subr.bf16.mxu0 0
    %902 = vmatpush2.bf16.xpose.msra.mxu0 0
    %903 = vmatprep.subr.bf16.mxu0 0
    %904 = vmatpush2.bf16.xpose.msra.mxu0 0
    %905 = vmatprep.subr.bf16.mxu0 0
    %906 = vmatpush2.bf16.xpose.msra.mxu0 0
    %907 = vmatprep.subr.bf16.mxu0 0
    %908 = vmatpush2.bf16.xpose.msra.mxu0 0
    %909 = vmatprep.mubr.bf16.mxu0 0
    %910 = vmatmul.mubr.bf16.gmra.mxu0 %v872
    %v911 = vpop.f32.mrf.mxu0
    %v912 = vadd.f32 0.0, %v911
    %v913 = vpop.f32.mrf.mxu0
    %v914 = vpop.f32.mrf.mxu0
    %v915 = vpop.f32.mrf.mxu0
    %916 = vdwg.mxu0
    %v917 = vadd.f32 %v562, %v210
    %v918 = vadd.f32 %v608, %v210
    %v919 = vadd.f32 %v660, %v210
    %v920 = vadd.f32 %v712, %v210
    %v921 = vadd.f32 %v762, %v210
    %v922 = vadd.f32 %v812, %v210
    %v923 = vadd.f32 %v862, %v210
    %v924 = vadd.f32 %v912, %v210
    %vm925 = vcmask 64512
    %v926 = vsel %vm925, %v917, -inf
    %927 = vmax.xlane.f32.xlu0 %v926
    %v928 = vpop.xlane.xlu0 %927
    %v929 = vsel %vm925, %v918, -inf
    %930 = vmax.xlane.f32.xlu0 %v929
    %v931 = vpop.xlane.xlu0 %930
    %v932 = vsel %vm925, %v919, -inf
    %933 = vmax.xlane.f32.xlu0 %v932
    %v934 = vpop.xlane.xlu0 %933
    %v935 = vsel %vm925, %v920, -inf
    %936 = vmax.xlane.f32.xlu0 %v935
    %v937 = vpop.xlane.xlu0 %936
    %v938 = vsel %vm925, %v921, -inf
    %939 = vmax.xlane.f32.xlu0 %v938
    %v940 = vpop.xlane.xlu0 %939
    %v941 = vsel %vm925, %v922, -inf
    %942 = vmax.xlane.f32.xlu0 %v941
    %v943 = vpop.xlane.xlu0 %942
    %v944 = vsel %vm925, %v923, -inf
    %945 = vmax.xlane.f32.xlu0 %v944
    %v946 = vpop.xlane.xlu0 %945
    %v947 = vsel %vm925, %v924, -inf
    %948 = vmax.xlane.f32.xlu0 %v947
    %v949 = vpop.xlane.xlu0 %948
    %v950 = vsub.f32 %v917, %v928
    %v951 = vsub.f32 %v918, %v931
    %v952 = vsub.f32 %v919, %v934
    %v953 = vsub.f32 %v920, %v937
    %v954 = vsub.f32 %v921, %v940
    %v955 = vsub.f32 %v922, %v943
    %v956 = vsub.f32 %v923, %v946
    %v957 = vsub.f32 %v924, %v949
    %v958 = vmul.f32 %v950, 1.442695
    %v959 = vpow.pop %v958
    %v960 = vmul.f32 %v951, 1.442695
    %v961 = vpow.pop %v960
    %v962 = vmul.f32 %v952, 1.442695
    %v963 = vpow.pop %v962
    %v964 = vmul.f32 %v953, 1.442695
    %v965 = vpow.pop %v964
    %v966 = vmul.f32 %v954, 1.442695
    %v967 = vpow.pop %v966
    %v968 = vmul.f32 %v955, 1.442695
    %v969 = vpow.pop %v968
    %v970 = vmul.f32 %v956, 1.442695
    %v971 = vpow.pop %v970
    %v972 = vmul.f32 %v957, 1.442695
    %v973 = vpow.pop %v972
    %v974 = vsel %vm925, %v959, 0.0
    %975 = vadd.xlane.f32.xlu0 %v974
    %v976 = vpop.xlane.xlu0 %975
    %v977 = vsel %vm925, %v961, 0.0
    %978 = vadd.xlane.f32.xlu0 %v977
    %v979 = vpop.xlane.xlu0 %978
    %v980 = vsel %vm925, %v963, 0.0
    %981 = vadd.xlane.f32.xlu0 %v980
    %v982 = vpop.xlane.xlu0 %981
    %v983 = vsel %vm925, %v965, 0.0
    %984 = vadd.xlane.f32.xlu0 %v983
    %v985 = vpop.xlane.xlu0 %984
    %v986 = vsel %vm925, %v967, 0.0
    %987 = vadd.xlane.f32.xlu0 %v986
    %v988 = vpop.xlane.xlu0 %987
    %v989 = vsel %vm925, %v969, 0.0
    %990 = vadd.xlane.f32.xlu0 %v989
    %v991 = vpop.xlane.xlu0 %990
    %v992 = vsel %vm925, %v971, 0.0
    %993 = vadd.xlane.f32.xlu0 %v992
    %v994 = vpop.xlane.xlu0 %993
    %v995 = vsel %vm925, %v973, 0.0
    %996 = vadd.xlane.f32.xlu0 %v995
    %v997 = vpop.xlane.xlu0 %996
    %v998 = vrcp.pop %v976
    %v999 = vrcp.pop %v979
    %v1000 = vrcp.pop %v982
    %v1001 = vrcp.pop %v985
    %v1002 = vrcp.pop %v988
    %v1003 = vrcp.pop %v991
    %v1004 = vrcp.pop %v994
    %v1005 = vrcp.pop %v997
    %v1006 = vmul.f32 %v959, %v998
    %v1007 = vmul.f32 %v961, %v999
    %v1008 = vmul.f32 %v963, %v1000
    %v1009 = vmul.f32 %v965, %v1001
    %v1010 = vmul.f32 %v967, %v1002
    %v1011 = vmul.f32 %v969, %v1003
    %v1012 = vmul.f32 %v971, %v1004
    %v1013 = vmul.f32 %v973, %v1005
    %v1014 = vpack.c.bf16 %v1006, %v1006
    %v1015 = vpack.c.bf16 %v1007, %v1007
    %v1016 = vpack.c.bf16 %v1008, %v1008
    %v1017 = vpack.c.bf16 %v1009, %v1009
    %v1018 = vpack.c.bf16 %v1010, %v1010
    %v1019 = vpack.c.bf16 %v1011, %v1011
    %v1020 = vpack.c.bf16 %v1012, %v1012
    %v1021 = vpack.c.bf16 %v1013, %v1013
    %v1023 = vsel %vm925, %v1014, 0
    %vm1025 = vcmask 1043456
    %v1027 = vsel %vm1025, %v516, 0
    %1029 = vmatprep.subr.bf16.mxu0 0
    %1030 = vmatpush1.bf16.msra.mxu0 0
    %1031 = vmatprep.subr.bf16.mxu0 0
    %1032 = vmatpush1.bf16.msra.mxu0 0
    %1033 = vmatprep.subr.bf16.mxu0 0
    %1034 = vmatpush1.bf16.msra.mxu0 0
    %1035 = vmatprep.subr.bf16.mxu0 0
    %1036 = vmatpush1.bf16.msra.mxu0 0
    %1037 = vmatprep.subr.bf16.mxu0 0
    %1038 = vmatpush1.bf16.msra.mxu0 0
    %1039 = vmatprep.subr.bf16.mxu0 0
    %1040 = vmatpush1.bf16.msra.mxu0 0
    %1041 = vmatprep.subr.bf16.mxu0 0
    %1042 = vmatpush1.bf16.msra.mxu0 0
    %1043 = vmatprep.subr.bf16.mxu0 0
    %1044 = vmatpush1.bf16.msra.mxu0 %v1027
    %1045 = vmatprep.subr.bf16.mxu0 0
    %1046 = vmatpush2.bf16.msra.mxu0 0
    %1047 = vmatprep.subr.bf16.mxu0 0
    %1048 = vmatpush2.bf16.msra.mxu0 0
    %1049 = vmatprep.subr.bf16.mxu0 0
    %1050 = vmatpush2.bf16.msra.mxu0 0
    %1051 = vmatprep.subr.bf16.mxu0 0
    %1052 = vmatpush2.bf16.msra.mxu0 0
    %1053 = vmatprep.subr.bf16.mxu0 0
    %1054 = vmatpush2.bf16.msra.mxu0 0
    %1055 = vmatprep.subr.bf16.mxu0 0
    %1056 = vmatpush2.bf16.msra.mxu0 0
    %1057 = vmatprep.subr.bf16.mxu0 0
    %1058 = vmatpush2.bf16.msra.mxu0 0
    %1059 = vmatprep.subr.bf16.mxu0 0
    %1060 = vmatpush2.bf16.msra.mxu0 0
    %1061 = vmatprep.mubr.bf16.mxu0 0
    %1062 = vmatmul.mubr.bf16.gmra.mxu0 %v1023
    %v1063 = vpop.f32.mrf.mxu0
    %v1064 = vadd.f32 0.0, %v1063
    %v1065 = vpop.f32.mrf.mxu0
    %v1066 = vpop.f32.mrf.mxu0
    %v1067 = vpop.f32.mrf.mxu0
    %1068 = vdwg.mxu0
    %v1070 = vsel %vm925, %v1015, 0
    %v1073 = vsel %vm1025, %v519, 0
    %1075 = vmatprep.subr.bf16.mxu0 0
    %1076 = vmatpush1.bf16.msra.mxu0 0
    %1077 = vmatprep.subr.bf16.mxu0 0
    %1078 = vmatpush1.bf16.msra.mxu0 0
    %1079 = vmatprep.subr.bf16.mxu0 0
    %1080 = vmatpush1.bf16.msra.mxu0 0
    %1081 = vmatprep.subr.bf16.mxu0 0
    %1082 = vmatpush1.bf16.msra.mxu0 0
    %1083 = vmatprep.subr.bf16.mxu0 0
    %1084 = vmatpush1.bf16.msra.mxu0 0
    %1085 = vmatprep.subr.bf16.mxu0 0
    %1086 = vmatpush1.bf16.msra.mxu0 0
    %1087 = vmatprep.subr.bf16.mxu0 0
    %1088 = vmatpush1.bf16.msra.mxu0 0
    %1089 = vmatprep.subr.bf16.mxu0 0
    %1090 = vmatpush1.bf16.msra.mxu0 %v1073
    %1091 = vmatprep.subr.bf16.mxu0 0
    %1092 = vmatpush2.bf16.msra.mxu0 0
    %1093 = vmatprep.subr.bf16.mxu0 0
    %1094 = vmatpush2.bf16.msra.mxu0 0
    %1095 = vmatprep.subr.bf16.mxu0 0
    %1096 = vmatpush2.bf16.msra.mxu0 0
    %1097 = vmatprep.subr.bf16.mxu0 0
    %1098 = vmatpush2.bf16.msra.mxu0 0
    %1099 = vmatprep.subr.bf16.mxu0 0
    %1100 = vmatpush2.bf16.msra.mxu0 0
    %1101 = vmatprep.subr.bf16.mxu0 0
    %1102 = vmatpush2.bf16.msra.mxu0 0
    %1103 = vmatprep.subr.bf16.mxu0 0
    %1104 = vmatpush2.bf16.msra.mxu0 0
    %1105 = vmatprep.subr.bf16.mxu0 0
    %1106 = vmatpush2.bf16.msra.mxu0 0
    %1107 = vmatprep.mubr.bf16.mxu0 0
    %1108 = vmatmul.mubr.bf16.gmra.mxu0 %v1070
    %v1109 = vpop.f32.mrf.mxu0
    %v1110 = vadd.f32 0.0, %v1109
    %v1111 = vpop.f32.mrf.mxu0
    %v1112 = vpop.f32.mrf.mxu0
    %v1113 = vpop.f32.mrf.mxu0
    %1114 = vdwg.mxu0
    %1116 = vrot.lane.b32.xlu0 %v516, 96
    %v1117 = vpop.permute.xlu0 %1116
    %v1119 = vsel %vm925, %v1016, 0
    %v1122 = vsel %vm1025, %v1117, 0
    %1124 = vmatprep.subr.bf16.mxu0 0
    %1125 = vmatpush1.bf16.msra.mxu0 0
    %1126 = vmatprep.subr.bf16.mxu0 0
    %1127 = vmatpush1.bf16.msra.mxu0 0
    %1128 = vmatprep.subr.bf16.mxu0 0
    %1129 = vmatpush1.bf16.msra.mxu0 0
    %1130 = vmatprep.subr.bf16.mxu0 0
    %1131 = vmatpush1.bf16.msra.mxu0 0
    %1132 = vmatprep.subr.bf16.mxu0 0
    %1133 = vmatpush1.bf16.msra.mxu0 0
    %1134 = vmatprep.subr.bf16.mxu0 0
    %1135 = vmatpush1.bf16.msra.mxu0 0
    %1136 = vmatprep.subr.bf16.mxu0 0
    %1137 = vmatpush1.bf16.msra.mxu0 0
    %1138 = vmatprep.subr.bf16.mxu0 0
    %1139 = vmatpush1.bf16.msra.mxu0 %v1122
    %1140 = vmatprep.subr.bf16.mxu0 0
    %1141 = vmatpush2.bf16.msra.mxu0 0
    %1142 = vmatprep.subr.bf16.mxu0 0
    %1143 = vmatpush2.bf16.msra.mxu0 0
    %1144 = vmatprep.subr.bf16.mxu0 0
    %1145 = vmatpush2.bf16.msra.mxu0 0
    %1146 = vmatprep.subr.bf16.mxu0 0
    %1147 = vmatpush2.bf16.msra.mxu0 0
    %1148 = vmatprep.subr.bf16.mxu0 0
    %1149 = vmatpush2.bf16.msra.mxu0 0
    %1150 = vmatprep.subr.bf16.mxu0 0
    %1151 = vmatpush2.bf16.msra.mxu0 0
    %1152 = vmatprep.subr.bf16.mxu0 0
    %1153 = vmatpush2.bf16.msra.mxu0 0
    %1154 = vmatprep.subr.bf16.mxu0 0
    %1155 = vmatpush2.bf16.msra.mxu0 0
    %1156 = vmatprep.mubr.bf16.mxu0 0
    %1157 = vmatmul.mubr.bf16.gmra.mxu0 %v1119
    %v1158 = vpop.f32.mrf.mxu0
    %v1159 = vadd.f32 0.0, %v1158
    %v1160 = vpop.f32.mrf.mxu0
    %v1161 = vpop.f32.mrf.mxu0
    %v1162 = vpop.f32.mrf.mxu0
    %1163 = vdwg.mxu0
    %1165 = vrot.lane.b32.xlu0 %v519, 96
    %v1166 = vpop.permute.xlu0 %1165
    %v1168 = vsel %vm925, %v1017, 0
    %v1171 = vsel %vm1025, %v1166, 0
    %1173 = vmatprep.subr.bf16.mxu0 0
    %1174 = vmatpush1.bf16.msra.mxu0 0
    %1175 = vmatprep.subr.bf16.mxu0 0
    %1176 = vmatpush1.bf16.msra.mxu0 0
    %1177 = vmatprep.subr.bf16.mxu0 0
    %1178 = vmatpush1.bf16.msra.mxu0 0
    %1179 = vmatprep.subr.bf16.mxu0 0
    %1180 = vmatpush1.bf16.msra.mxu0 0
    %1181 = vmatprep.subr.bf16.mxu0 0
    %1182 = vmatpush1.bf16.msra.mxu0 0
    %1183 = vmatprep.subr.bf16.mxu0 0
    %1184 = vmatpush1.bf16.msra.mxu0 0
    %1185 = vmatprep.subr.bf16.mxu0 0
    %1186 = vmatpush1.bf16.msra.mxu0 0
    %1187 = vmatprep.subr.bf16.mxu0 0
    %1188 = vmatpush1.bf16.msra.mxu0 %v1171
    %1189 = vmatprep.subr.bf16.mxu0 0
    %1190 = vmatpush2.bf16.msra.mxu0 0
    %1191 = vmatprep.subr.bf16.mxu0 0
    %1192 = vmatpush2.bf16.msra.mxu0 0
    %1193 = vmatprep.subr.bf16.mxu0 0
    %1194 = vmatpush2.bf16.msra.mxu0 0
    %1195 = vmatprep.subr.bf16.mxu0 0
    %1196 = vmatpush2.bf16.msra.mxu0 0
    %1197 = vmatprep.subr.bf16.mxu0 0
    %1198 = vmatpush2.bf16.msra.mxu0 0
    %1199 = vmatprep.subr.bf16.mxu0 0
    %1200 = vmatpush2.bf16.msra.mxu0 0
    %1201 = vmatprep.subr.bf16.mxu0 0
    %1202 = vmatpush2.bf16.msra.mxu0 0
    %1203 = vmatprep.subr.bf16.mxu0 0
    %1204 = vmatpush2.bf16.msra.mxu0 0
    %1205 = vmatprep.mubr.bf16.mxu0 0
    %1206 = vmatmul.mubr.bf16.gmra.mxu0 %v1168
    %v1207 = vpop.f32.mrf.mxu0
    %v1208 = vadd.f32 0.0, %v1207
    %v1209 = vpop.f32.mrf.mxu0
    %v1210 = vpop.f32.mrf.mxu0
    %v1211 = vpop.f32.mrf.mxu0
    %1212 = vdwg.mxu0
    %1213 = vrot.lane.b32.xlu0 %v516, 64
    %v1214 = vpop.permute.xlu0 %1213
    %v1216 = vsel %vm925, %v1018, 0
    %v1219 = vsel %vm1025, %v1214, 0
    %1221 = vmatprep.subr.bf16.mxu0 0
    %1222 = vmatpush1.bf16.msra.mxu0 0
    %1223 = vmatprep.subr.bf16.mxu0 0
    %1224 = vmatpush1.bf16.msra.mxu0 0
    %1225 = vmatprep.subr.bf16.mxu0 0
    %1226 = vmatpush1.bf16.msra.mxu0 0
    %1227 = vmatprep.subr.bf16.mxu0 0
    %1228 = vmatpush1.bf16.msra.mxu0 0
    %1229 = vmatprep.subr.bf16.mxu0 0
    %1230 = vmatpush1.bf16.msra.mxu0 0
    %1231 = vmatprep.subr.bf16.mxu0 0
    %1232 = vmatpush1.bf16.msra.mxu0 0
    %1233 = vmatprep.subr.bf16.mxu0 0
    %1234 = vmatpush1.bf16.msra.mxu0 0
    %1235 = vmatprep.subr.bf16.mxu0 0
    %1236 = vmatpush1.bf16.msra.mxu0 %v1219
    %1237 = vmatprep.subr.bf16.mxu0 0
    %1238 = vmatpush2.bf16.msra.mxu0 0
    %1239 = vmatprep.subr.bf16.mxu0 0
    %1240 = vmatpush2.bf16.msra.mxu0 0
    %1241 = vmatprep.subr.bf16.mxu0 0
    %1242 = vmatpush2.bf16.msra.mxu0 0
    %1243 = vmatprep.subr.bf16.mxu0 0
    %1244 = vmatpush2.bf16.msra.mxu0 0
    %1245 = vmatprep.subr.bf16.mxu0 0
    %1246 = vmatpush2.bf16.msra.mxu0 0
    %1247 = vmatprep.subr.bf16.mxu0 0
    %1248 = vmatpush2.bf16.msra.mxu0 0
    %1249 = vmatprep.subr.bf16.mxu0 0
    %1250 = vmatpush2.bf16.msra.mxu0 0
    %1251 = vmatprep.subr.bf16.mxu0 0
    %1252 = vmatpush2.bf16.msra.mxu0 0
    %1253 = vmatprep.mubr.bf16.mxu0 0
    %1254 = vmatmul.mubr.bf16.gmra.mxu0 %v1216
    %v1255 = vpop.f32.mrf.mxu0
    %v1256 = vadd.f32 0.0, %v1255
    %v1257 = vpop.f32.mrf.mxu0
    %v1258 = vpop.f32.mrf.mxu0
    %v1259 = vpop.f32.mrf.mxu0
    %1260 = vdwg.mxu0
    %1261 = vrot.lane.b32.xlu0 %v519, 64
    %v1262 = vpop.permute.xlu0 %1261
    %v1264 = vsel %vm925, %v1019, 0
    %v1267 = vsel %vm1025, %v1262, 0
    %1269 = vmatprep.subr.bf16.mxu0 0
    %1270 = vmatpush1.bf16.msra.mxu0 0
    %1271 = vmatprep.subr.bf16.mxu0 0
    %1272 = vmatpush1.bf16.msra.mxu0 0
    %1273 = vmatprep.subr.bf16.mxu0 0
    %1274 = vmatpush1.bf16.msra.mxu0 0
    %1275 = vmatprep.subr.bf16.mxu0 0
    %1276 = vmatpush1.bf16.msra.mxu0 0
    %1277 = vmatprep.subr.bf16.mxu0 0
    %1278 = vmatpush1.bf16.msra.mxu0 0
    %1279 = vmatprep.subr.bf16.mxu0 0
    %1280 = vmatpush1.bf16.msra.mxu0 0
    %1281 = vmatprep.subr.bf16.mxu0 0
    %1282 = vmatpush1.bf16.msra.mxu0 0
    %1283 = vmatprep.subr.bf16.mxu0 0
    %1284 = vmatpush1.bf16.msra.mxu0 %v1267
    %1285 = vmatprep.subr.bf16.mxu0 0
    %1286 = vmatpush2.bf16.msra.mxu0 0
    %1287 = vmatprep.subr.bf16.mxu0 0
    %1288 = vmatpush2.bf16.msra.mxu0 0
    %1289 = vmatprep.subr.bf16.mxu0 0
    %1290 = vmatpush2.bf16.msra.mxu0 0
    %1291 = vmatprep.subr.bf16.mxu0 0
    %1292 = vmatpush2.bf16.msra.mxu0 0
    %1293 = vmatprep.subr.bf16.mxu0 0
    %1294 = vmatpush2.bf16.msra.mxu0 0
    %1295 = vmatprep.subr.bf16.mxu0 0
    %1296 = vmatpush2.bf16.msra.mxu0 0
    %1297 = vmatprep.subr.bf16.mxu0 0
    %1298 = vmatpush2.bf16.msra.mxu0 0
    %1299 = vmatprep.subr.bf16.mxu0 0
    %1300 = vmatpush2.bf16.msra.mxu0 0
    %1301 = vmatprep.mubr.bf16.mxu0 0
    %1302 = vmatmul.mubr.bf16.gmra.mxu0 %v1264
    %v1303 = vpop.f32.mrf.mxu0
    %v1304 = vadd.f32 0.0, %v1303
    %v1305 = vpop.f32.mrf.mxu0
    %v1306 = vpop.f32.mrf.mxu0
    %v1307 = vpop.f32.mrf.mxu0
    %1308 = vdwg.mxu0
    %1309 = vrot.lane.b32.xlu0 %v516, 32
    %v1310 = vpop.permute.xlu0 %1309
    %v1312 = vsel %vm925, %v1020, 0
    %v1315 = vsel %vm1025, %v1310, 0
    %1317 = vmatprep.subr.bf16.mxu0 0
    %1318 = vmatpush1.bf16.msra.mxu0 0
    %1319 = vmatprep.subr.bf16.mxu0 0
    %1320 = vmatpush1.bf16.msra.mxu0 0
    %1321 = vmatprep.subr.bf16.mxu0 0
    %1322 = vmatpush1.bf16.msra.mxu0 0
    %1323 = vmatprep.subr.bf16.mxu0 0
    %1324 = vmatpush1.bf16.msra.mxu0 0
    %1325 = vmatprep.subr.bf16.mxu0 0
    %1326 = vmatpush1.bf16.msra.mxu0 0
    %1327 = vmatprep.subr.bf16.mxu0 0
    %1328 = vmatpush1.bf16.msra.mxu0 0
    %1329 = vmatprep.subr.bf16.mxu0 0
    %1330 = vmatpush1.bf16.msra.mxu0 0
    %1331 = vmatprep.subr.bf16.mxu0 0
    %1332 = vmatpush1.bf16.msra.mxu0 %v1315
    %1333 = vmatprep.subr.bf16.mxu0 0
    %1334 = vmatpush2.bf16.msra.mxu0 0
    %1335 = vmatprep.subr.bf16.mxu0 0
    %1336 = vmatpush2.bf16.msra.mxu0 0
    %1337 = vmatprep.subr.bf16.mxu0 0
    %1338 = vmatpush2.bf16.msra.mxu0 0
    %1339 = vmatprep.subr.bf16.mxu0 0
    %1340 = vmatpush2.bf16.msra.mxu0 0
    %1341 = vmatprep.subr.bf16.mxu0 0
    %1342 = vmatpush2.bf16.msra.mxu0 0
    %1343 = vmatprep.subr.bf16.mxu0 0
    %1344 = vmatpush2.bf16.msra.mxu0 0
    %1345 = vmatprep.subr.bf16.mxu0 0
    %1346 = vmatpush2.bf16.msra.mxu0 0
    %1347 = vmatprep.subr.bf16.mxu0 0
    %1348 = vmatpush2.bf16.msra.mxu0 0
    %1349 = vmatprep.mubr.bf16.mxu0 0
    %1350 = vmatmul.mubr.bf16.gmra.mxu0 %v1312
    %v1351 = vpop.f32.mrf.mxu0
    %v1352 = vadd.f32 0.0, %v1351
    %v1353 = vpop.f32.mrf.mxu0
    %v1354 = vpop.f32.mrf.mxu0
    %v1355 = vpop.f32.mrf.mxu0
    %1356 = vdwg.mxu0
    %1357 = vrot.lane.b32.xlu0 %v519, 32
    %v1358 = vpop.permute.xlu0 %1357
    %v1360 = vsel %vm925, %v1021, 0
    %v1363 = vsel %vm1025, %v1358, 0
    %1365 = vmatprep.subr.bf16.mxu0 0
    %1366 = vmatpush1.bf16.msra.mxu0 0
    %1367 = vmatprep.subr.bf16.mxu0 0
    %1368 = vmatpush1.bf16.msra.mxu0 0
    %1369 = vmatprep.subr.bf16.mxu0 0
    %1370 = vmatpush1.bf16.msra.mxu0 0
    %1371 = vmatprep.subr.bf16.mxu0 0
    %1372 = vmatpush1.bf16.msra.mxu0 0
    %1373 = vmatprep.subr.bf16.mxu0 0
    %1374 = vmatpush1.bf16.msra.mxu0 0
    %1375 = vmatprep.subr.bf16.mxu0 0
    %1376 = vmatpush1.bf16.msra.mxu0 0
    %1377 = vmatprep.subr.bf16.mxu0 0
    %1378 = vmatpush1.bf16.msra.mxu0 0
    %1379 = vmatprep.subr.bf16.mxu0 0
    %1380 = vmatpush1.bf16.msra.mxu0 %v1363
    %1381 = vmatprep.subr.bf16.mxu0 0
    %1382 = vmatpush2.bf16.msra.mxu0 0
    %1383 = vmatprep.subr.bf16.mxu0 0
    %1384 = vmatpush2.bf16.msra.mxu0 0
    %1385 = vmatprep.subr.bf16.mxu0 0
    %1386 = vmatpush2.bf16.msra.mxu0 0
    %1387 = vmatprep.subr.bf16.mxu0 0
    %1388 = vmatpush2.bf16.msra.mxu0 0
    %1389 = vmatprep.subr.bf16.mxu0 0
    %1390 = vmatpush2.bf16.msra.mxu0 0
    %1391 = vmatprep.subr.bf16.mxu0 0
    %1392 = vmatpush2.bf16.msra.mxu0 0
    %1393 = vmatprep.subr.bf16.mxu0 0
    %1394 = vmatpush2.bf16.msra.mxu0 0
    %1395 = vmatprep.subr.bf16.mxu0 0
    %1396 = vmatpush2.bf16.msra.mxu0 0
    %1397 = vmatprep.mubr.bf16.mxu0 0
    %1398 = vmatmul.mubr.bf16.gmra.mxu0 %v1360
    %v1399 = vpop.f32.mrf.mxu0
    %v1400 = vadd.f32 0.0, %v1399
    %v1401 = vpop.f32.mrf.mxu0
    %v1402 = vpop.f32.mrf.mxu0
    %v1403 = vpop.f32.mrf.mxu0
    %1404 = vdwg.mxu0
    %1407 = vrot.lane.b32.xlu0 %v1159, 32
    %v1408 = vpop.permute.xlu0 %1407
    %1409 = vrot.lane.b32.xlu0 %v1208, 32
    %v1410 = vpop.permute.xlu0 %1409
    %1415 = vrot.lane.b32.xlu0 %v1256, 64
    %v1416 = vpop.permute.xlu0 %1415
    %1417 = vrot.lane.b32.xlu0 %v1304, 64
    %v1418 = vpop.permute.xlu0 %1417
    %1423 = vrot.lane.b32.xlu0 %v1352, 96
    %v1424 = vpop.permute.xlu0 %1423
    %1425 = vrot.lane.b32.xlu0 %v1400, 96
    %v1426 = vpop.permute.xlu0 %1425
    %v1429 = vsel %vm520, %v1064, %v1408
    %v1430 = vsel %vm520, %v1110, %v1410
    %vm1431 = vcmask 523264
    %v1432 = vsel %vm1431, %v1429, %v1416
    %v1433 = vsel %vm1431, %v1430, %v1418
    %vm1434 = vcmask 785408
    %v1435 = vsel %vm1434, %v1432, %v1424
    %v1436 = vsel %vm1434, %v1433, %v1426
    %v1437 = vpack.c.bf16 %v1436, %v1435
    %v1438 = vld [vmem:[#allocation11] sm:$0xf]
    %v1439 = vld [vmem:[#allocation11 + $0x4] sm:$0xf]
    %v1440 = vld [vmem:[#allocation11 + $0x8] sm:$0xf]
    %v1441 = vld [vmem:[#allocation11 + $0xc] sm:$0xf]
    %v1442 = vld [vmem:[#allocation11 + $0x10] sm:$0xf]
    %v1443 = vld [vmem:[#allocation11 + $0x14] sm:$0xf]
    %v1444 = vld [vmem:[#allocation11 + $0x18] sm:$0xf]
    %v1445 = vld [vmem:[#allocation11 + $0x1c] sm:$0xf]
    %v1446 = vld [vmem:[#allocation11 + $0x20] sm:$0xf]
    %v1447 = vld [vmem:[#allocation11 + $0x24] sm:$0xf]
    %v1448 = vld [vmem:[#allocation11 + $0x28] sm:$0xf]
    %v1449 = vld [vmem:[#allocation11 + $0x2c] sm:$0xf]
    %v1450 = vld [vmem:[#allocation11 + $0x30] sm:$0xf]
    %v1451 = vld [vmem:[#allocation11 + $0x34] sm:$0xf]
    %v1452 = vld [vmem:[#allocation11 + $0x38] sm:$0xf]
    %v1453 = vld [vmem:[#allocation11 + $0x3c] sm:$0xf]
    %v1454 = vld [vmem:[#allocation13] sm:$0x1]
    %v1456 = vlaneseq
    %v1457 = vshrl.u32 %v1456, 7
    %v1458 = vsub.s32 0, %v1457
    %v1459 = vrot.slane %v1454, %v1458
    %v1477 = vunpack.c.l.b16 %v1438
    %v1478 = vunpack.c.l.b16 %v1439
    %v1479 = vunpack.c.l.b16 %v1440
    %v1480 = vunpack.c.l.b16 %v1441
    %v1481 = vunpack.c.l.b16 %v1442
    %v1482 = vunpack.c.l.b16 %v1443
    %v1483 = vunpack.c.l.b16 %v1444
    %v1484 = vunpack.c.l.b16 %v1445
    %v1485 = vunpack.c.l.b16 %v1446
    %v1486 = vunpack.c.l.b16 %v1447
    %v1487 = vunpack.c.l.b16 %v1448
    %v1488 = vunpack.c.l.b16 %v1449
    %v1489 = vunpack.c.l.b16 %v1450
    %v1490 = vunpack.c.l.b16 %v1451
    %v1491 = vunpack.c.l.b16 %v1452
    %v1492 = vunpack.c.l.b16 %v1453
    %v1493 = vpack.c.b16 %v1478, %v1477
    %v1494 = vpack.c.b16 %v1480, %v1479
    %v1495 = vpack.c.b16 %v1482, %v1481
    %v1496 = vpack.c.b16 %v1484, %v1483
    %v1497 = vpack.c.b16 %v1486, %v1485
    %v1498 = vpack.c.b16 %v1488, %v1487
    %v1499 = vpack.c.b16 %v1490, %v1489
    %v1500 = vpack.c.b16 %v1492, %v1491
    %1509 = vmatprep.subr.bf16.mxu0 0
    %1510 = vmatpush1.bf16.msra.mxu0 %v1500
    %1511 = vmatprep.subr.bf16.mxu0 0
    %1512 = vmatpush1.bf16.msra.mxu0 %v1499
    %1513 = vmatprep.subr.bf16.mxu0 0
    %1514 = vmatpush1.bf16.msra.mxu0 %v1498
    %1515 = vmatprep.subr.bf16.mxu0 0
    %1516 = vmatpush1.bf16.msra.mxu0 %v1497
    %1517 = vmatprep.subr.bf16.mxu0 0
    %1518 = vmatpush1.bf16.msra.mxu0 %v1496
    %1519 = vmatprep.subr.bf16.mxu0 0
    %1520 = vmatpush1.bf16.msra.mxu0 %v1495
    %1521 = vmatprep.subr.bf16.mxu0 0
    %1522 = vmatpush1.bf16.msra.mxu0 %v1494
    %1523 = vmatprep.subr.bf16.mxu0 0
    %1524 = vmatpush1.bf16.msra.mxu0 %v1493
    %1525 = vmatprep.subr.bf16.mxu0 0
    %1526 = vmatpush2.bf16.msra.mxu0 0
    %1527 = vmatprep.subr.bf16.mxu0 0
    %1528 = vmatpush2.bf16.msra.mxu0 0
    %1529 = vmatprep.subr.bf16.mxu0 0
    %1530 = vmatpush2.bf16.msra.mxu0 0
    %1531 = vmatprep.subr.bf16.mxu0 0
    %1532 = vmatpush2.bf16.msra.mxu0 0
    %1533 = vmatprep.subr.bf16.mxu0 0
    %1534 = vmatpush2.bf16.msra.mxu0 0
    %1535 = vmatprep.subr.bf16.mxu0 0
    %1536 = vmatpush2.bf16.msra.mxu0 0
    %1537 = vmatprep.subr.bf16.mxu0 0
    %1538 = vmatpush2.bf16.msra.mxu0 0
    %1539 = vmatprep.subr.bf16.mxu0 0
    %1540 = vmatpush2.bf16.msra.mxu0 0
    %1541 = vmatprep.mubr.bf16.mxu0 0
    %1542 = vmatmul.mubr.bf16.gmra.mxu0 %v1437
    %v1543 = vpop.f32.mrf.mxu0
    %v1544 = vadd.f32 %v1459, %v1543
    %v1545 = vpop.f32.mrf.mxu0
    %v1546 = vpop.f32.mrf.mxu0
    %v1547 = vadd.f32 %v1459, %v1546
    %v1548 = vpop.f32.mrf.mxu0
    %1549 = vdwg.mxu0
    %v1550 = vadd.f32 %v208, %v1544
    %v1551 = vadd.f32 %v209, %v1547
    %v1552 = vld [vmem:[#allocation14] sm:$0x1]
    %v1553 = vld [vmem:[%s10] sm:$0x1]
    %1554 = vadd.xlane.f32.xlu0 %v1550
    %v1555 = vpop.xlane.xlu0 %1554
    %1556 = vadd.xlane.f32.xlu0 %v1551
    %v1557 = vpop.xlane.xlu0 %1556
    %v1558 = vmul.f32 %v1555, %v217
    %v1559 = vmul.f32 %v1557, %v217
    %v1560 = vsub.f32 %v1550, %v1558
    %v1561 = vsub.f32 %v1551, %v1559
    %v1562 = vmul.f32 %v1560, %v1560
    %v1563 = vmul.f32 %v1561, %v1561
    %1564 = vadd.xlane.f32.xlu0 %v1562
    %v1565 = vpop.xlane.xlu0 %1564
    %1566 = vadd.xlane.f32.xlu0 %v1563
    %v1567 = vpop.xlane.xlu0 %1566
    %v1568 = vmul.f32 %v1565, %v217
    %v1569 = vmul.f32 %v1567, %v217
    %v1570 = vadd.f32 %v1568, 1e-05
    %v1571 = vadd.f32 %v1569, 1e-05
    %v1572 = vrsqrt.pop %v1570
    %v1573 = vrsqrt.pop %v1571
    %v1574 = vmul.f32 %v1560, %v1572
    %v1575 = vmul.f32 %v1561, %v1573
    %v1577 = vlaneseq
    %v1578 = vshrl.u32 %v1577, 7
    %v1579 = vsub.s32 0, %v1578
    %v1580 = vrot.slane %v1552, %v1579
    %v1582 = vmul.f32 %v1574, %v1580
    %v1583 = vmul.f32 %v1575, %v1580
    %v1585 = vlaneseq
    %v1586 = vshrl.u32 %v1585, 7
    %v1587 = vsub.s32 0, %v1586
    %v1588 = vrot.slane %v1553, %v1587
    %v1590 = vadd.f32 %v1582, %v1588
    %v1591 = vadd.f32 %v1583, %v1588
    %v1592 = vpack.c.bf16 %v1591, %v1590
    %v1593 = vld [vmem:[#allocation16] sm:$0xff]
    %v1594 = vld [vmem:[#allocation16 + $0x8] sm:$0xff]
    %v1595 = vld [vmem:[#allocation16 + $0x10] sm:$0xff]
    %v1596 = vld [vmem:[#allocation16 + $0x18] sm:$0xff]
    %v1597 = vld [vmem:[#allocation16 + $0x20] sm:$0xff]
    %v1598 = vld [vmem:[#allocation16 + $0x28] sm:$0xff]
    %v1599 = vld [vmem:[#allocation16 + $0x30] sm:$0xff]
    %v1600 = vld [vmem:[#allocation16 + $0x38] sm:$0xff]
    %v1601 = vld [vmem:[#allocation16 + $0x40] sm:$0xff]
    %v1602 = vld [vmem:[#allocation16 + $0x48] sm:$0xff]
    %v1603 = vld [vmem:[#allocation16 + $0x50] sm:$0xff]
    %v1604 = vld [vmem:[#allocation16 + $0x58] sm:$0xff]
    %v1605 = vld [vmem:[#allocation16 + $0x60] sm:$0xff]
    %v1606 = vld [vmem:[#allocation16 + $0x68] sm:$0xff]
    %v1607 = vld [vmem:[#allocation16 + $0x70] sm:$0xff]
    %v1608 = vld [vmem:[#allocation16 + $0x78] sm:$0xff]
    %v1609 = vld [vmem:[#allocation16 + $0x80] sm:$0xff]
    %v1610 = vld [vmem:[#allocation16 + $0x88] sm:$0xff]
    %v1611 = vld [vmem:[#allocation16 + $0x90] sm:$0xff]
    %v1612 = vld [vmem:[#allocation16 + $0x98] sm:$0xff]
    %v1613 = vld [vmem:[#allocation16 + $0xa0] sm:$0xff]
    %v1614 = vld [vmem:[#allocation16 + $0xa8] sm:$0xff]
    %v1615 = vld [vmem:[#allocation16 + $0xb0] sm:$0xff]
    %v1616 = vld [vmem:[#allocation16 + $0xb8] sm:$0xff]
    %v1617 = vld [vmem:[#allocation16 + $0xc0] sm:$0xff]
    %v1618 = vld [vmem:[#allocation16 + $0xc8] sm:$0xff]
    %v1619 = vld [vmem:[#allocation16 + $0xd0] sm:$0xff]
    %v1620 = vld [vmem:[#allocation16 + $0xd8] sm:$0xff]
    %v1621 = vld [vmem:[#allocation16 + $0xe0] sm:$0xff]
    %v1622 = vld [vmem:[#allocation16 + $0xe8] sm:$0xff]
    %v1623 = vld [vmem:[#allocation16 + $0xf0] sm:$0xff]
    %v1624 = vld [vmem:[#allocation16 + $0xf8] sm:$0xff]
    %v1625 = vld [vmem:[%s12] sm:$0xf]
    %v1627 = vlaneseq
    %v1628 = vshrl.u32 %v1627, 7
    %v1629 = vsub.s32 0, %v1628
    %v1630 = vrot.slane %v1625, %v1629
    %v1631 = vlaneseq
    %v1632 = vshrl.u32 %v1631, 7
    %v1633 = vsub.s32 1, %v1632
    %v1634 = vrot.slane %v1625, %v1633
    %v1635 = vlaneseq
    %v1636 = vshrl.u32 %v1635, 7
    %v1637 = vsub.s32 2, %v1636
    %v1638 = vrot.slane %v1625, %v1637
    %v1639 = vlaneseq
    %v1640 = vshrl.u32 %v1639, 7
    %v1641 = vsub.s32 3, %v1640
    %v1642 = vrot.slane %v1625, %v1641
    %v1679 = vunpack.c.l.b16 %v1593
    %v1680 = vunpack.c.h.b16 %v1593
    %v1681 = vunpack.c.l.b16 %v1594
    %v1682 = vunpack.c.h.b16 %v1594
    %v1683 = vunpack.c.l.b16 %v1595
    %v1684 = vunpack.c.h.b16 %v1595
    %v1685 = vunpack.c.l.b16 %v1596
    %v1686 = vunpack.c.h.b16 %v1596
    %v1687 = vunpack.c.l.b16 %v1597
    %v1688 = vunpack.c.h.b16 %v1597
    %v1689 = vunpack.c.l.b16 %v1598
    %v1690 = vunpack.c.h.b16 %v1598
    %v1691 = vunpack.c.l.b16 %v1599
    %v1692 = vunpack.c.h.b16 %v1599
    %v1693 = vunpack.c.l.b16 %v1600
    %v1694 = vunpack.c.h.b16 %v1600
    %v1695 = vunpack.c.l.b16 %v1601
    %v1696 = vunpack.c.h.b16 %v1601
    %v1697 = vunpack.c.l.b16 %v1602
    %v1698 = vunpack.c.h.b16 %v1602
    %v1699 = vunpack.c.l.b16 %v1603
    %v1700 = vunpack.c.h.b16 %v1603
    %v1701 = vunpack.c.l.b16 %v1604
    %v1702 = vunpack.c.h.b16 %v1604
    %v1703 = vunpack.c.l.b16 %v1605
    %v1704 = vunpack.c.h.b16 %v1605
    %v1705 = vunpack.c.l.b16 %v1606
    %v1706 = vunpack.c.h.b16 %v1606
    %v1707 = vunpack.c.l.b16 %v1607
    %v1708 = vunpack.c.h.b16 %v1607
    %v1709 = vunpack.c.l.b16 %v1608
    %v1710 = vunpack.c.h.b16 %v1608
    %v1711 = vunpack.c.l.b16 %v1609
    %v1712 = vunpack.c.h.b16 %v1609
    %v1713 = vunpack.c.l.b16 %v1610
    %v1714 = vunpack.c.h.b16 %v1610
    %v1715 = vunpack.c.l.b16 %v1611
    %v1716 = vunpack.c.h.b16 %v1611
    %v1717 = vunpack.c.l.b16 %v1612
    %v1718 = vunpack.c.h.b16 %v1612
    %v1719 = vunpack.c.l.b16 %v1613
    %v1720 = vunpack.c.h.b16 %v1613
    %v1721 = vunpack.c.l.b16 %v1614
    %v1722 = vunpack.c.h.b16 %v1614
    %v1723 = vunpack.c.l.b16 %v1615
    %v1724 = vunpack.c.h.b16 %v1615
    %v1725 = vunpack.c.l.b16 %v1616
    %v1726 = vunpack.c.h.b16 %v1616
    %v1727 = vunpack.c.l.b16 %v1617
    %v1728 = vunpack.c.h.b16 %v1617
    %v1729 = vunpack.c.l.b16 %v1618
    %v1730 = vunpack.c.h.b16 %v1618
    %v1731 = vunpack.c.l.b16 %v1619
    %v1732 = vunpack.c.h.b16 %v1619
    %v1733 = vunpack.c.l.b16 %v1620
    %v1734 = vunpack.c.h.b16 %v1620
    %v1735 = vunpack.c.l.b16 %v1621
    %v1736 = vunpack.c.h.b16 %v1621
    %v1737 = vunpack.c.l.b16 %v1622
    %v1738 = vunpack.c.h.b16 %v1622
    %v1739 = vunpack.c.l.b16 %v1623
    %v1740 = vunpack.c.h.b16 %v1623
    %v1741 = vunpack.c.l.b16 %v1624
    %v1742 = vunpack.c.h.b16 %v1624
    %v1743 = vpack.c.b16 %v1683, %v1679
    %v1744 = vpack.c.b16 %v1684, %v1680
    %v1745 = vpack.c.b16 %v1685, %v1681
    %v1746 = vpack.c.b16 %v1686, %v1682
    %v1747 = vpack.c.b16 %v1691, %v1687
    %v1748 = vpack.c.b16 %v1692, %v1688
    %v1749 = vpack.c.b16 %v1693, %v1689
    %v1750 = vpack.c.b16 %v1694, %v1690
    %v1751 = vpack.c.b16 %v1699, %v1695
    %v1752 = vpack.c.b16 %v1700, %v1696
    %v1753 = vpack.c.b16 %v1701, %v1697
    %v1754 = vpack.c.b16 %v1702, %v1698
    %v1755 = vpack.c.b16 %v1707, %v1703
    %v1756 = vpack.c.b16 %v1708, %v1704
    %v1757 = vpack.c.b16 %v1709, %v1705
    %v1758 = vpack.c.b16 %v1710, %v1706
    %v1759 = vpack.c.b16 %v1715, %v1711
    %v1760 = vpack.c.b16 %v1716, %v1712
    %v1761 = vpack.c.b16 %v1717, %v1713
    %v1762 = vpack.c.b16 %v1718, %v1714
    %v1763 = vpack.c.b16 %v1723, %v1719
    %v1764 = vpack.c.b16 %v1724, %v1720
    %v1765 = vpack.c.b16 %v1725, %v1721
    %v1766 = vpack.c.b16 %v1726, %v1722
    %v1767 = vpack.c.b16 %v1731, %v1727
    %v1768 = vpack.c.b16 %v1732, %v1728
    %v1769 = vpack.c.b16 %v1733, %v1729
    %v1770 = vpack.c.b16 %v1734, %v1730
    %v1771 = vpack.c.b16 %v1739, %v1735
    %v1772 = vpack.c.b16 %v1740, %v1736
    %v1773 = vpack.c.b16 %v1741, %v1737
    %v1774 = vpack.c.b16 %v1742, %v1738
    %1807 = vmatprep.subr.bf16.mxu0 %v1772
    %1808 = vmatpush1.bf16.msra.mxu0 %v1771
    %1809 = vmatprep.subr.bf16.mxu0 %v1768
    %1810 = vmatpush1.bf16.msra.mxu0 %v1767
    %1811 = vmatprep.subr.bf16.mxu0 %v1764
    %1812 = vmatpush1.bf16.msra.mxu0 %v1763
    %1813 = vmatprep.subr.bf16.mxu0 %v1760
    %1814 = vmatpush1.bf16.msra.mxu0 %v1759
    %1815 = vmatprep.subr.bf16.mxu0 %v1756
    %1816 = vmatpush1.bf16.msra.mxu0 %v1755
    %1817 = vmatprep.subr.bf16.mxu0 %v1752
    %1818 = vmatpush1.bf16.msra.mxu0 %v1751
    %1819 = vmatprep.subr.bf16.mxu0 %v1748
    %1820 = vmatpush1.bf16.msra.mxu0 %v1747
    %1821 = vmatprep.subr.bf16.mxu0 %v1744
    %1822 = vmatpush1.bf16.msra.mxu0 %v1743
    %1823 = vmatprep.subr.bf16.mxu0 0
    %1824 = vmatpush2.bf16.msra.mxu0 0
    %1825 = vmatprep.subr.bf16.mxu0 0
    %1826 = vmatpush2.bf16.msra.mxu0 0
    %1827 = vmatprep.subr.bf16.mxu0 0
    %1828 = vmatpush2.bf16.msra.mxu0 0
    %1829 = vmatprep.subr.bf16.mxu0 0
    %1830 = vmatpush2.bf16.msra.mxu0 0
    %1831 = vmatprep.subr.bf16.mxu0 0
    %1832 = vmatpush2.bf16.msra.mxu0 0
    %1833 = vmatprep.subr.bf16.mxu0 0
    %1834 = vmatpush2.bf16.msra.mxu0 0
    %1835 = vmatprep.subr.bf16.mxu0 0
    %1836 = vmatpush2.bf16.msra.mxu0 0
    %1837 = vmatprep.subr.bf16.mxu0 0
    %1838 = vmatpush2.bf16.msra.mxu0 0
    %1839 = vmatprep.mubr.bf16.mxu0 0
    %1840 = vmatmul.mubr.bf16.gmra.mxu0 %v1592
    %v1841 = vpop.f32.mrf.mxu0
    %v1842 = vadd.f32 %v1630, %v1841
    %v1843 = vpop.f32.mrf.mxu0
    %v1844 = vadd.f32 %v1634, %v1843
    %v1845 = vpop.f32.mrf.mxu0
    %v1846 = vadd.f32 %v1630, %v1845
    %v1847 = vpop.f32.mrf.mxu0
    %v1848 = vadd.f32 %v1634, %v1847
    %1849 = vdwg.mxu0
    %1850 = vmatprep.subr.bf16.mxu0 %v1774
    %1851 = vmatpush1.bf16.msra.mxu0 %v1773
    %1852 = vmatprep.subr.bf16.mxu0 %v1770
    %1853 = vmatpush1.bf16.msra.mxu0 %v1769
    %1854 = vmatprep.subr.bf16.mxu0 %v1766
    %1855 = vmatpush1.bf16.msra.mxu0 %v1765
    %1856 = vmatprep.subr.bf16.mxu0 %v1762
    %1857 = vmatpush1.bf16.msra.mxu0 %v1761
    %1858 = vmatprep.subr.bf16.mxu0 %v1758
    %1859 = vmatpush1.bf16.msra.mxu0 %v1757
    %1860 = vmatprep.subr.bf16.mxu0 %v1754
    %1861 = vmatpush1.bf16.msra.mxu0 %v1753
    %1862 = vmatprep.subr.bf16.mxu0 %v1750
    %1863 = vmatpush1.bf16.msra.mxu0 %v1749
    %1864 = vmatprep.subr.bf16.mxu0 %v1746
    %1865 = vmatpush1.bf16.msra.mxu0 %v1745
    %1866 = vmatprep.subr.bf16.mxu0 0
    %1867 = vmatpush2.bf16.msra.mxu0 0
    %1868 = vmatprep.subr.bf16.mxu0 0
    %1869 = vmatpush2.bf16.msra.mxu0 0
    %1870 = vmatprep.subr.bf16.mxu0 0
    %1871 = vmatpush2.bf16.msra.mxu0 0
    %1872 = vmatprep.subr.bf16.mxu0 0
    %1873 = vmatpush2.bf16.msra.mxu0 0
    %1874 = vmatprep.subr.bf16.mxu0 0
    %1875 = vmatpush2.bf16.msra.mxu0 0
    %1876 = vmatprep.subr.bf16.mxu0 0
    %1877 = vmatpush2.bf16.msra.mxu0 0
    %1878 = vmatprep.subr.bf16.mxu0 0
    %1879 = vmatpush2.bf16.msra.mxu0 0
    %1880 = vmatprep.subr.bf16.mxu0 0
    %1881 = vmatpush2.bf16.msra.mxu0 0
    %1882 = vmatprep.mubr.bf16.mxu0 0
    %1883 = vmatmul.mubr.bf16.gmra.mxu0 %v1592
    %v1884 = vpop.f32.mrf.mxu0
    %v1885 = vadd.f32 %v1638, %v1884
    %v1886 = vpop.f32.mrf.mxu0
    %v1887 = vadd.f32 %v1642, %v1886
    %v1888 = vpop.f32.mrf.mxu0
    %v1889 = vadd.f32 %v1638, %v1888
    %v1890 = vpop.f32.mrf.mxu0
    %v1891 = vadd.f32 %v1642, %v1890
    %1892 = vdwg.mxu0
    %v1893 = vmul.f32 %v1842, 1.702
    %v1894 = vmul.f32 %v1844, 1.702
    %v1895 = vmul.f32 %v1885, 1.702
    %v1896 = vmul.f32 %v1887, 1.702
    %v1897 = vmul.f32 %v1846, 1.702
    %v1898 = vmul.f32 %v1848, 1.702
    %v1899 = vmul.f32 %v1889, 1.702
    %v1900 = vmul.f32 %v1891, 1.702
    %v1901 = vxor.u32 %v1893, 2147483648
    %v1902 = vxor.u32 %v1894, 2147483648
    %v1903 = vxor.u32 %v1895, 2147483648
    %v1904 = vxor.u32 %v1896, 2147483648
    %v1905 = vxor.u32 %v1897, 2147483648
    %v1906 = vxor.u32 %v1898, 2147483648
    %v1907 = vxor.u32 %v1899, 2147483648
    %v1908 = vxor.u32 %v1900, 2147483648
    %v1909 = vmul.f32 %v1901, 1.442695
    %v1910 = vpow.pop %v1909
    %v1911 = vmul.f32 %v1902, 1.442695
    %v1912 = vpow.pop %v1911
    %v1913 = vmul.f32 %v1903, 1.442695
    %v1914 = vpow.pop %v1913
    %v1915 = vmul.f32 %v1904, 1.442695
    %v1916 = vpow.pop %v1915
    %v1917 = vmul.f32 %v1905, 1.442695
    %v1918 = vpow.pop %v1917
    %v1919 = vmul.f32 %v1906, 1.442695
    %v1920 = vpow.pop %v1919
    %v1921 = vmul.f32 %v1907, 1.442695
    %v1922 = vpow.pop %v1921
    %v1923 = vmul.f32 %v1908, 1.442695
    %v1924 = vpow.pop %v1923
    %v1925 = vadd.f32 %v1910, 1.0
    %v1926 = vadd.f32 %v1912, 1.0
    %v1927 = vadd.f32 %v1914, 1.0
    %v1928 = vadd.f32 %v1916, 1.0
    %v1929 = vadd.f32 %v1918, 1.0
    %v1930 = vadd.f32 %v1920, 1.0
    %v1931 = vadd.f32 %v1922, 1.0
    %v1932 = vadd.f32 %v1924, 1.0
    %v1933 = vrcp.pop %v1925
    %v1934 = vmul.f32 1.0, %v1933
    %v1935 = vrcp.pop %v1926
    %v1936 = vmul.f32 1.0, %v1935
    %v1937 = vrcp.pop %v1927
    %v1938 = vmul.f32 1.0, %v1937
    %v1939 = vrcp.pop %v1928
    %v1940 = vmul.f32 1.0, %v1939
    %v1941 = vrcp.pop %v1929
    %v1942 = vmul.f32 1.0, %v1941
    %v1943 = vrcp.pop %v1930
    %v1944 = vmul.f32 1.0, %v1943
    %v1945 = vrcp.pop %v1931
    %v1946 = vmul.f32 1.0, %v1945
    %v1947 = vrcp.pop %v1932
    %v1948 = vmul.f32 1.0, %v1947
    %v1949 = vmul.f32 %v1842, %v1934
    %v1950 = vmul.f32 %v1844, %v1936
    %v1951 = vmul.f32 %v1885, %v1938
    %v1952 = vmul.f32 %v1887, %v1940
    %v1953 = vmul.f32 %v1846, %v1942
    %v1954 = vmul.f32 %v1848, %v1944
    %v1955 = vmul.f32 %v1889, %v1946
    %v1956 = vmul.f32 %v1891, %v1948
    %v1957 = vpack.c.bf16 %v1953, %v1949
    %v1958 = vpack.c.bf16 %v1954, %v1950
    %v1959 = vpack.c.bf16 %v1955, %v1951
    %v1960 = vpack.c.bf16 %v1956, %v1952
    %v1961 = vld [vmem:[#allocation17] sm:$0xf]
    %v1962 = vld [vmem:[#allocation17 + $0x4] sm:$0xf]
    %v1963 = vld [vmem:[#allocation17 + $0x8] sm:$0xf]
    %v1964 = vld [vmem:[#allocation17 + $0xc] sm:$0xf]
    %v1965 = vld [vmem:[#allocation17 + $0x10] sm:$0xf]
    %v1966 = vld [vmem:[#allocation17 + $0x14] sm:$0xf]
    %v1967 = vld [vmem:[#allocation17 + $0x18] sm:$0xf]
    %v1968 = vld [vmem:[#allocation17 + $0x1c] sm:$0xf]
    %v1969 = vld [vmem:[#allocation17 + $0x20] sm:$0xf]
    %v1970 = vld [vmem:[#allocation17 + $0x24] sm:$0xf]
    %v1971 = vld [vmem:[#allocation17 + $0x28] sm:$0xf]
    %v1972 = vld [vmem:[#allocation17 + $0x2c] sm:$0xf]
    %v1973 = vld [vmem:[#allocation17 + $0x30] sm:$0xf]
    %v1974 = vld [vmem:[#allocation17 + $0x34] sm:$0xf]
    %v1975 = vld [vmem:[#allocation17 + $0x38] sm:$0xf]
    %v1976 = vld [vmem:[#allocation17 + $0x3c] sm:$0xf]
    %v1977 = vld [vmem:[#allocation17 + $0x40] sm:$0xf]
    %v1978 = vld [vmem:[#allocation17 + $0x44] sm:$0xf]
    %v1979 = vld [vmem:[#allocation17 + $0x48] sm:$0xf]
    %v1980 = vld [vmem:[#allocation17 + $0x4c] sm:$0xf]
    %v1981 = vld [vmem:[#allocation17 + $0x50] sm:$0xf]
    %v1982 = vld [vmem:[#allocation17 + $0x54] sm:$0xf]
    %v1983 = vld [vmem:[#allocation17 + $0x58] sm:$0xf]
    %v1984 = vld [vmem:[#allocation17 + $0x5c] sm:$0xf]
    %v1985 = vld [vmem:[#allocation17 + $0x60] sm:$0xf]
    %v1986 = vld [vmem:[#allocation17 + $0x64] sm:$0xf]
    %v1987 = vld [vmem:[#allocation17 + $0x68] sm:$0xf]
    %v1988 = vld [vmem:[#allocation17 + $0x6c] sm:$0xf]
    %v1989 = vld [vmem:[#allocation17 + $0x70] sm:$0xf]
    %v1990 = vld [vmem:[#allocation17 + $0x74] sm:$0xf]
    %v1991 = vld [vmem:[#allocation17 + $0x78] sm:$0xf]
    %v1992 = vld [vmem:[#allocation17 + $0x7c] sm:$0xf]
    %v1993 = vld [vmem:[#allocation17 + $0x80] sm:$0xf]
    %v1994 = vld [vmem:[#allocation17 + $0x84] sm:$0xf]
    %v1995 = vld [vmem:[#allocation17 + $0x88] sm:$0xf]
    %v1996 = vld [vmem:[#allocation17 + $0x8c] sm:$0xf]
    %v1997 = vld [vmem:[#allocation17 + $0x90] sm:$0xf]
    %v1998 = vld [vmem:[#allocation17 + $0x94] sm:$0xf]
    %v1999 = vld [vmem:[#allocation17 + $0x98] sm:$0xf]
    %v2000 = vld [vmem:[#allocation17 + $0x9c] sm:$0xf]
    %v2001 = vld [vmem:[#allocation17 + $0xa0] sm:$0xf]
    %v2002 = vld [vmem:[#allocation17 + $0xa4] sm:$0xf]
    %v2003 = vld [vmem:[#allocation17 + $0xa8] sm:$0xf]
    %v2004 = vld [vmem:[#allocation17 + $0xac] sm:$0xf]
    %v2005 = vld [vmem:[#allocation17 + $0xb0] sm:$0xf]
    %v2006 = vld [vmem:[#allocation17 + $0xb4] sm:$0xf]
    %v2007 = vld [vmem:[#allocation17 + $0xb8] sm:$0xf]
    %v2008 = vld [vmem:[#allocation17 + $0xbc] sm:$0xf]
    %v2009 = vld [vmem:[#allocation17 + $0xc0] sm:$0xf]
    %v2010 = vld [vmem:[#allocation17 + $0xc4] sm:$0xf]
    %v2011 = vld [vmem:[#allocation17 + $0xc8] sm:$0xf]
    %v2012 = vld [vmem:[#allocation17 + $0xcc] sm:$0xf]
    %v2013 = vld [vmem:[#allocation17 + $0xd0] sm:$0xf]
    %v2014 = vld [vmem:[#allocation17 + $0xd4] sm:$0xf]
    %v2015 = vld [vmem:[#allocation17 + $0xd8] sm:$0xf]
    %v2016 = vld [vmem:[#allocation17 + $0xdc] sm:$0xf]
    %v2017 = vld [vmem:[#allocation17 + $0xe0] sm:$0xf]
    %v2018 = vld [vmem:[#allocation17 + $0xe4] sm:$0xf]
    %v2019 = vld [vmem:[#allocation17 + $0xe8] sm:$0xf]
    %v2020 = vld [vmem:[#allocation17 + $0xec] sm:$0xf]
    %v2021 = vld [vmem:[#allocation17 + $0xf0] sm:$0xf]
    %v2022 = vld [vmem:[#allocation17 + $0xf4] sm:$0xf]
    %v2023 = vld [vmem:[#allocation17 + $0xf8] sm:$0xf]
    %v2024 = vld [vmem:[#allocation17 + $0xfc] sm:$0xf]
    %v2025 = vld [vmem:[%s14] sm:$0x1]
    %v2027 = vlaneseq
    %v2028 = vshrl.u32 %v2027, 7
    %v2029 = vsub.s32 0, %v2028
    %v2030 = vrot.slane %v2025, %v2029
    %v2096 = vunpack.c.l.b16 %v1961
    %v2097 = vunpack.c.l.b16 %v1962
    %v2098 = vunpack.c.l.b16 %v1963
    %v2099 = vunpack.c.l.b16 %v1964
    %v2100 = vunpack.c.l.b16 %v1965
    %v2101 = vunpack.c.l.b16 %v1966
    %v2102 = vunpack.c.l.b16 %v1967
    %v2103 = vunpack.c.l.b16 %v1968
    %v2104 = vunpack.c.l.b16 %v1969
    %v2105 = vunpack.c.l.b16 %v1970
    %v2106 = vunpack.c.l.b16 %v1971
    %v2107 = vunpack.c.l.b16 %v1972
    %v2108 = vunpack.c.l.b16 %v1973
    %v2109 = vunpack.c.l.b16 %v1974
    %v2110 = vunpack.c.l.b16 %v1975
    %v2111 = vunpack.c.l.b16 %v1976
    %v2112 = vunpack.c.l.b16 %v1977
    %v2113 = vunpack.c.l.b16 %v1978
    %v2114 = vunpack.c.l.b16 %v1979
    %v2115 = vunpack.c.l.b16 %v1980
    %v2116 = vunpack.c.l.b16 %v1981
    %v2117 = vunpack.c.l.b16 %v1982
    %v2118 = vunpack.c.l.b16 %v1983
    %v2119 = vunpack.c.l.b16 %v1984
    %v2120 = vunpack.c.l.b16 %v1985
    %v2121 = vunpack.c.l.b16 %v1986
    %v2122 = vunpack.c.l.b16 %v1987
    %v2123 = vunpack.c.l.b16 %v1988
    %v2124 = vunpack.c.l.b16 %v1989
    %v2125 = vunpack.c.l.b16 %v1990
    %v2126 = vunpack.c.l.b16 %v1991
    %v2127 = vunpack.c.l.b16 %v1992
    %v2128 = vunpack.c.l.b16 %v1993
    %v2129 = vunpack.c.l.b16 %v1994
    %v2130 = vunpack.c.l.b16 %v1995
    %v2131 = vunpack.c.l.b16 %v1996
    %v2132 = vunpack.c.l.b16 %v1997
    %v2133 = vunpack.c.l.b16 %v1998
    %v2134 = vunpack.c.l.b16 %v1999
    %v2135 = vunpack.c.l.b16 %v2000
    %v2136 = vunpack.c.l.b16 %v2001
    %v2137 = vunpack.c.l.b16 %v2002
    %v2138 = vunpack.c.l.b16 %v2003
    %v2139 = vunpack.c.l.b16 %v2004
    %v2140 = vunpack.c.l.b16 %v2005
    %v2141 = vunpack.c.l.b16 %v2006
    %v2142 = vunpack.c.l.b16 %v2007
    %v2143 = vunpack.c.l.b16 %v2008
    %v2144 = vunpack.c.l.b16 %v2009
    %v2145 = vunpack.c.l.b16 %v2010
    %v2146 = vunpack.c.l.b16 %v2011
    %v2147 = vunpack.c.l.b16 %v2012
    %v2148 = vunpack.c.l.b16 %v2013
    %v2149 = vunpack.c.l.b16 %v2014
    %v2150 = vunpack.c.l.b16 %v2015
    %v2151 = vunpack.c.l.b16 %v2016
    %v2152 = vunpack.c.l.b16 %v2017
    %v2153 = vunpack.c.l.b16 %v2018
    %v2154 = vunpack.c.l.b16 %v2019
    %v2155 = vunpack.c.l.b16 %v2020
    %v2156 = vunpack.c.l.b16 %v2021
    %v2157 = vunpack.c.l.b16 %v2022
    %v2158 = vunpack.c.l.b16 %v2023
    %v2159 = vunpack.c.l.b16 %v2024
    %v2160 = vpack.c.b16 %v2097, %v2096
    %v2161 = vpack.c.b16 %v2099, %v2098
    %v2162 = vpack.c.b16 %v2101, %v2100
    %v2163 = vpack.c.b16 %v2103, %v2102
    %v2164 = vpack.c.b16 %v2105, %v2104
    %v2165 = vpack.c.b16 %v2107, %v2106
    %v2166 = vpack.c.b16 %v2109, %v2108
    %v2167 = vpack.c.b16 %v2111, %v2110
    %v2168 = vpack.c.b16 %v2113, %v2112
    %v2169 = vpack.c.b16 %v2115, %v2114
    %v2170 = vpack.c.b16 %v2117, %v2116
    %v2171 = vpack.c.b16 %v2119, %v2118
    %v2172 = vpack.c.b16 %v2121, %v2120
    %v2173 = vpack.c.b16 %v2123, %v2122
    %v2174 = vpack.c.b16 %v2125, %v2124
    %v2175 = vpack.c.b16 %v2127, %v2126
    %v2176 = vpack.c.b16 %v2129, %v2128
    %v2177 = vpack.c.b16 %v2131, %v2130
    %v2178 = vpack.c.b16 %v2133, %v2132
    %v2179 = vpack.c.b16 %v2135, %v2134
    %v2180 = vpack.c.b16 %v2137, %v2136
    %v2181 = vpack.c.b16 %v2139, %v2138
    %v2182 = vpack.c.b16 %v2141, %v2140
    %v2183 = vpack.c.b16 %v2143, %v2142
    %v2184 = vpack.c.b16 %v2145, %v2144
    %v2185 = vpack.c.b16 %v2147, %v2146
    %v2186 = vpack.c.b16 %v2149, %v2148
    %v2187 = vpack.c.b16 %v2151, %v2150
    %v2188 = vpack.c.b16 %v2153, %v2152
    %v2189 = vpack.c.b16 %v2155, %v2154
    %v2190 = vpack.c.b16 %v2157, %v2156
    %v2191 = vpack.c.b16 %v2159, %v2158
    %2224 = vmatprep.subr.bf16.mxu0 0
    %2225 = vmatpush1.bf16.msra.mxu0 %v2167
    %2226 = vmatprep.subr.bf16.mxu0 0
    %2227 = vmatpush1.bf16.msra.mxu0 %v2166
    %2228 = vmatprep.subr.bf16.mxu0 0
    %2229 = vmatpush1.bf16.msra.mxu0 %v2165
    %2230 = vmatprep.subr.bf16.mxu0 0
    %2231 = vmatpush1.bf16.msra.mxu0 %v2164
    %2232 = vmatprep.subr.bf16.mxu0 0
    %2233 = vmatpush1.bf16.msra.mxu0 %v2163
    %2234 = vmatprep.subr.bf16.mxu0 0
    %2235 = vmatpush1.bf16.msra.mxu0 %v2162
    %2236 = vmatprep.subr.bf16.mxu0 0
    %2237 = vmatpush1.bf16.msra.mxu0 %v2161
    %2238 = vmatprep.subr.bf16.mxu0 0
    %2239 = vmatpush1.bf16.msra.mxu0 %v2160
    %2240 = vmatprep.subr.bf16.mxu0 0
    %2241 = vmatpush2.bf16.msra.mxu0 %v2175
    %2242 = vmatprep.subr.bf16.mxu0 0
    %2243 = vmatpush2.bf16.msra.mxu0 %v2174
    %2244 = vmatprep.subr.bf16.mxu0 0
    %2245 = vmatpush2.bf16.msra.mxu0 %v2173
    %2246 = vmatprep.subr.bf16.mxu0 0
    %2247 = vmatpush2.bf16.msra.mxu0 %v2172
    %2248 = vmatprep.subr.bf16.mxu0 0
    %2249 = vmatpush2.bf16.msra.mxu0 %v2171
    %2250 = vmatprep.subr.bf16.mxu0 0
    %2251 = vmatpush2.bf16.msra.mxu0 %v2170
    %2252 = vmatprep.subr.bf16.mxu0 0
    %2253 = vmatpush2.bf16.msra.mxu0 %v2169
    %2254 = vmatprep.subr.bf16.mxu0 0
    %2255 = vmatpush2.bf16.msra.mxu0 %v2168
    %2256 = vmatprep.mubr.bf16.mxu0 %v1958
    %2257 = vmatmul.mubr.bf16.gmra.mxu0 %v1957
    %v2258 = vpop.f32.mrf.mxu0
    %v2259 = vadd.f32 %v2030, %v2258
    %v2260 = vpop.f32.mrf.mxu0
    %v2261 = vpop.f32.mrf.mxu0
    %v2262 = vadd.f32 %v2030, %v2261
    %v2263 = vpop.f32.mrf.mxu0
    %2264 = vdwg.mxu0
    %2265 = vmatprep.subr.bf16.mxu0 0
    %2266 = vmatpush1.bf16.msra.mxu0 %v2183
    %2267 = vmatprep.subr.bf16.mxu0 0
    %2268 = vmatpush1.bf16.msra.mxu0 %v2182
    %2269 = vmatprep.subr.bf16.mxu0 0
    %2270 = vmatpush1.bf16.msra.mxu0 %v2181
    %2271 = vmatprep.subr.bf16.mxu0 0
    %2272 = vmatpush1.bf16.msra.mxu0 %v2180
    %2273 = vmatprep.subr.bf16.mxu0 0
    %2274 = vmatpush1.bf16.msra.mxu0 %v2179
    %2275 = vmatprep.subr.bf16.mxu0 0
    %2276 = vmatpush1.bf16.msra.mxu0 %v2178
    %2277 = vmatprep.subr.bf16.mxu0 0
    %2278 = vmatpush1.bf16.msra.mxu0 %v2177
    %2279 = vmatprep.subr.bf16.mxu0 0
    %2280 = vmatpush1.bf16.msra.mxu0 %v2176
    %2281 = vmatprep.subr.bf16.mxu0 0
    %2282 = vmatpush2.bf16.msra.mxu0 %v2191
    %2283 = vmatprep.subr.bf16.mxu0 0
    %2284 = vmatpush2.bf16.msra.mxu0 %v2190
    %2285 = vmatprep.subr.bf16.mxu0 0
    %2286 = vmatpush2.bf16.msra.mxu0 %v2189
    %2287 = vmatprep.subr.bf16.mxu0 0
    %2288 = vmatpush2.bf16.msra.mxu0 %v2188
    %2289 = vmatprep.subr.bf16.mxu0 0
    %2290 = vmatpush2.bf16.msra.mxu0 %v2187
    %2291 = vmatprep.subr.bf16.mxu0 0
    %2292 = vmatpush2.bf16.msra.mxu0 %v2186
    %2293 = vmatprep.subr.bf16.mxu0 0
    %2294 = vmatpush2.bf16.msra.mxu0 %v2185
    %2295 = vmatprep.subr.bf16.mxu0 0
    %2296 = vmatpush2.bf16.msra.mxu0 %v2184
    %2297 = vmatprep.mubr.bf16.mxu0 %v1960
    %2298 = vmatmul.mubr.bf16.gmra.mxu0 %v1959
    %v2299 = vpop.f32.mrf.mxu0
    %v2300 = vadd.f32 %v2259, %v2299
    %v2301 = vpop.f32.mrf.mxu0
    %v2302 = vpop.f32.mrf.mxu0
    %v2303 = vadd.f32 %v2262, %v2302
    %v2304 = vpop.f32.mrf.mxu0
    %2305 = vdwg.mxu0
    %v2306 = vadd.f32 %v1550, %v2300
    %v2307 = vadd.f32 %v1551, %v2303
    %s2308 = scalar_lea.vmem [#allocation7], 1
    %v2309 = vld [vmem:[%s2308] sm:$0x1]
    %s2310 = scalar_lea.vmem [#allocation8], 1
    %v2311 = vld [vmem:[%s2310] sm:$0x1]
    %2312 = vadd.xlane.f32.xlu0 %v2306
    %v2313 = vpop.xlane.xlu0 %2312
    %2314 = vadd.xlane.f32.xlu0 %v2307
    %v2315 = vpop.xlane.xlu0 %2314
    %v2316 = vmul.f32 %v2313, %v217
    %v2317 = vmul.f32 %v2315, %v217
    %v2318 = vsub.f32 %v2306, %v2316
    %v2319 = vsub.f32 %v2307, %v2317
    %v2320 = vmul.f32 %v2318, %v2318
    %v2321 = vmul.f32 %v2319, %v2319
    %2322 = vadd.xlane.f32.xlu0 %v2320
    %v2323 = vpop.xlane.xlu0 %2322
    %2324 = vadd.xlane.f32.xlu0 %v2321
    %v2325 = vpop.xlane.xlu0 %2324
    %v2326 = vmul.f32 %v2323, %v217
    %v2327 = vmul.f32 %v2325, %v217
    %v2328 = vadd.f32 %v2326, 1e-05
    %v2329 = vadd.f32 %v2327, 1e-05
    %v2330 = vrsqrt.pop %v2328
    %v2331 = vrsqrt.pop %v2329
    %v2332 = vmul.f32 %v2318, %v2330
    %v2333 = vmul.f32 %v2319, %v2331
    %v2335 = vlaneseq
    %v2336 = vshrl.u32 %v2335, 7
    %v2337 = vsub.s32 0, %v2336
    %v2338 = vrot.slane %v2309, %v2337
    %v2340 = vmul.f32 %v2332, %v2338
    %v2341 = vmul.f32 %v2333, %v2338
    %v2343 = vlaneseq
    %v2344 = vshrl.u32 %v2343, 7
    %v2345 = vsub.s32 0, %v2344
    %v2346 = vrot.slane %v2311, %v2345
    %v2348 = vadd.f32 %v2340, %v2346
    %v2349 = vadd.f32 %v2341, %v2346
    %v2350 = vpack.c.bf16 %v2349, %v2348
    %s2351 = scalar_lea.vmem [#allocation10], 192
    %v2352 = vld [vmem:[%s2351] sm:$0xff]
    %v2353 = vld [vmem:[%s2351 + $0x8] sm:$0xf]
    %v2354 = vld [vmem:[%s2351 + $0xc] sm:$0xff]
    %v2355 = vld [vmem:[%s2351 + $0x14] sm:$0xf]
    %v2356 = vld [vmem:[%s2351 + $0x18] sm:$0xff]
    %v2357 = vld [vmem:[%s2351 + $0x20] sm:$0xf]
    %v2358 = vld [vmem:[%s2351 + $0x24] sm:$0xff]
    %v2359 = vld [vmem:[%s2351 + $0x2c] sm:$0xf]
    %v2360 = vld [vmem:[%s2351 + $0x30] sm:$0xff]
    %v2361 = vld [vmem:[%s2351 + $0x38] sm:$0xf]
    %v2362 = vld [vmem:[%s2351 + $0x3c] sm:$0xff]
    %v2363 = vld [vmem:[%s2351 + $0x44] sm:$0xf]
    %v2364 = vld [vmem:[%s2351 + $0x48] sm:$0xff]
    %v2365 = vld [vmem:[%s2351 + $0x50] sm:$0xf]
    %v2366 = vld [vmem:[%s2351 + $0x54] sm:$0xff]
    %v2367 = vld [vmem:[%s2351 + $0x5c] sm:$0xf]
    %v2368 = vld [vmem:[%s2351 + $0x60] sm:$0xff]
    %v2369 = vld [vmem:[%s2351 + $0x68] sm:$0xf]
    %v2370 = vld [vmem:[%s2351 + $0x6c] sm:$0xff]
    %v2371 = vld [vmem:[%s2351 + $0x74] sm:$0xf]
    %v2372 = vld [vmem:[%s2351 + $0x78] sm:$0xff]
    %v2373 = vld [vmem:[%s2351 + $0x80] sm:$0xf]
    %v2374 = vld [vmem:[%s2351 + $0x84] sm:$0xff]
    %v2375 = vld [vmem:[%s2351 + $0x8c] sm:$0xf]
    %v2376 = vld [vmem:[%s2351 + $0x90] sm:$0xff]
    %v2377 = vld [vmem:[%s2351 + $0x98] sm:$0xf]
    %v2378 = vld [vmem:[%s2351 + $0x9c] sm:$0xff]
    %v2379 = vld [vmem:[%s2351 + $0xa4] sm:$0xf]
    %v2380 = vld [vmem:[%s2351 + $0xa8] sm:$0xff]
    %v2381 = vld [vmem:[%s2351 + $0xb0] sm:$0xf]
    %v2382 = vld [vmem:[%s2351 + $0xb4] sm:$0xff]
    %v2383 = vld [vmem:[%s2351 + $0xbc] sm:$0xf]
    %s2384 = scalar_lea.vmem %s6, 3
    %v2385 = vld [vmem:[%s2384] sm:$0x7]
    %v2387 = vlaneseq
    %v2388 = vshrl.u32 %v2387, 7
    %v2389 = vsub.s32 0, %v2388
    %v2390 = vrot.slane %v2385, %v2389
    %v2391 = vlaneseq
    %v2392 = vshrl.u32 %v2391, 7
    %v2393 = vsub.s32 1, %v2392
    %v2394 = vrot.slane %v2385, %v2393
    %v2395 = vlaneseq
    %v2396 = vshrl.u32 %v2395, 7
    %v2397 = vsub.s32 2, %v2396
    %v2398 = vrot.slane %v2385, %v2397
    %v2434 = vunpack.c.l.b16 %v2352
    %v2435 = vunpack.c.h.b16 %v2352
    %v2436 = vunpack.c.l.b16 %v2353
    %v2437 = vunpack.c.l.b16 %v2354
    %v2438 = vunpack.c.h.b16 %v2354
    %v2439 = vunpack.c.l.b16 %v2355
    %v2440 = vunpack.c.l.b16 %v2356
    %v2441 = vunpack.c.h.b16 %v2356
    %v2442 = vunpack.c.l.b16 %v2357
    %v2443 = vunpack.c.l.b16 %v2358
    %v2444 = vunpack.c.h.b16 %v2358
    %v2445 = vunpack.c.l.b16 %v2359
    %v2446 = vunpack.c.l.b16 %v2360
    %v2447 = vunpack.c.h.b16 %v2360
    %v2448 = vunpack.c.l.b16 %v2361
    %v2449 = vunpack.c.l.b16 %v2362
    %v2450 = vunpack.c.h.b16 %v2362
    %v2451 = vunpack.c.l.b16 %v2363
    %v2452 = vunpack.c.l.b16 %v2364
    %v2453 = vunpack.c.h.b16 %v2364
    %v2454 = vunpack.c.l.b16 %v2365
    %v2455 = vunpack.c.l.b16 %v2366
    %v2456 = vunpack.c.h.b16 %v2366
    %v2457 = vunpack.c.l.b16 %v2367
    %v2458 = vunpack.c.l.b16 %v2368
    %v2459 = vunpack.c.h.b16 %v2368
    %v2460 = vunpack.c.l.b16 %v2369
    %v2461 = vunpack.c.l.b16 %v2370
    %v2462 = vunpack.c.h.b16 %v2370
    %v2463 = vunpack.c.l.b16 %v2371
    %v2464 = vunpack.c.l.b16 %v2372
    %v2465 = vunpack.c.h.b16 %v2372
    %v2466 = vunpack.c.l.b16 %v2373
    %v2467 = vunpack.c.l.b16 %v2374
    %v2468 = vunpack.c.h.b16 %v2374
    %v2469 = vunpack.c.l.b16 %v2375
    %v2470 = vunpack.c.l.b16 %v2376
    %v2471 = vunpack.c.h.b16 %v2376
    %v2472 = vunpack.c.l.b16 %v2377
    %v2473 = vunpack.c.l.b16 %v2378
    %v2474 = vunpack.c.h.b16 %v2378
    %v2475 = vunpack.c.l.b16 %v2379
    %v2476 = vunpack.c.l.b16 %v2380
    %v2477 = vunpack.c.h.b16 %v2380
    %v2478 = vunpack.c.l.b16 %v2381
    %v2479 = vunpack.c.l.b16 %v2382
    %v2480 = vunpack.c.h.b16 %v2382
    %v2481 = vunpack.c.l.b16 %v2383
    %v2482 = vpack.c.b16 %v2437, %v2434
    %v2483 = vpack.c.b16 %v2438, %v2435
    %v2484 = vpack.c.b16 %v2439, %v2436
    %v2485 = vpack.c.b16 %v2443, %v2440
    %v2486 = vpack.c.b16 %v2444, %v2441
    %v2487 = vpack.c.b16 %v2445, %v2442
    %v2488 = vpack.c.b16 %v2449, %v2446
    %v2489 = vpack.c.b16 %v2450, %v2447
    %v2490 = vpack.c.b16 %v2451, %v2448
    %v2491 = vpack.c.b16 %v2455, %v2452
    %v2492 = vpack.c.b16 %v2456, %v2453
    %v2493 = vpack.c.b16 %v2457, %v2454
    %v2494 = vpack.c.b16 %v2461, %v2458
    %v2495 = vpack.c.b16 %v2462, %v2459
    %v2496 = vpack.c.b16 %v2463, %v2460
    %v2497 = vpack.c.b16 %v2467, %v2464
    %v2498 = vpack.c.b16 %v2468, %v2465
    %v2499 = vpack.c.b16 %v2469, %v2466
    %v2500 = vpack.c.b16 %v2473, %v2470
    %v2501 = vpack.c.b16 %v2474, %v2471
    %v2502 = vpack.c.b16 %v2475, %v2472
    %v2503 = vpack.c.b16 %v2479, %v2476
    %v2504 = vpack.c.b16 %v2480, %v2477
    %v2505 = vpack.c.b16 %v2481, %v2478
    %2530 = vmatprep.subr.bf16.mxu0 %v2504
    %2531 = vmatpush1.bf16.msra.mxu0 %v2503
    %2532 = vmatprep.subr.bf16.mxu0 %v2501
    %2533 = vmatpush1.bf16.msra.mxu0 %v2500
    %2534 = vmatprep.subr.bf16.mxu0 %v2498
    %2535 = vmatpush1.bf16.msra.mxu0 %v2497
    %2536 = vmatprep.subr.bf16.mxu0 %v2495
    %2537 = vmatpush1.bf16.msra.mxu0 %v2494
    %2538 = vmatprep.subr.bf16.mxu0 %v2492
    %2539 = vmatpush1.bf16.msra.mxu0 %v2491
    %2540 = vmatprep.subr.bf16.mxu0 %v2489
    %2541 = vmatpush1.bf16.msra.mxu0 %v2488
    %2542 = vmatprep.subr.bf16.mxu0 %v2486
    %2543 = vmatpush1.bf16.msra.mxu0 %v2485
    %2544 = vmatprep.subr.bf16.mxu0 %v2483
    %2545 = vmatpush1.bf16.msra.mxu0 %v2482
    %2546 = vmatprep.subr.bf16.mxu0 0
    %2547 = vmatpush2.bf16.msra.mxu0 0
    %2548 = vmatprep.subr.bf16.mxu0 0
    %2549 = vmatpush2.bf16.msra.mxu0 0
    %2550 = vmatprep.subr.bf16.mxu0 0
    %2551 = vmatpush2.bf16.msra.mxu0 0
    %2552 = vmatprep.subr.bf16.mxu0 0
    %2553 = vmatpush2.bf16.msra.mxu0 0
    %2554 = vmatprep.subr.bf16.mxu0 0
    %2555 = vmatpush2.bf16.msra.mxu0 0
    %2556 = vmatprep.subr.bf16.mxu0 0
    %2557 = vmatpush2.bf16.msra.mxu0 0
    %2558 = vmatprep.subr.bf16.mxu0 0
    %2559 = vmatpush2.bf16.msra.mxu0 0
    %2560 = vmatprep.subr.bf16.mxu0 0
    %2561 = vmatpush2.bf16.msra.mxu0 0
    %2562 = vmatprep.mubr.bf16.mxu0 0
    %2563 = vmatmul.mubr.bf16.gmra.mxu0 %v2350
    %v2564 = vpop.f32.mrf.mxu0
    %v2565 = vadd.f32 %v2390, %v2564
    %v2566 = vpop.f32.mrf.mxu0
    %v2567 = vadd.f32 %v2394, %v2566
    %v2568 = vpop.f32.mrf.mxu0
    %v2569 = vadd.f32 %v2390, %v2568
    %v2570 = vpop.f32.mrf.mxu0
    %v2571 = vadd.f32 %v2394, %v2570
    %2572 = vdwg.mxu0
    %2573 = vmatprep.subr.bf16.mxu0 0
    %2574 = vmatpush1.bf16.msra.mxu0 %v2505
    %2575 = vmatprep.subr.bf16.mxu0 0
    %2576 = vmatpush1.bf16.msra.mxu0 %v2502
    %2577 = vmatprep.subr.bf16.mxu0 0
    %2578 = vmatpush1.bf16.msra.mxu0 %v2499
    %2579 = vmatprep.subr.bf16.mxu0 0
    %2580 = vmatpush1.bf16.msra.mxu0 %v2496
    %2581 = vmatprep.subr.bf16.mxu0 0
    %2582 = vmatpush1.bf16.msra.mxu0 %v2493
    %2583 = vmatprep.subr.bf16.mxu0 0
    %2584 = vmatpush1.bf16.msra.mxu0 %v2490
    %2585 = vmatprep.subr.bf16.mxu0 0
    %2586 = vmatpush1.bf16.msra.mxu0 %v2487
    %2587 = vmatprep.subr.bf16.mxu0 0
    %2588 = vmatpush1.bf16.msra.mxu0 %v2484
    %2589 = vmatprep.subr.bf16.mxu0 0
    %2590 = vmatpush2.bf16.msra.mxu0 0
    %2591 = vmatprep.subr.bf16.mxu0 0
    %2592 = vmatpush2.bf16.msra.mxu0 0
    %2593 = vmatprep.subr.bf16.mxu0 0
    %2594 = vmatpush2.bf16.msra.mxu0 0
    %2595 = vmatprep.subr.bf16.mxu0 0
    %2596 = vmatpush2.bf16.msra.mxu0 0
    %2597 = vmatprep.subr.bf16.mxu0 0
    %2598 = vmatpush2.bf16.msra.mxu0 0
    %2599 = vmatprep.subr.bf16.mxu0 0
    %2600 = vmatpush2.bf16.msra.mxu0 0
    %2601 = vmatprep.subr.bf16.mxu0 0
    %2602 = vmatpush2.bf16.msra.mxu0 0
    %2603 = vmatprep.subr.bf16.mxu0 0
    %2604 = vmatpush2.bf16.msra.mxu0 0
    %2605 = vmatprep.mubr.bf16.mxu0 0
    %2606 = vmatmul.mubr.bf16.gmra.mxu0 %v2350
    %v2607 = vpop.f32.mrf.mxu0
    %v2608 = vadd.f32 %v2398, %v2607
    %v2609 = vpop.f32.mrf.mxu0
    %v2610 = vpop.f32.mrf.mxu0
    %v2611 = vadd.f32 %v2398, %v2610
    %v2612 = vpop.f32.mrf.mxu0
    %2613 = vdwg.mxu0
    %v2614 = vpack.c.bf16 %v2565, %v2565
    %v2615 = vpack.c.bf16 %v2567, %v2567
    %v2616 = vpack.c.bf16 %v2608, %v2608
    %v2617 = vpack.c.bf16 %v2569, %v2569
    %v2618 = vpack.c.bf16 %v2571, %v2571
    %v2619 = vpack.c.bf16 %v2611, %v2611
    %v2621 = vsel %vm520, %v2614, 0
    %v2624 = vsel %vm520, %v2615, 0
    %2626 = vmatprep.subr.bf16.mxu0 0
    %2627 = vmatpush1.bf16.xpose.msra.mxu0 0
    %2628 = vmatprep.subr.bf16.mxu0 0
    %2629 = vmatpush1.bf16.xpose.msra.mxu0 0
    %2630 = vmatprep.subr.bf16.mxu0 0
    %2631 = vmatpush1.bf16.xpose.msra.mxu0 0
    %2632 = vmatprep.subr.bf16.mxu0 0
    %2633 = vmatpush1.bf16.xpose.msra.mxu0 0
    %2634 = vmatprep.subr.bf16.mxu0 0
    %2635 = vmatpush1.bf16.xpose.msra.mxu0 0
    %2636 = vmatprep.subr.bf16.mxu0 0
    %2637 = vmatpush1.bf16.xpose.msra.mxu0 0
    %2638 = vmatprep.subr.bf16.mxu0 0
    %2639 = vmatpush1.bf16.xpose.msra.mxu0 0
    %2640 = vmatprep.subr.bf16.mxu0 0
    %2641 = vmatpush1.bf16.xpose.msra.mxu0 %v2624
    %2642 = vmatprep.subr.bf16.mxu0 0
    %2643 = vmatpush2.bf16.xpose.msra.mxu0 0
    %2644 = vmatprep.subr.bf16.mxu0 0
    %2645 = vmatpush2.bf16.xpose.msra.mxu0 0
    %2646 = vmatprep.subr.bf16.mxu0 0
    %2647 = vmatpush2.bf16.xpose.msra.mxu0 0
    %2648 = vmatprep.subr.bf16.mxu0 0
    %2649 = vmatpush2.bf16.xpose.msra.mxu0 0
    %2650 = vmatprep.subr.bf16.mxu0 0
    %2651 = vmatpush2.bf16.xpose.msra.mxu0 0
    %2652 = vmatprep.subr.bf16.mxu0 0
    %2653 = vmatpush2.bf16.xpose.msra.mxu0 0
    %2654 = vmatprep.subr.bf16.mxu0 0
    %2655 = vmatpush2.bf16.xpose.msra.mxu0 0
    %2656 = vmatprep.subr.bf16.mxu0 0
    %2657 = vmatpush2.bf16.xpose.msra.mxu0 0
    %2658 = vmatprep.mubr.bf16.mxu0 0
    %2659 = vmatmul.mubr.bf16.gmra.mxu0 %v2621
    %v2660 = vpop.f32.mrf.mxu0
    %v2661 = vadd.f32 0.0, %v2660
    %v2662 = vpop.f32.mrf.mxu0
    %v2663 = vpop.f32.mrf.mxu0
    %v2664 = vpop.f32.mrf.mxu0
    %2665 = vdwg.mxu0
    %v2667 = vsel %vm520, %v2617, 0
    %v2670 = vsel %vm520, %v2618, 0
    %2672 = vmatprep.subr.bf16.mxu0 0
    %2673 = vmatpush1.bf16.xpose.msra.mxu0 0
    %2674 = vmatprep.subr.bf16.mxu0 0
    %2675 = vmatpush1.bf16.xpose.msra.mxu0 0
    %2676 = vmatprep.subr.bf16.mxu0 0
    %2677 = vmatpush1.bf16.xpose.msra.mxu0 0
    %2678 = vmatprep.subr.bf16.mxu0 0
    %2679 = vmatpush1.bf16.xpose.msra.mxu0 0
    %2680 = vmatprep.subr.bf16.mxu0 0
    %2681 = vmatpush1.bf16.xpose.msra.mxu0 0
    %2682 = vmatprep.subr.bf16.mxu0 0
    %2683 = vmatpush1.bf16.xpose.msra.mxu0 0
    %2684 = vmatprep.subr.bf16.mxu0 0
    %2685 = vmatpush1.bf16.xpose.msra.mxu0 0
    %2686 = vmatprep.subr.bf16.mxu0 0
    %2687 = vmatpush1.bf16.xpose.msra.mxu0 %v2670
    %2688 = vmatprep.subr.bf16.mxu0 0
    %2689 = vmatpush2.bf16.xpose.msra.mxu0 0
    %2690 = vmatprep.subr.bf16.mxu0 0
    %2691 = vmatpush2.bf16.xpose.msra.mxu0 0
    %2692 = vmatprep.subr.bf16.mxu0 0
    %2693 = vmatpush2.bf16.xpose.msra.mxu0 0
    %2694 = vmatprep.subr.bf16.mxu0 0
    %2695 = vmatpush2.bf16.xpose.msra.mxu0 0
    %2696 = vmatprep.subr.bf16.mxu0 0
    %2697 = vmatpush2.bf16.xpose.msra.mxu0 0
    %2698 = vmatprep.subr.bf16.mxu0 0
    %2699 = vmatpush2.bf16.xpose.msra.mxu0 0
    %2700 = vmatprep.subr.bf16.mxu0 0
    %2701 = vmatpush2.bf16.xpose.msra.mxu0 0
    %2702 = vmatprep.subr.bf16.mxu0 0
    %2703 = vmatpush2.bf16.xpose.msra.mxu0 0
    %2704 = vmatprep.mubr.bf16.mxu0 0
    %2705 = vmatmul.mubr.bf16.gmra.mxu0 %v2667
    %v2706 = vpop.f32.mrf.mxu0
    %v2707 = vadd.f32 0.0, %v2706
    %v2708 = vpop.f32.mrf.mxu0
    %v2709 = vpop.f32.mrf.mxu0
    %v2710 = vpop.f32.mrf.mxu0
    %2711 = vdwg.mxu0
    %2713 = vrot.lane.b32.xlu0 %v2614, 96
    %v2714 = vpop.permute.xlu0 %2713
    %2716 = vrot.lane.b32.xlu0 %v2615, 96
    %v2717 = vpop.permute.xlu0 %2716
    %v2719 = vsel %vm520, %v2714, 0
    %v2722 = vsel %vm520, %v2717, 0
    %2724 = vmatprep.subr.bf16.mxu0 0
    %2725 = vmatpush1.bf16.xpose.msra.mxu0 0
    %2726 = vmatprep.subr.bf16.mxu0 0
    %2727 = vmatpush1.bf16.xpose.msra.mxu0 0
    %2728 = vmatprep.subr.bf16.mxu0 0
    %2729 = vmatpush1.bf16.xpose.msra.mxu0 0
    %2730 = vmatprep.subr.bf16.mxu0 0
    %2731 = vmatpush1.bf16.xpose.msra.mxu0 0
    %2732 = vmatprep.subr.bf16.mxu0 0
    %2733 = vmatpush1.bf16.xpose.msra.mxu0 0
    %2734 = vmatprep.subr.bf16.mxu0 0
    %2735 = vmatpush1.bf16.xpose.msra.mxu0 0
    %2736 = vmatprep.subr.bf16.mxu0 0
    %2737 = vmatpush1.bf16.xpose.msra.mxu0 0
    %2738 = vmatprep.subr.bf16.mxu0 0
    %2739 = vmatpush1.bf16.xpose.msra.mxu0 %v2722
    %2740 = vmatprep.subr.bf16.mxu0 0
    %2741 = vmatpush2.bf16.xpose.msra.mxu0 0
    %2742 = vmatprep.subr.bf16.mxu0 0
    %2743 = vmatpush2.bf16.xpose.msra.mxu0 0
    %2744 = vmatprep.subr.bf16.mxu0 0
    %2745 = vmatpush2.bf16.xpose.msra.mxu0 0
    %2746 = vmatprep.subr.bf16.mxu0 0
    %2747 = vmatpush2.bf16.xpose.msra.mxu0 0
    %2748 = vmatprep.subr.bf16.mxu0 0
    %2749 = vmatpush2.bf16.xpose.msra.mxu0 0
    %2750 = vmatprep.subr.bf16.mxu0 0
    %2751 = vmatpush2.bf16.xpose.msra.mxu0 0
    %2752 = vmatprep.subr.bf16.mxu0 0
    %2753 = vmatpush2.bf16.xpose.msra.mxu0 0
    %2754 = vmatprep.subr.bf16.mxu0 0
    %2755 = vmatpush2.bf16.xpose.msra.mxu0 0
    %2756 = vmatprep.mubr.bf16.mxu0 0
    %2757 = vmatmul.mubr.bf16.gmra.mxu0 %v2719
    %v2758 = vpop.f32.mrf.mxu0
    %v2759 = vadd.f32 0.0, %v2758
    %v2760 = vpop.f32.mrf.mxu0
    %v2761 = vpop.f32.mrf.mxu0
    %v2762 = vpop.f32.mrf.mxu0
    %2763 = vdwg.mxu0
    %2765 = vrot.lane.b32.xlu0 %v2617, 96
    %v2766 = vpop.permute.xlu0 %2765
    %2768 = vrot.lane.b32.xlu0 %v2618, 96
    %v2769 = vpop.permute.xlu0 %2768
    %v2771 = vsel %vm520, %v2766, 0
    %v2774 = vsel %vm520, %v2769, 0
    %2776 = vmatprep.subr.bf16.mxu0 0
    %2777 = vmatpush1.bf16.xpose.msra.mxu0 0
    %2778 = vmatprep.subr.bf16.mxu0 0
    %2779 = vmatpush1.bf16.xpose.msra.mxu0 0
    %2780 = vmatprep.subr.bf16.mxu0 0
    %2781 = vmatpush1.bf16.xpose.msra.mxu0 0
    %2782 = vmatprep.subr.bf16.mxu0 0
    %2783 = vmatpush1.bf16.xpose.msra.mxu0 0
    %2784 = vmatprep.subr.bf16.mxu0 0
    %2785 = vmatpush1.bf16.xpose.msra.mxu0 0
    %2786 = vmatprep.subr.bf16.mxu0 0
    %2787 = vmatpush1.bf16.xpose.msra.mxu0 0
    %2788 = vmatprep.subr.bf16.mxu0 0
    %2789 = vmatpush1.bf16.xpose.msra.mxu0 0
    %2790 = vmatprep.subr.bf16.mxu0 0
    %2791 = vmatpush1.bf16.xpose.msra.mxu0 %v2774
    %2792 = vmatprep.subr.bf16.mxu0 0
    %2793 = vmatpush2.bf16.xpose.msra.mxu0 0
    %2794 = vmatprep.subr.bf16.mxu0 0
    %2795 = vmatpush2.bf16.xpose.msra.mxu0 0
    %2796 = vmatprep.subr.bf16.mxu0 0
    %2797 = vmatpush2.bf16.xpose.msra.mxu0 0
    %2798 = vmatprep.subr.bf16.mxu0 0
    %2799 = vmatpush2.bf16.xpose.msra.mxu0 0
    %2800 = vmatprep.subr.bf16.mxu0 0
    %2801 = vmatpush2.bf16.xpose.msra.mxu0 0
    %2802 = vmatprep.subr.bf16.mxu0 0
    %2803 = vmatpush2.bf16.xpose.msra.mxu0 0
    %2804 = vmatprep.subr.bf16.mxu0 0
    %2805 = vmatpush2.bf16.xpose.msra.mxu0 0
    %2806 = vmatprep.subr.bf16.mxu0 0
    %2807 = vmatpush2.bf16.xpose.msra.mxu0 0
    %2808 = vmatprep.mubr.bf16.mxu0 0
    %2809 = vmatmul.mubr.bf16.gmra.mxu0 %v2771
    %v2810 = vpop.f32.mrf.mxu0
    %v2811 = vadd.f32 0.0, %v2810
    %v2812 = vpop.f32.mrf.mxu0
    %v2813 = vpop.f32.mrf.mxu0
    %v2814 = vpop.f32.mrf.mxu0
    %2815 = vdwg.mxu0
    %2816 = vrot.lane.b32.xlu0 %v2614, 64
    %v2817 = vpop.permute.xlu0 %2816
    %2818 = vrot.lane.b32.xlu0 %v2615, 64
    %v2819 = vpop.permute.xlu0 %2818
    %v2821 = vsel %vm520, %v2817, 0
    %v2824 = vsel %vm520, %v2819, 0
    %2826 = vmatprep.subr.bf16.mxu0 0
    %2827 = vmatpush1.bf16.xpose.msra.mxu0 0
    %2828 = vmatprep.subr.bf16.mxu0 0
    %2829 = vmatpush1.bf16.xpose.msra.mxu0 0
    %2830 = vmatprep.subr.bf16.mxu0 0
    %2831 = vmatpush1.bf16.xpose.msra.mxu0 0
    %2832 = vmatprep.subr.bf16.mxu0 0
    %2833 = vmatpush1.bf16.xpose.msra.mxu0 0
    %2834 = vmatprep.subr.bf16.mxu0 0
    %2835 = vmatpush1.bf16.xpose.msra.mxu0 0
    %2836 = vmatprep.subr.bf16.mxu0 0
    %2837 = vmatpush1.bf16.xpose.msra.mxu0 0
    %2838 = vmatprep.subr.bf16.mxu0 0
    %2839 = vmatpush1.bf16.xpose.msra.mxu0 0
    %2840 = vmatprep.subr.bf16.mxu0 0
    %2841 = vmatpush1.bf16.xpose.msra.mxu0 %v2824
    %2842 = vmatprep.subr.bf16.mxu0 0
    %2843 = vmatpush2.bf16.xpose.msra.mxu0 0
    %2844 = vmatprep.subr.bf16.mxu0 0
    %2845 = vmatpush2.bf16.xpose.msra.mxu0 0
    %2846 = vmatprep.subr.bf16.mxu0 0
    %2847 = vmatpush2.bf16.xpose.msra.mxu0 0
    %2848 = vmatprep.subr.bf16.mxu0 0
    %2849 = vmatpush2.bf16.xpose.msra.mxu0 0
    %2850 = vmatprep.subr.bf16.mxu0 0
    %2851 = vmatpush2.bf16.xpose.msra.mxu0 0
    %2852 = vmatprep.subr.bf16.mxu0 0
    %2853 = vmatpush2.bf16.xpose.msra.mxu0 0
    %2854 = vmatprep.subr.bf16.mxu0 0
    %2855 = vmatpush2.bf16.xpose.msra.mxu0 0
    %2856 = vmatprep.subr.bf16.mxu0 0
    %2857 = vmatpush2.bf16.xpose.msra.mxu0 0
    %2858 = vmatprep.mubr.bf16.mxu0 0
    %2859 = vmatmul.mubr.bf16.gmra.mxu0 %v2821
    %v2860 = vpop.f32.mrf.mxu0
    %v2861 = vadd.f32 0.0, %v2860
    %v2862 = vpop.f32.mrf.mxu0
    %v2863 = vpop.f32.mrf.mxu0
    %v2864 = vpop.f32.mrf.mxu0
    %2865 = vdwg.mxu0
    %2866 = vrot.lane.b32.xlu0 %v2617, 64
    %v2867 = vpop.permute.xlu0 %2866
    %2868 = vrot.lane.b32.xlu0 %v2618, 64
    %v2869 = vpop.permute.xlu0 %2868
    %v2871 = vsel %vm520, %v2867, 0
    %v2874 = vsel %vm520, %v2869, 0
    %2876 = vmatprep.subr.bf16.mxu0 0
    %2877 = vmatpush1.bf16.xpose.msra.mxu0 0
    %2878 = vmatprep.subr.bf16.mxu0 0
    %2879 = vmatpush1.bf16.xpose.msra.mxu0 0
    %2880 = vmatprep.subr.bf16.mxu0 0
    %2881 = vmatpush1.bf16.xpose.msra.mxu0 0
    %2882 = vmatprep.subr.bf16.mxu0 0
    %2883 = vmatpush1.bf16.xpose.msra.mxu0 0
    %2884 = vmatprep.subr.bf16.mxu0 0
    %2885 = vmatpush1.bf16.xpose.msra.mxu0 0
    %2886 = vmatprep.subr.bf16.mxu0 0
    %2887 = vmatpush1.bf16.xpose.msra.mxu0 0
    %2888 = vmatprep.subr.bf16.mxu0 0
    %2889 = vmatpush1.bf16.xpose.msra.mxu0 0
    %2890 = vmatprep.subr.bf16.mxu0 0
    %2891 = vmatpush1.bf16.xpose.msra.mxu0 %v2874
    %2892 = vmatprep.subr.bf16.mxu0 0
    %2893 = vmatpush2.bf16.xpose.msra.mxu0 0
    %2894 = vmatprep.subr.bf16.mxu0 0
    %2895 = vmatpush2.bf16.xpose.msra.mxu0 0
    %2896 = vmatprep.subr.bf16.mxu0 0
    %2897 = vmatpush2.bf16.xpose.msra.mxu0 0
    %2898 = vmatprep.subr.bf16.mxu0 0
    %2899 = vmatpush2.bf16.xpose.msra.mxu0 0
    %2900 = vmatprep.subr.bf16.mxu0 0
    %2901 = vmatpush2.bf16.xpose.msra.mxu0 0
    %2902 = vmatprep.subr.bf16.mxu0 0
    %2903 = vmatpush2.bf16.xpose.msra.mxu0 0
    %2904 = vmatprep.subr.bf16.mxu0 0
    %2905 = vmatpush2.bf16.xpose.msra.mxu0 0
    %2906 = vmatprep.subr.bf16.mxu0 0
    %2907 = vmatpush2.bf16.xpose.msra.mxu0 0
    %2908 = vmatprep.mubr.bf16.mxu0 0
    %2909 = vmatmul.mubr.bf16.gmra.mxu0 %v2871
    %v2910 = vpop.f32.mrf.mxu0
    %v2911 = vadd.f32 0.0, %v2910
    %v2912 = vpop.f32.mrf.mxu0
    %v2913 = vpop.f32.mrf.mxu0
    %v2914 = vpop.f32.mrf.mxu0
    %2915 = vdwg.mxu0
    %2916 = vrot.lane.b32.xlu0 %v2614, 32
    %v2917 = vpop.permute.xlu0 %2916
    %2918 = vrot.lane.b32.xlu0 %v2615, 32
    %v2919 = vpop.permute.xlu0 %2918
    %v2921 = vsel %vm520, %v2917, 0
    %v2924 = vsel %vm520, %v2919, 0
    %2926 = vmatprep.subr.bf16.mxu0 0
    %2927 = vmatpush1.bf16.xpose.msra.mxu0 0
    %2928 = vmatprep.subr.bf16.mxu0 0
    %2929 = vmatpush1.bf16.xpose.msra.mxu0 0
    %2930 = vmatprep.subr.bf16.mxu0 0
    %2931 = vmatpush1.bf16.xpose.msra.mxu0 0
    %2932 = vmatprep.subr.bf16.mxu0 0
    %2933 = vmatpush1.bf16.xpose.msra.mxu0 0
    %2934 = vmatprep.subr.bf16.mxu0 0
    %2935 = vmatpush1.bf16.xpose.msra.mxu0 0
    %2936 = vmatprep.subr.bf16.mxu0 0
    %2937 = vmatpush1.bf16.xpose.msra.mxu0 0
    %2938 = vmatprep.subr.bf16.mxu0 0
    %2939 = vmatpush1.bf16.xpose.msra.mxu0 0
    %2940 = vmatprep.subr.bf16.mxu0 0
    %2941 = vmatpush1.bf16.xpose.msra.mxu0 %v2924
    %2942 = vmatprep.subr.bf16.mxu0 0
    %2943 = vmatpush2.bf16.xpose.msra.mxu0 0
    %2944 = vmatprep.subr.bf16.mxu0 0
    %2945 = vmatpush2.bf16.xpose.msra.mxu0 0
    %2946 = vmatprep.subr.bf16.mxu0 0
    %2947 = vmatpush2.bf16.xpose.msra.mxu0 0
    %2948 = vmatprep.subr.bf16.mxu0 0
    %2949 = vmatpush2.bf16.xpose.msra.mxu0 0
    %2950 = vmatprep.subr.bf16.mxu0 0
    %2951 = vmatpush2.bf16.xpose.msra.mxu0 0
    %2952 = vmatprep.subr.bf16.mxu0 0
    %2953 = vmatpush2.bf16.xpose.msra.mxu0 0
    %2954 = vmatprep.subr.bf16.mxu0 0
    %2955 = vmatpush2.bf16.xpose.msra.mxu0 0
    %2956 = vmatprep.subr.bf16.mxu0 0
    %2957 = vmatpush2.bf16.xpose.msra.mxu0 0
    %2958 = vmatprep.mubr.bf16.mxu0 0
    %2959 = vmatmul.mubr.bf16.gmra.mxu0 %v2921
    %v2960 = vpop.f32.mrf.mxu0
    %v2961 = vadd.f32 0.0, %v2960
    %v2962 = vpop.f32.mrf.mxu0
    %v2963 = vpop.f32.mrf.mxu0
    %v2964 = vpop.f32.mrf.mxu0
    %2965 = vdwg.mxu0
    %2966 = vrot.lane.b32.xlu0 %v2617, 32
    %v2967 = vpop.permute.xlu0 %2966
    %2968 = vrot.lane.b32.xlu0 %v2618, 32
    %v2969 = vpop.permute.xlu0 %2968
    %v2971 = vsel %vm520, %v2967, 0
    %v2974 = vsel %vm520, %v2969, 0
    %2976 = vmatprep.subr.bf16.mxu0 0
    %2977 = vmatpush1.bf16.xpose.msra.mxu0 0
    %2978 = vmatprep.subr.bf16.mxu0 0
    %2979 = vmatpush1.bf16.xpose.msra.mxu0 0
    %2980 = vmatprep.subr.bf16.mxu0 0
    %2981 = vmatpush1.bf16.xpose.msra.mxu0 0
    %2982 = vmatprep.subr.bf16.mxu0 0
    %2983 = vmatpush1.bf16.xpose.msra.mxu0 0
    %2984 = vmatprep.subr.bf16.mxu0 0
    %2985 = vmatpush1.bf16.xpose.msra.mxu0 0
    %2986 = vmatprep.subr.bf16.mxu0 0
    %2987 = vmatpush1.bf16.xpose.msra.mxu0 0
    %2988 = vmatprep.subr.bf16.mxu0 0
    %2989 = vmatpush1.bf16.xpose.msra.mxu0 0
    %2990 = vmatprep.subr.bf16.mxu0 0
    %2991 = vmatpush1.bf16.xpose.msra.mxu0 %v2974
    %2992 = vmatprep.subr.bf16.mxu0 0
    %2993 = vmatpush2.bf16.xpose.msra.mxu0 0
    %2994 = vmatprep.subr.bf16.mxu0 0
    %2995 = vmatpush2.bf16.xpose.msra.mxu0 0
    %2996 = vmatprep.subr.bf16.mxu0 0
    %2997 = vmatpush2.bf16.xpose.msra.mxu0 0
    %2998 = vmatprep.subr.bf16.mxu0 0
    %2999 = vmatpush2.bf16.xpose.msra.mxu0 0
    %3000 = vmatprep.subr.bf16.mxu0 0
    %3001 = vmatpush2.bf16.xpose.msra.mxu0 0
    %3002 = vmatprep.subr.bf16.mxu0 0
    %3003 = vmatpush2.bf16.xpose.msra.mxu0 0
    %3004 = vmatprep.subr.bf16.mxu0 0
    %3005 = vmatpush2.bf16.xpose.msra.mxu0 0
    %3006 = vmatprep.subr.bf16.mxu0 0
    %3007 = vmatpush2.bf16.xpose.msra.mxu0 0
    %3008 = vmatprep.mubr.bf16.mxu0 0
    %3009 = vmatmul.mubr.bf16.gmra.mxu0 %v2971
    %v3010 = vpop.f32.mrf.mxu0
    %v3011 = vadd.f32 0.0, %v3010
    %v3012 = vpop.f32.mrf.mxu0
    %v3013 = vpop.f32.mrf.mxu0
    %v3014 = vpop.f32.mrf.mxu0
    %3015 = vdwg.mxu0
    %v3016 = vadd.f32 %v2661, %v210
    %v3017 = vadd.f32 %v2707, %v210
    %v3018 = vadd.f32 %v2759, %v210
    %v3019 = vadd.f32 %v2811, %v210
    %v3020 = vadd.f32 %v2861, %v210
    %v3021 = vadd.f32 %v2911, %v210
    %v3022 = vadd.f32 %v2961, %v210
    %v3023 = vadd.f32 %v3011, %v210
    %v3024 = vsel %vm925, %v3016, -inf
    %3025 = vmax.xlane.f32.xlu0 %v3024
    %v3026 = vpop.xlane.xlu0 %3025
    %v3027 = vsel %vm925, %v3017, -inf
    %3028 = vmax.xlane.f32.xlu0 %v3027
    %v3029 = vpop.xlane.xlu0 %3028
    %v3030 = vsel %vm925, %v3018, -inf
    %3031 = vmax.xlane.f32.xlu0 %v3030
    %v3032 = vpop.xlane.xlu0 %3031
    %v3033 = vsel %vm925, %v3019, -inf
    %3034 = vmax.xlane.f32.xlu0 %v3033
    %v3035 = vpop.xlane.xlu0 %3034
    %v3036 = vsel %vm925, %v3020, -inf
    %3037 = vmax.xlane.f32.xlu0 %v3036
    %v3038 = vpop.xlane.xlu0 %3037
    %v3039 = vsel %vm925, %v3021, -inf
    %3040 = vmax.xlane.f32.xlu0 %v3039
    %v3041 = vpop.xlane.xlu0 %3040
    %v3042 = vsel %vm925, %v3022, -inf
    %3043 = vmax.xlane.f32.xlu0 %v3042
    %v3044 = vpop.xlane.xlu0 %3043
    %v3045 = vsel %vm925, %v3023, -inf
    %3046 = vmax.xlane.f32.xlu0 %v3045
    %v3047 = vpop.xlane.xlu0 %3046
    %v3048 = vsub.f32 %v3016, %v3026
    %v3049 = vsub.f32 %v3017, %v3029
    %v3050 = vsub.f32 %v3018, %v3032
    %v3051 = vsub.f32 %v3019, %v3035
    %v3052 = vsub.f32 %v3020, %v3038
    %v3053 = vsub.f32 %v3021, %v3041
    %v3054 = vsub.f32 %v3022, %v3044
    %v3055 = vsub.f32 %v3023, %v3047
    %v3056 = vmul.f32 %v3048, 1.442695
    %v3057 = vpow.pop %v3056
    %v3058 = vmul.f32 %v3049, 1.442695
    %v3059 = vpow.pop %v3058
    %v3060 = vmul.f32 %v3050, 1.442695
    %v3061 = vpow.pop %v3060
    %v3062 = vmul.f32 %v3051, 1.442695
    %v3063 = vpow.pop %v3062
    %v3064 = vmul.f32 %v3052, 1.442695
    %v3065 = vpow.pop %v3064
    %v3066 = vmul.f32 %v3053, 1.442695
    %v3067 = vpow.pop %v3066
    %v3068 = vmul.f32 %v3054, 1.442695
    %v3069 = vpow.pop %v3068
    %v3070 = vmul.f32 %v3055, 1.442695
    %v3071 = vpow.pop %v3070
    %v3072 = vsel %vm925, %v3057, 0.0
    %3073 = vadd.xlane.f32.xlu0 %v3072
    %v3074 = vpop.xlane.xlu0 %3073
    %v3075 = vsel %vm925, %v3059, 0.0
    %3076 = vadd.xlane.f32.xlu0 %v3075
    %v3077 = vpop.xlane.xlu0 %3076
    %v3078 = vsel %vm925, %v3061, 0.0
    %3079 = vadd.xlane.f32.xlu0 %v3078
    %v3080 = vpop.xlane.xlu0 %3079
    %v3081 = vsel %vm925, %v3063, 0.0
    %3082 = vadd.xlane.f32.xlu0 %v3081
    %v3083 = vpop.xlane.xlu0 %3082
    %v3084 = vsel %vm925, %v3065, 0.0
    %3085 = vadd.xlane.f32.xlu0 %v3084
    %v3086 = vpop.xlane.xlu0 %3085
    %v3087 = vsel %vm925, %v3067, 0.0
    %3088 = vadd.xlane.f32.xlu0 %v3087
    %v3089 = vpop.xlane.xlu0 %3088
    %v3090 = vsel %vm925, %v3069, 0.0
    %3091 = vadd.xlane.f32.xlu0 %v3090
    %v3092 = vpop.xlane.xlu0 %3091
    %v3093 = vsel %vm925, %v3071, 0.0
    %3094 = vadd.xlane.f32.xlu0 %v3093
    %v3095 = vpop.xlane.xlu0 %3094
    %v3096 = vrcp.pop %v3074
    %v3097 = vrcp.pop %v3077
    %v3098 = vrcp.pop %v3080
    %v3099 = vrcp.pop %v3083
    %v3100 = vrcp.pop %v3086
    %v3101 = vrcp.pop %v3089
    %v3102 = vrcp.pop %v3092
    %v3103 = vrcp.pop %v3095
    %v3104 = vmul.f32 %v3057, %v3096
    %v3105 = vmul.f32 %v3059, %v3097
    %v3106 = vmul.f32 %v3061, %v3098
    %v3107 = vmul.f32 %v3063, %v3099
    %v3108 = vmul.f32 %v3065, %v3100
    %v3109 = vmul.f32 %v3067, %v3101
    %v3110 = vmul.f32 %v3069, %v3102
    %v3111 = vmul.f32 %v3071, %v3103
    %v3112 = vpack.c.bf16 %v3104, %v3104
    %v3113 = vpack.c.bf16 %v3105, %v3105
    %v3114 = vpack.c.bf16 %v3106, %v3106
    %v3115 = vpack.c.bf16 %v3107, %v3107
    %v3116 = vpack.c.bf16 %v3108, %v3108
    %v3117 = vpack.c.bf16 %v3109, %v3109
    %v3118 = vpack.c.bf16 %v3110, %v3110
    %v3119 = vpack.c.bf16 %v3111, %v3111
    %v3121 = vsel %vm925, %v3112, 0
    %v3124 = vsel %vm1025, %v2616, 0
    %3126 = vmatprep.subr.bf16.mxu0 0
    %3127 = vmatpush1.bf16.msra.mxu0 0
    %3128 = vmatprep.subr.bf16.mxu0 0
    %3129 = vmatpush1.bf16.msra.mxu0 0
    %3130 = vmatprep.subr.bf16.mxu0 0
    %3131 = vmatpush1.bf16.msra.mxu0 0
    %3132 = vmatprep.subr.bf16.mxu0 0
    %3133 = vmatpush1.bf16.msra.mxu0 0
    %3134 = vmatprep.subr.bf16.mxu0 0
    %3135 = vmatpush1.bf16.msra.mxu0 0
    %3136 = vmatprep.subr.bf16.mxu0 0
    %3137 = vmatpush1.bf16.msra.mxu0 0
    %3138 = vmatprep.subr.bf16.mxu0 0
    %3139 = vmatpush1.bf16.msra.mxu0 0
    %3140 = vmatprep.subr.bf16.mxu0 0
    %3141 = vmatpush1.bf16.msra.mxu0 %v3124
    %3142 = vmatprep.subr.bf16.mxu0 0
    %3143 = vmatpush2.bf16.msra.mxu0 0
    %3144 = vmatprep.subr.bf16.mxu0 0
    %3145 = vmatpush2.bf16.msra.mxu0 0
    %3146 = vmatprep.subr.bf16.mxu0 0
    %3147 = vmatpush2.bf16.msra.mxu0 0
    %3148 = vmatprep.subr.bf16.mxu0 0
    %3149 = vmatpush2.bf16.msra.mxu0 0
    %3150 = vmatprep.subr.bf16.mxu0 0
    %3151 = vmatpush2.bf16.msra.mxu0 0
    %3152 = vmatprep.subr.bf16.mxu0 0
    %3153 = vmatpush2.bf16.msra.mxu0 0
    %3154 = vmatprep.subr.bf16.mxu0 0
    %3155 = vmatpush2.bf16.msra.mxu0 0
    %3156 = vmatprep.subr.bf16.mxu0 0
    %3157 = vmatpush2.bf16.msra.mxu0 0
    %3158 = vmatprep.mubr.bf16.mxu0 0
    %3159 = vmatmul.mubr.bf16.gmra.mxu0 %v3121
    %v3160 = vpop.f32.mrf.mxu0
    %v3161 = vadd.f32 0.0, %v3160
    %v3162 = vpop.f32.mrf.mxu0
    %v3163 = vpop.f32.mrf.mxu0
    %v3164 = vpop.f32.mrf.mxu0
    %3165 = vdwg.mxu0
    %v3167 = vsel %vm925, %v3113, 0
    %v3170 = vsel %vm1025, %v2619, 0
    %3172 = vmatprep.subr.bf16.mxu0 0
    %3173 = vmatpush1.bf16.msra.mxu0 0
    %3174 = vmatprep.subr.bf16.mxu0 0
    %3175 = vmatpush1.bf16.msra.mxu0 0
    %3176 = vmatprep.subr.bf16.mxu0 0
    %3177 = vmatpush1.bf16.msra.mxu0 0
    %3178 = vmatprep.subr.bf16.mxu0 0
    %3179 = vmatpush1.bf16.msra.mxu0 0
    %3180 = vmatprep.subr.bf16.mxu0 0
    %3181 = vmatpush1.bf16.msra.mxu0 0
    %3182 = vmatprep.subr.bf16.mxu0 0
    %3183 = vmatpush1.bf16.msra.mxu0 0
    %3184 = vmatprep.subr.bf16.mxu0 0
    %3185 = vmatpush1.bf16.msra.mxu0 0
    %3186 = vmatprep.subr.bf16.mxu0 0
    %3187 = vmatpush1.bf16.msra.mxu0 %v3170
    %3188 = vmatprep.subr.bf16.mxu0 0
    %3189 = vmatpush2.bf16.msra.mxu0 0
    %3190 = vmatprep.subr.bf16.mxu0 0
    %3191 = vmatpush2.bf16.msra.mxu0 0
    %3192 = vmatprep.subr.bf16.mxu0 0
    %3193 = vmatpush2.bf16.msra.mxu0 0
    %3194 = vmatprep.subr.bf16.mxu0 0
    %3195 = vmatpush2.bf16.msra.mxu0 0
    %3196 = vmatprep.subr.bf16.mxu0 0
    %3197 = vmatpush2.bf16.msra.mxu0 0
    %3198 = vmatprep.subr.bf16.mxu0 0
    %3199 = vmatpush2.bf16.msra.mxu0 0
    %3200 = vmatprep.subr.bf16.mxu0 0
    %3201 = vmatpush2.bf16.msra.mxu0 0
    %3202 = vmatprep.subr.bf16.mxu0 0
    %3203 = vmatpush2.bf16.msra.mxu0 0
    %3204 = vmatprep.mubr.bf16.mxu0 0
    %3205 = vmatmul.mubr.bf16.gmra.mxu0 %v3167
    %v3206 = vpop.f32.mrf.mxu0
    %v3207 = vadd.f32 0.0, %v3206
    %v3208 = vpop.f32.mrf.mxu0
    %v3209 = vpop.f32.mrf.mxu0
    %v3210 = vpop.f32.mrf.mxu0
    %3211 = vdwg.mxu0
    %3213 = vrot.lane.b32.xlu0 %v2616, 96
    %v3214 = vpop.permute.xlu0 %3213
    %v3216 = vsel %vm925, %v3114, 0
    %v3219 = vsel %vm1025, %v3214, 0
    %3221 = vmatprep.subr.bf16.mxu0 0
    %3222 = vmatpush1.bf16.msra.mxu0 0
    %3223 = vmatprep.subr.bf16.mxu0 0
    %3224 = vmatpush1.bf16.msra.mxu0 0
    %3225 = vmatprep.subr.bf16.mxu0 0
    %3226 = vmatpush1.bf16.msra.mxu0 0
    %3227 = vmatprep.subr.bf16.mxu0 0
    %3228 = vmatpush1.bf16.msra.mxu0 0
    %3229 = vmatprep.subr.bf16.mxu0 0
    %3230 = vmatpush1.bf16.msra.mxu0 0
    %3231 = vmatprep.subr.bf16.mxu0 0
    %3232 = vmatpush1.bf16.msra.mxu0 0
    %3233 = vmatprep.subr.bf16.mxu0 0
    %3234 = vmatpush1.bf16.msra.mxu0 0
    %3235 = vmatprep.subr.bf16.mxu0 0
    %3236 = vmatpush1.bf16.msra.mxu0 %v3219
    %3237 = vmatprep.subr.bf16.mxu0 0
    %3238 = vmatpush2.bf16.msra.mxu0 0
    %3239 = vmatprep.subr.bf16.mxu0 0
    %3240 = vmatpush2.bf16.msra.mxu0 0
    %3241 = vmatprep.subr.bf16.mxu0 0
    %3242 = vmatpush2.bf16.msra.mxu0 0
    %3243 = vmatprep.subr.bf16.mxu0 0
    %3244 = vmatpush2.bf16.msra.mxu0 0
    %3245 = vmatprep.subr.bf16.mxu0 0
    %3246 = vmatpush2.bf16.msra.mxu0 0
    %3247 = vmatprep.subr.bf16.mxu0 0
    %3248 = vmatpush2.bf16.msra.mxu0 0
    %3249 = vmatprep.subr.bf16.mxu0 0
    %3250 = vmatpush2.bf16.msra.mxu0 0
    %3251 = vmatprep.subr.bf16.mxu0 0
    %3252 = vmatpush2.bf16.msra.mxu0 0
    %3253 = vmatprep.mubr.bf16.mxu0 0
    %3254 = vmatmul.mubr.bf16.gmra.mxu0 %v3216
    %v3255 = vpop.f32.mrf.mxu0
    %v3256 = vadd.f32 0.0, %v3255
    %v3257 = vpop.f32.mrf.mxu0
    %v3258 = vpop.f32.mrf.mxu0
    %v3259 = vpop.f32.mrf.mxu0
    %3260 = vdwg.mxu0
    %3262 = vrot.lane.b32.xlu0 %v2619, 96
    %v3263 = vpop.permute.xlu0 %3262
    %v3265 = vsel %vm925, %v3115, 0
    %v3268 = vsel %vm1025, %v3263, 0
    %3270 = vmatprep.subr.bf16.mxu0 0
    %3271 = vmatpush1.bf16.msra.mxu0 0
    %3272 = vmatprep.subr.bf16.mxu0 0
    %3273 = vmatpush1.bf16.msra.mxu0 0
    %3274 = vmatprep.subr.bf16.mxu0 0
    %3275 = vmatpush1.bf16.msra.mxu0 0
    %3276 = vmatprep.subr.bf16.mxu0 0
    %3277 = vmatpush1.bf16.msra.mxu0 0
    %3278 = vmatprep.subr.bf16.mxu0 0
    %3279 = vmatpush1.bf16.msra.mxu0 0
    %3280 = vmatprep.subr.bf16.mxu0 0
    %3281 = vmatpush1.bf16.msra.mxu0 0
    %3282 = vmatprep.subr.bf16.mxu0 0
    %3283 = vmatpush1.bf16.msra.mxu0 0
    %3284 = vmatprep.subr.bf16.mxu0 0
    %3285 = vmatpush1.bf16.msra.mxu0 %v3268
    %3286 = vmatprep.subr.bf16.mxu0 0
    %3287 = vmatpush2.bf16.msra.mxu0 0
    %3288 = vmatprep.subr.bf16.mxu0 0
    %3289 = vmatpush2.bf16.msra.mxu0 0
    %3290 = vmatprep.subr.bf16.mxu0 0
    %3291 = vmatpush2.bf16.msra.mxu0 0
    %3292 = vmatprep.subr.bf16.mxu0 0
    %3293 = vmatpush2.bf16.msra.mxu0 0
    %3294 = vmatprep.subr.bf16.mxu0 0
    %3295 = vmatpush2.bf16.msra.mxu0 0
    %3296 = vmatprep.subr.bf16.mxu0 0
    %3297 = vmatpush2.bf16.msra.mxu0 0
    %3298 = vmatprep.subr.bf16.mxu0 0
    %3299 = vmatpush2.bf16.msra.mxu0 0
    %3300 = vmatprep.subr.bf16.mxu0 0
    %3301 = vmatpush2.bf16.msra.mxu0 0
    %3302 = vmatprep.mubr.bf16.mxu0 0
    %3303 = vmatmul.mubr.bf16.gmra.mxu0 %v3265
    %v3304 = vpop.f32.mrf.mxu0
    %v3305 = vadd.f32 0.0, %v3304
    %v3306 = vpop.f32.mrf.mxu0
    %v3307 = vpop.f32.mrf.mxu0
    %v3308 = vpop.f32.mrf.mxu0
    %3309 = vdwg.mxu0
    %3310 = vrot.lane.b32.xlu0 %v2616, 64
    %v3311 = vpop.permute.xlu0 %3310
    %v3313 = vsel %vm925, %v3116, 0
    %v3316 = vsel %vm1025, %v3311, 0
    %3318 = vmatprep.subr.bf16.mxu0 0
    %3319 = vmatpush1.bf16.msra.mxu0 0
    %3320 = vmatprep.subr.bf16.mxu0 0
    %3321 = vmatpush1.bf16.msra.mxu0 0
    %3322 = vmatprep.subr.bf16.mxu0 0
    %3323 = vmatpush1.bf16.msra.mxu0 0
    %3324 = vmatprep.subr.bf16.mxu0 0
    %3325 = vmatpush1.bf16.msra.mxu0 0
    %3326 = vmatprep.subr.bf16.mxu0 0
    %3327 = vmatpush1.bf16.msra.mxu0 0
    %3328 = vmatprep.subr.bf16.mxu0 0
    %3329 = vmatpush1.bf16.msra.mxu0 0
    %3330 = vmatprep.subr.bf16.mxu0 0
    %3331 = vmatpush1.bf16.msra.mxu0 0
    %3332 = vmatprep.subr.bf16.mxu0 0
    %3333 = vmatpush1.bf16.msra.mxu0 %v3316
    %3334 = vmatprep.subr.bf16.mxu0 0
    %3335 = vmatpush2.bf16.msra.mxu0 0
    %3336 = vmatprep.subr.bf16.mxu0 0
    %3337 = vmatpush2.bf16.msra.mxu0 0
    %3338 = vmatprep.subr.bf16.mxu0 0
    %3339 = vmatpush2.bf16.msra.mxu0 0
    %3340 = vmatprep.subr.bf16.mxu0 0
    %3341 = vmatpush2.bf16.msra.mxu0 0
    %3342 = vmatprep.subr.bf16.mxu0 0
    %3343 = vmatpush2.bf16.msra.mxu0 0
    %3344 = vmatprep.subr.bf16.mxu0 0
    %3345 = vmatpush2.bf16.msra.mxu0 0
    %3346 = vmatprep.subr.bf16.mxu0 0
    %3347 = vmatpush2.bf16.msra.mxu0 0
    %3348 = vmatprep.subr.bf16.mxu0 0
    %3349 = vmatpush2.bf16.msra.mxu0 0
    %3350 = vmatprep.mubr.bf16.mxu0 0
    %3351 = vmatmul.mubr.bf16.gmra.mxu0 %v3313
    %v3352 = vpop.f32.mrf.mxu0
    %v3353 = vadd.f32 0.0, %v3352
    %v3354 = vpop.f32.mrf.mxu0
    %v3355 = vpop.f32.mrf.mxu0
    %v3356 = vpop.f32.mrf.mxu0
    %3357 = vdwg.mxu0
    %3358 = vrot.lane.b32.xlu0 %v2619, 64
    %v3359 = vpop.permute.xlu0 %3358
    %v3361 = vsel %vm925, %v3117, 0
    %v3364 = vsel %vm1025, %v3359, 0
    %3366 = vmatprep.subr.bf16.mxu0 0
    %3367 = vmatpush1.bf16.msra.mxu0 0
    %3368 = vmatprep.subr.bf16.mxu0 0
    %3369 = vmatpush1.bf16.msra.mxu0 0
    %3370 = vmatprep.subr.bf16.mxu0 0
    %3371 = vmatpush1.bf16.msra.mxu0 0
    %3372 = vmatprep.subr.bf16.mxu0 0
    %3373 = vmatpush1.bf16.msra.mxu0 0
    %3374 = vmatprep.subr.bf16.mxu0 0
    %3375 = vmatpush1.bf16.msra.mxu0 0
    %3376 = vmatprep.subr.bf16.mxu0 0
    %3377 = vmatpush1.bf16.msra.mxu0 0
    %3378 = vmatprep.subr.bf16.mxu0 0
    %3379 = vmatpush1.bf16.msra.mxu0 0
    %3380 = vmatprep.subr.bf16.mxu0 0
    %3381 = vmatpush1.bf16.msra.mxu0 %v3364
    %3382 = vmatprep.subr.bf16.mxu0 0
    %3383 = vmatpush2.bf16.msra.mxu0 0
    %3384 = vmatprep.subr.bf16.mxu0 0
    %3385 = vmatpush2.bf16.msra.mxu0 0
    %3386 = vmatprep.subr.bf16.mxu0 0
    %3387 = vmatpush2.bf16.msra.mxu0 0
    %3388 = vmatprep.subr.bf16.mxu0 0
    %3389 = vmatpush2.bf16.msra.mxu0 0
    %3390 = vmatprep.subr.bf16.mxu0 0
    %3391 = vmatpush2.bf16.msra.mxu0 0
    %3392 = vmatprep.subr.bf16.mxu0 0
    %3393 = vmatpush2.bf16.msra.mxu0 0
    %3394 = vmatprep.subr.bf16.mxu0 0
    %3395 = vmatpush2.bf16.msra.mxu0 0
    %3396 = vmatprep.subr.bf16.mxu0 0
    %3397 = vmatpush2.bf16.msra.mxu0 0
    %3398 = vmatprep.mubr.bf16.mxu0 0
    %3399 = vmatmul.mubr.bf16.gmra.mxu0 %v3361
    %v3400 = vpop.f32.mrf.mxu0
    %v3401 = vadd.f32 0.0, %v3400
    %v3402 = vpop.f32.mrf.mxu0
    %v3403 = vpop.f32.mrf.mxu0
    %v3404 = vpop.f32.mrf.mxu0
    %3405 = vdwg.mxu0
    %3406 = vrot.lane.b32.xlu0 %v2616, 32
    %v3407 = vpop.permute.xlu0 %3406
    %v3409 = vsel %vm925, %v3118, 0
    %v3412 = vsel %vm1025, %v3407, 0
    %3414 = vmatprep.subr.bf16.mxu0 0
    %3415 = vmatpush1.bf16.msra.mxu0 0
    %3416 = vmatprep.subr.bf16.mxu0 0
    %3417 = vmatpush1.bf16.msra.mxu0 0
    %3418 = vmatprep.subr.bf16.mxu0 0
    %3419 = vmatpush1.bf16.msra.mxu0 0
    %3420 = vmatprep.subr.bf16.mxu0 0
    %3421 = vmatpush1.bf16.msra.mxu0 0
    %3422 = vmatprep.subr.bf16.mxu0 0
    %3423 = vmatpush1.bf16.msra.mxu0 0
    %3424 = vmatprep.subr.bf16.mxu0 0
    %3425 = vmatpush1.bf16.msra.mxu0 0
    %3426 = vmatprep.subr.bf16.mxu0 0
    %3427 = vmatpush1.bf16.msra.mxu0 0
    %3428 = vmatprep.subr.bf16.mxu0 0
    %3429 = vmatpush1.bf16.msra.mxu0 %v3412
    %3430 = vmatprep.subr.bf16.mxu0 0
    %3431 = vmatpush2.bf16.msra.mxu0 0
    %3432 = vmatprep.subr.bf16.mxu0 0
    %3433 = vmatpush2.bf16.msra.mxu0 0
    %3434 = vmatprep.subr.bf16.mxu0 0
    %3435 = vmatpush2.bf16.msra.mxu0 0
    %3436 = vmatprep.subr.bf16.mxu0 0
    %3437 = vmatpush2.bf16.msra.mxu0 0
    %3438 = vmatprep.subr.bf16.mxu0 0
    %3439 = vmatpush2.bf16.msra.mxu0 0
    %3440 = vmatprep.subr.bf16.mxu0 0
    %3441 = vmatpush2.bf16.msra.mxu0 0
    %3442 = vmatprep.subr.bf16.mxu0 0
    %3443 = vmatpush2.bf16.msra.mxu0 0
    %3444 = vmatprep.subr.bf16.mxu0 0
    %3445 = vmatpush2.bf16.msra.mxu0 0
    %3446 = vmatprep.mubr.bf16.mxu0 0
    %3447 = vmatmul.mubr.bf16.gmra.mxu0 %v3409
    %v3448 = vpop.f32.mrf.mxu0
    %v3449 = vadd.f32 0.0, %v3448
    %v3450 = vpop.f32.mrf.mxu0
    %v3451 = vpop.f32.mrf.mxu0
    %v3452 = vpop.f32.mrf.mxu0
    %3453 = vdwg.mxu0
    %3454 = vrot.lane.b32.xlu0 %v2619, 32
    %v3455 = vpop.permute.xlu0 %3454
    %v3457 = vsel %vm925, %v3119, 0
    %v3460 = vsel %vm1025, %v3455, 0
    %3462 = vmatprep.subr.bf16.mxu0 0
    %3463 = vmatpush1.bf16.msra.mxu0 0
    %3464 = vmatprep.subr.bf16.mxu0 0
    %3465 = vmatpush1.bf16.msra.mxu0 0
    %3466 = vmatprep.subr.bf16.mxu0 0
    %3467 = vmatpush1.bf16.msra.mxu0 0
    %3468 = vmatprep.subr.bf16.mxu0 0
    %3469 = vmatpush1.bf16.msra.mxu0 0
    %3470 = vmatprep.subr.bf16.mxu0 0
    %3471 = vmatpush1.bf16.msra.mxu0 0
    %3472 = vmatprep.subr.bf16.mxu0 0
    %3473 = vmatpush1.bf16.msra.mxu0 0
    %3474 = vmatprep.subr.bf16.mxu0 0
    %3475 = vmatpush1.bf16.msra.mxu0 0
    %3476 = vmatprep.subr.bf16.mxu0 0
    %3477 = vmatpush1.bf16.msra.mxu0 %v3460
    %3478 = vmatprep.subr.bf16.mxu0 0
    %3479 = vmatpush2.bf16.msra.mxu0 0
    %3480 = vmatprep.subr.bf16.mxu0 0
    %3481 = vmatpush2.bf16.msra.mxu0 0
    %3482 = vmatprep.subr.bf16.mxu0 0
    %3483 = vmatpush2.bf16.msra.mxu0 0
    %3484 = vmatprep.subr.bf16.mxu0 0
    %3485 = vmatpush2.bf16.msra.mxu0 0
    %3486 = vmatprep.subr.bf16.mxu0 0
    %3487 = vmatpush2.bf16.msra.mxu0 0
    %3488 = vmatprep.subr.bf16.mxu0 0
    %3489 = vmatpush2.bf16.msra.mxu0 0
    %3490 = vmatprep.subr.bf16.mxu0 0
    %3491 = vmatpush2.bf16.msra.mxu0 0
    %3492 = vmatprep.subr.bf16.mxu0 0
    %3493 = vmatpush2.bf16.msra.mxu0 0
    %3494 = vmatprep.mubr.bf16.mxu0 0
    %3495 = vmatmul.mubr.bf16.gmra.mxu0 %v3457
    %v3496 = vpop.f32.mrf.mxu0
    %v3497 = vadd.f32 0.0, %v3496
    %v3498 = vpop.f32.mrf.mxu0
    %v3499 = vpop.f32.mrf.mxu0
    %v3500 = vpop.f32.mrf.mxu0
    %3501 = vdwg.mxu0
    %3504 = vrot.lane.b32.xlu0 %v3256, 32
    %v3505 = vpop.permute.xlu0 %3504
    %3506 = vrot.lane.b32.xlu0 %v3305, 32
    %v3507 = vpop.permute.xlu0 %3506
    %3512 = vrot.lane.b32.xlu0 %v3353, 64
    %v3513 = vpop.permute.xlu0 %3512
    %3514 = vrot.lane.b32.xlu0 %v3401, 64
    %v3515 = vpop.permute.xlu0 %3514
    %3520 = vrot.lane.b32.xlu0 %v3449, 96
    %v3521 = vpop.permute.xlu0 %3520
    %3522 = vrot.lane.b32.xlu0 %v3497, 96
    %v3523 = vpop.permute.xlu0 %3522
    %v3526 = vsel %vm520, %v3161, %v3505
    %v3527 = vsel %vm520, %v3207, %v3507
    %v3528 = vsel %vm1431, %v3526, %v3513
    %v3529 = vsel %vm1431, %v3527, %v3515
    %v3530 = vsel %vm1434, %v3528, %v3521
    %v3531 = vsel %vm1434, %v3529, %v3523
    %v3532 = vpack.c.bf16 %v3531, %v3530
    %s3533 = scalar_lea.vmem [#allocation11], 64
    %v3534 = vld [vmem:[%s3533] sm:$0xf]
    %v3535 = vld [vmem:[%s3533 + $0x4] sm:$0xf]
    %v3536 = vld [vmem:[%s3533 + $0x8] sm:$0xf]
    %v3537 = vld [vmem:[%s3533 + $0xc] sm:$0xf]
    %v3538 = vld [vmem:[%s3533 + $0x10] sm:$0xf]
    %v3539 = vld [vmem:[%s3533 + $0x14] sm:$0xf]
    %v3540 = vld [vmem:[%s3533 + $0x18] sm:$0xf]
    %v3541 = vld [vmem:[%s3533 + $0x1c] sm:$0xf]
    %v3542 = vld [vmem:[%s3533 + $0x20] sm:$0xf]
    %v3543 = vld [vmem:[%s3533 + $0x24] sm:$0xf]
    %v3544 = vld [vmem:[%s3533 + $0x28] sm:$0xf]
    %v3545 = vld [vmem:[%s3533 + $0x2c] sm:$0xf]
    %v3546 = vld [vmem:[%s3533 + $0x30] sm:$0xf]
    %v3547 = vld [vmem:[%s3533 + $0x34] sm:$0xf]
    %v3548 = vld [vmem:[%s3533 + $0x38] sm:$0xf]
    %v3549 = vld [vmem:[%s3533 + $0x3c] sm:$0xf]
    %s3550 = scalar_lea.vmem [#allocation13], 1
    %v3551 = vld [vmem:[%s3550] sm:$0x1]
    %v3553 = vlaneseq
    %v3554 = vshrl.u32 %v3553, 7
    %v3555 = vsub.s32 0, %v3554
    %v3556 = vrot.slane %v3551, %v3555
    %v3574 = vunpack.c.l.b16 %v3534
    %v3575 = vunpack.c.l.b16 %v3535
    %v3576 = vunpack.c.l.b16 %v3536
    %v3577 = vunpack.c.l.b16 %v3537
    %v3578 = vunpack.c.l.b16 %v3538
    %v3579 = vunpack.c.l.b16 %v3539
    %v3580 = vunpack.c.l.b16 %v3540
    %v3581 = vunpack.c.l.b16 %v3541
    %v3582 = vunpack.c.l.b16 %v3542
    %v3583 = vunpack.c.l.b16 %v3543
    %v3584 = vunpack.c.l.b16 %v3544
    %v3585 = vunpack.c.l.b16 %v3545
    %v3586 = vunpack.c.l.b16 %v3546
    %v3587 = vunpack.c.l.b16 %v3547
    %v3588 = vunpack.c.l.b16 %v3548
    %v3589 = vunpack.c.l.b16 %v3549
    %v3590 = vpack.c.b16 %v3575, %v3574
    %v3591 = vpack.c.b16 %v3577, %v3576
    %v3592 = vpack.c.b16 %v3579, %v3578
    %v3593 = vpack.c.b16 %v3581, %v3580
    %v3594 = vpack.c.b16 %v3583, %v3582
    %v3595 = vpack.c.b16 %v3585, %v3584
    %v3596 = vpack.c.b16 %v3587, %v3586
    %v3597 = vpack.c.b16 %v3589, %v3588
    %3606 = vmatprep.subr.bf16.mxu0 0
    %3607 = vmatpush1.bf16.msra.mxu0 %v3597
    %3608 = vmatprep.subr.bf16.mxu0 0
    %3609 = vmatpush1.bf16.msra.mxu0 %v3596
    %3610 = vmatprep.subr.bf16.mxu0 0
    %3611 = vmatpush1.bf16.msra.mxu0 %v3595
    %3612 = vmatprep.subr.bf16.mxu0 0
    %3613 = vmatpush1.bf16.msra.mxu0 %v3594
    %3614 = vmatprep.subr.bf16.mxu0 0
    %3615 = vmatpush1.bf16.msra.mxu0 %v3593
    %3616 = vmatprep.subr.bf16.mxu0 0
    %3617 = vmatpush1.bf16.msra.mxu0 %v3592
    %3618 = vmatprep.subr.bf16.mxu0 0
    %3619 = vmatpush1.bf16.msra.mxu0 %v3591
    %3620 = vmatprep.subr.bf16.mxu0 0
    %3621 = vmatpush1.bf16.msra.mxu0 %v3590
    %3622 = vmatprep.subr.bf16.mxu0 0
    %3623 = vmatpush2.bf16.msra.mxu0 0
    %3624 = vmatprep.subr.bf16.mxu0 0
    %3625 = vmatpush2.bf16.msra.mxu0 0
    %3626 = vmatprep.subr.bf16.mxu0 0
    %3627 = vmatpush2.bf16.msra.mxu0 0
    %3628 = vmatprep.subr.bf16.mxu0 0
    %3629 = vmatpush2.bf16.msra.mxu0 0
    %3630 = vmatprep.subr.bf16.mxu0 0
    %3631 = vmatpush2.bf16.msra.mxu0 0
    %3632 = vmatprep.subr.bf16.mxu0 0
    %3633 = vmatpush2.bf16.msra.mxu0 0
    %3634 = vmatprep.subr.bf16.mxu0 0
    %3635 = vmatpush2.bf16.msra.mxu0 0
    %3636 = vmatprep.subr.bf16.mxu0 0
    %3637 = vmatpush2.bf16.msra.mxu0 0
    %3638 = vmatprep.mubr.bf16.mxu0 0
    %3639 = vmatmul.mubr.bf16.gmra.mxu0 %v3532
    %v3640 = vpop.f32.mrf.mxu0
    %v3641 = vadd.f32 %v3556, %v3640
    %v3642 = vpop.f32.mrf.mxu0
    %v3643 = vpop.f32.mrf.mxu0
    %v3644 = vadd.f32 %v3556, %v3643
    %v3645 = vpop.f32.mrf.mxu0
    %3646 = vdwg.mxu0
    %v3647 = vadd.f32 %v2306, %v3641
    %v3648 = vadd.f32 %v2307, %v3644
    %s3649 = scalar_lea.vmem [#allocation14], 1
    %v3650 = vld [vmem:[%s3649] sm:$0x1]
    %s3651 = scalar_lea.vmem %s10, 1
    %v3652 = vld [vmem:[%s3651] sm:$0x1]
    %3653 = vadd.xlane.f32.xlu0 %v3647
    %v3654 = vpop.xlane.xlu0 %3653
    %3655 = vadd.xlane.f32.xlu0 %v3648
    %v3656 = vpop.xlane.xlu0 %3655
    %v3657 = vmul.f32 %v3654, %v217
    %v3658 = vmul.f32 %v3656, %v217
    %v3659 = vsub.f32 %v3647, %v3657
    %v3660 = vsub.f32 %v3648, %v3658
    %v3661 = vmul.f32 %v3659, %v3659
    %v3662 = vmul.f32 %v3660, %v3660
    %3663 = vadd.xlane.f32.xlu0 %v3661
    %v3664 = vpop.xlane.xlu0 %3663
    %3665 = vadd.xlane.f32.xlu0 %v3662
    %v3666 = vpop.xlane.xlu0 %3665
    %v3667 = vmul.f32 %v3664, %v217
    %v3668 = vmul.f32 %v3666, %v217
    %v3669 = vadd.f32 %v3667, 1e-05
    %v3670 = vadd.f32 %v3668, 1e-05
    %v3671 = vrsqrt.pop %v3669
    %v3672 = vrsqrt.pop %v3670
    %v3673 = vmul.f32 %v3659, %v3671
    %v3674 = vmul.f32 %v3660, %v3672
    %v3676 = vlaneseq
    %v3677 = vshrl.u32 %v3676, 7
    %v3678 = vsub.s32 0, %v3677
    %v3679 = vrot.slane %v3650, %v3678
    %v3681 = vmul.f32 %v3673, %v3679
    %v3682 = vmul.f32 %v3674, %v3679
    %v3684 = vlaneseq
    %v3685 = vshrl.u32 %v3684, 7
    %v3686 = vsub.s32 0, %v3685
    %v3687 = vrot.slane %v3652, %v3686
    %v3689 = vadd.f32 %v3681, %v3687
    %v3690 = vadd.f32 %v3682, %v3687
    %v3691 = vpack.c.bf16 %v3690, %v3689
    %s3692 = scalar_lea.vmem [#allocation16], 256
    %v3693 = vld [vmem:[%s3692] sm:$0xff]
    %v3694 = vld [vmem:[%s3692 + $0x8] sm:$0xff]
    %v3695 = vld [vmem:[%s3692 + $0x10] sm:$0xff]
    %v3696 = vld [vmem:[%s3692 + $0x18] sm:$0xff]
    %v3697 = vld [vmem:[%s3692 + $0x20] sm:$0xff]
    %v3698 = vld [vmem:[%s3692 + $0x28] sm:$0xff]
    %v3699 = vld [vmem:[%s3692 + $0x30] sm:$0xff]
    %v3700 = vld [vmem:[%s3692 + $0x38] sm:$0xff]
    %v3701 = vld [vmem:[%s3692 + $0x40] sm:$0xff]
    %v3702 = vld [vmem:[%s3692 + $0x48] sm:$0xff]
    %v3703 = vld [vmem:[%s3692 + $0x50] sm:$0xff]
    %v3704 = vld [vmem:[%s3692 + $0x58] sm:$0xff]
    %v3705 = vld [vmem:[%s3692 + $0x60] sm:$0xff]
    %v3706 = vld [vmem:[%s3692 + $0x68] sm:$0xff]
    %v3707 = vld [vmem:[%s3692 + $0x70] sm:$0xff]
    %v3708 = vld [vmem:[%s3692 + $0x78] sm:$0xff]
    %v3709 = vld [vmem:[%s3692 + $0x80] sm:$0xff]
    %v3710 = vld [vmem:[%s3692 + $0x88] sm:$0xff]
    %v3711 = vld [vmem:[%s3692 + $0x90] sm:$0xff]
    %v3712 = vld [vmem:[%s3692 + $0x98] sm:$0xff]
    %v3713 = vld [vmem:[%s3692 + $0xa0] sm:$0xff]
    %v3714 = vld [vmem:[%s3692 + $0xa8] sm:$0xff]
    %v3715 = vld [vmem:[%s3692 + $0xb0] sm:$0xff]
    %v3716 = vld [vmem:[%s3692 + $0xb8] sm:$0xff]
    %v3717 = vld [vmem:[%s3692 + $0xc0] sm:$0xff]
    %v3718 = vld [vmem:[%s3692 + $0xc8] sm:$0xff]
    %v3719 = vld [vmem:[%s3692 + $0xd0] sm:$0xff]
    %v3720 = vld [vmem:[%s3692 + $0xd8] sm:$0xff]
    %v3721 = vld [vmem:[%s3692 + $0xe0] sm:$0xff]
    %v3722 = vld [vmem:[%s3692 + $0xe8] sm:$0xff]
    %v3723 = vld [vmem:[%s3692 + $0xf0] sm:$0xff]
    %v3724 = vld [vmem:[%s3692 + $0xf8] sm:$0xff]
    %s3725 = scalar_lea.vmem %s12, 4
    %v3726 = vld [vmem:[%s3725] sm:$0xf]
    %v3728 = vlaneseq
    %v3729 = vshrl.u32 %v3728, 7
    %v3730 = vsub.s32 0, %v3729
    %v3731 = vrot.slane %v3726, %v3730
    %v3732 = vlaneseq
    %v3733 = vshrl.u32 %v3732, 7
    %v3734 = vsub.s32 1, %v3733
    %v3735 = vrot.slane %v3726, %v3734
    %v3736 = vlaneseq
    %v3737 = vshrl.u32 %v3736, 7
    %v3738 = vsub.s32 2, %v3737
    %v3739 = vrot.slane %v3726, %v3738
    %v3740 = vlaneseq
    %v3741 = vshrl.u32 %v3740, 7
    %v3742 = vsub.s32 3, %v3741
    %v3743 = vrot.slane %v3726, %v3742
    %v3780 = vunpack.c.l.b16 %v3693
    %v3781 = vunpack.c.h.b16 %v3693
    %v3782 = vunpack.c.l.b16 %v3694
    %v3783 = vunpack.c.h.b16 %v3694
    %v3784 = vunpack.c.l.b16 %v3695
    %v3785 = vunpack.c.h.b16 %v3695
    %v3786 = vunpack.c.l.b16 %v3696
    %v3787 = vunpack.c.h.b16 %v3696
    %v3788 = vunpack.c.l.b16 %v3697
    %v3789 = vunpack.c.h.b16 %v3697
    %v3790 = vunpack.c.l.b16 %v3698
    %v3791 = vunpack.c.h.b16 %v3698
    %v3792 = vunpack.c.l.b16 %v3699
    %v3793 = vunpack.c.h.b16 %v3699
    %v3794 = vunpack.c.l.b16 %v3700
    %v3795 = vunpack.c.h.b16 %v3700
    %v3796 = vunpack.c.l.b16 %v3701
    %v3797 = vunpack.c.h.b16 %v3701
    %v3798 = vunpack.c.l.b16 %v3702
    %v3799 = vunpack.c.h.b16 %v3702
    %v3800 = vunpack.c.l.b16 %v3703
    %v3801 = vunpack.c.h.b16 %v3703
    %v3802 = vunpack.c.l.b16 %v3704
    %v3803 = vunpack.c.h.b16 %v3704
    %v3804 = vunpack.c.l.b16 %v3705
    %v3805 = vunpack.c.h.b16 %v3705
    %v3806 = vunpack.c.l.b16 %v3706
    %v3807 = vunpack.c.h.b16 %v3706
    %v3808 = vunpack.c.l.b16 %v3707
    %v3809 = vunpack.c.h.b16 %v3707
    %v3810 = vunpack.c.l.b16 %v3708
    %v3811 = vunpack.c.h.b16 %v3708
    %v3812 = vunpack.c.l.b16 %v3709
    %v3813 = vunpack.c.h.b16 %v3709
    %v3814 = vunpack.c.l.b16 %v3710
    %v3815 = vunpack.c.h.b16 %v3710
    %v3816 = vunpack.c.l.b16 %v3711
    %v3817 = vunpack.c.h.b16 %v3711
    %v3818 = vunpack.c.l.b16 %v3712
    %v3819 = vunpack.c.h.b16 %v3712
    %v3820 = vunpack.c.l.b16 %v3713
    %v3821 = vunpack.c.h.b16 %v3713
    %v3822 = vunpack.c.l.b16 %v3714
    %v3823 = vunpack.c.h.b16 %v3714
    %v3824 = vunpack.c.l.b16 %v3715
    %v3825 = vunpack.c.h.b16 %v3715
    %v3826 = vunpack.c.l.b16 %v3716
    %v3827 = vunpack.c.h.b16 %v3716
    %v3828 = vunpack.c.l.b16 %v3717
    %v3829 = vunpack.c.h.b16 %v3717
    %v3830 = vunpack.c.l.b16 %v3718
    %v3831 = vunpack.c.h.b16 %v3718
    %v3832 = vunpack.c.l.b16 %v3719
    %v3833 = vunpack.c.h.b16 %v3719
    %v3834 = vunpack.c.l.b16 %v3720
    %v3835 = vunpack.c.h.b16 %v3720
    %v3836 = vunpack.c.l.b16 %v3721
    %v3837 = vunpack.c.h.b16 %v3721
    %v3838 = vunpack.c.l.b16 %v3722
    %v3839 = vunpack.c.h.b16 %v3722
    %v3840 = vunpack.c.l.b16 %v3723
    %v3841 = vunpack.c.h.b16 %v3723
    %v3842 = vunpack.c.l.b16 %v3724
    %v3843 = vunpack.c.h.b16 %v3724
    %v3844 = vpack.c.b16 %v3784, %v3780
    %v3845 = vpack.c.b16 %v3785, %v3781
    %v3846 = vpack.c.b16 %v3786, %v3782
    %v3847 = vpack.c.b16 %v3787, %v3783
    %v3848 = vpack.c.b16 %v3792, %v3788
    %v3849 = vpack.c.b16 %v3793, %v3789
    %v3850 = vpack.c.b16 %v3794, %v3790
    %v3851 = vpack.c.b16 %v3795, %v3791
    %v3852 = vpack.c.b16 %v3800, %v3796
    %v3853 = vpack.c.b16 %v3801, %v3797
    %v3854 = vpack.c.b16 %v3802, %v3798
    %v3855 = vpack.c.b16 %v3803, %v3799
    %v3856 = vpack.c.b16 %v3808, %v3804
    %v3857 = vpack.c.b16 %v3809, %v3805
    %v3858 = vpack.c.b16 %v3810, %v3806
    %v3859 = vpack.c.b16 %v3811, %v3807
    %v3860 = vpack.c.b16 %v3816, %v3812
    %v3861 = vpack.c.b16 %v3817, %v3813
    %v3862 = vpack.c.b16 %v3818, %v3814
    %v3863 = vpack.c.b16 %v3819, %v3815
    %v3864 = vpack.c.b16 %v3824, %v3820
    %v3865 = vpack.c.b16 %v3825, %v3821
    %v3866 = vpack.c.b16 %v3826, %v3822
    %v3867 = vpack.c.b16 %v3827, %v3823
    %v3868 = vpack.c.b16 %v3832, %v3828
    %v3869 = vpack.c.b16 %v3833, %v3829
    %v3870 = vpack.c.b16 %v3834, %v3830
    %v3871 = vpack.c.b16 %v3835, %v3831
    %v3872 = vpack.c.b16 %v3840, %v3836
    %v3873 = vpack.c.b16 %v3841, %v3837
    %v3874 = vpack.c.b16 %v3842, %v3838
    %v3875 = vpack.c.b16 %v3843, %v3839
    %3908 = vmatprep.subr.bf16.mxu0 %v3873
    %3909 = vmatpush1.bf16.msra.mxu0 %v3872
    %3910 = vmatprep.subr.bf16.mxu0 %v3869
    %3911 = vmatpush1.bf16.msra.mxu0 %v3868
    %3912 = vmatprep.subr.bf16.mxu0 %v3865
    %3913 = vmatpush1.bf16.msra.mxu0 %v3864
    %3914 = vmatprep.subr.bf16.mxu0 %v3861
    %3915 = vmatpush1.bf16.msra.mxu0 %v3860
    %3916 = vmatprep.subr.bf16.mxu0 %v3857
    %3917 = vmatpush1.bf16.msra.mxu0 %v3856
    %3918 = vmatprep.subr.bf16.mxu0 %v3853
    %3919 = vmatpush1.bf16.msra.mxu0 %v3852
    %3920 = vmatprep.subr.bf16.mxu0 %v3849
    %3921 = vmatpush1.bf16.msra.mxu0 %v3848
    %3922 = vmatprep.subr.bf16.mxu0 %v3845
    %3923 = vmatpush1.bf16.msra.mxu0 %v3844
    %3924 = vmatprep.subr.bf16.mxu0 0
    %3925 = vmatpush2.bf16.msra.mxu0 0
    %3926 = vmatprep.subr.bf16.mxu0 0
    %3927 = vmatpush2.bf16.msra.mxu0 0
    %3928 = vmatprep.subr.bf16.mxu0 0
    %3929 = vmatpush2.bf16.msra.mxu0 0
    %3930 = vmatprep.subr.bf16.mxu0 0
    %3931 = vmatpush2.bf16.msra.mxu0 0
    %3932 = vmatprep.subr.bf16.mxu0 0
    %3933 = vmatpush2.bf16.msra.mxu0 0
    %3934 = vmatprep.subr.bf16.mxu0 0
    %3935 = vmatpush2.bf16.msra.mxu0 0
    %3936 = vmatprep.subr.bf16.mxu0 0
    %3937 = vmatpush2.bf16.msra.mxu0 0
    %3938 = vmatprep.subr.bf16.mxu0 0
    %3939 = vmatpush2.bf16.msra.mxu0 0
    %3940 = vmatprep.mubr.bf16.mxu0 0
    %3941 = vmatmul.mubr.bf16.gmra.mxu0 %v3691
    %v3942 = vpop.f32.mrf.mxu0
    %v3943 = vadd.f32 %v3731, %v3942
    %v3944 = vpop.f32.mrf.mxu0
    %v3945 = vadd.f32 %v3735, %v3944
    %v3946 = vpop.f32.mrf.mxu0
    %v3947 = vadd.f32 %v3731, %v3946
    %v3948 = vpop.f32.mrf.mxu0
    %v3949 = vadd.f32 %v3735, %v3948
    %3950 = vdwg.mxu0
    %3951 = vmatprep.subr.bf16.mxu0 %v3875
    %3952 = vmatpush1.bf16.msra.mxu0 %v3874
    %3953 = vmatprep.subr.bf16.mxu0 %v3871
    %3954 = vmatpush1.bf16.msra.mxu0 %v3870
    %3955 = vmatprep.subr.bf16.mxu0 %v3867
    %3956 = vmatpush1.bf16.msra.mxu0 %v3866
    %3957 = vmatprep.subr.bf16.mxu0 %v3863
    %3958 = vmatpush1.bf16.msra.mxu0 %v3862
    %3959 = vmatprep.subr.bf16.mxu0 %v3859
    %3960 = vmatpush1.bf16.msra.mxu0 %v3858
    %3961 = vmatprep.subr.bf16.mxu0 %v3855
    %3962 = vmatpush1.bf16.msra.mxu0 %v3854
    %3963 = vmatprep.subr.bf16.mxu0 %v3851
    %3964 = vmatpush1.bf16.msra.mxu0 %v3850
    %3965 = vmatprep.subr.bf16.mxu0 %v3847
    %3966 = vmatpush1.bf16.msra.mxu0 %v3846
    %3967 = vmatprep.subr.bf16.mxu0 0
    %3968 = vmatpush2.bf16.msra.mxu0 0
    %3969 = vmatprep.subr.bf16.mxu0 0
    %3970 = vmatpush2.bf16.msra.mxu0 0
    %3971 = vmatprep.subr.bf16.mxu0 0
    %3972 = vmatpush2.bf16.msra.mxu0 0
    %3973 = vmatprep.subr.bf16.mxu0 0
    %3974 = vmatpush2.bf16.msra.mxu0 0
    %3975 = vmatprep.subr.bf16.mxu0 0
    %3976 = vmatpush2.bf16.msra.mxu0 0
    %3977 = vmatprep.subr.bf16.mxu0 0
    %3978 = vmatpush2.bf16.msra.mxu0 0
    %3979 = vmatprep.subr.bf16.mxu0 0
    %3980 = vmatpush2.bf16.msra.mxu0 0
    %3981 = vmatprep.subr.bf16.mxu0 0
    %3982 = vmatpush2.bf16.msra.mxu0 0
    %3983 = vmatprep.mubr.bf16.mxu0 0
    %3984 = vmatmul.mubr.bf16.gmra.mxu0 %v3691
    %v3985 = vpop.f32.mrf.mxu0
    %v3986 = vadd.f32 %v3739, %v3985
    %v3987 = vpop.f32.mrf.mxu0
    %v3988 = vadd.f32 %v3743, %v3987
    %v3989 = vpop.f32.mrf.mxu0
    %v3990 = vadd.f32 %v3739, %v3989
    %v3991 = vpop.f32.mrf.mxu0
    %v3992 = vadd.f32 %v3743, %v3991
    %3993 = vdwg.mxu0
    %v3994 = vmul.f32 %v3943, 1.702
    %v3995 = vmul.f32 %v3945, 1.702
    %v3996 = vmul.f32 %v3986, 1.702
    %v3997 = vmul.f32 %v3988, 1.702
    %v3998 = vmul.f32 %v3947, 1.702
    %v3999 = vmul.f32 %v3949, 1.702
    %v4000 = vmul.f32 %v3990, 1.702
    %v4001 = vmul.f32 %v3992, 1.702
    %v4002 = vxor.u32 %v3994, 2147483648
    %v4003 = vxor.u32 %v3995, 2147483648
    %v4004 = vxor.u32 %v3996, 2147483648
    %v4005 = vxor.u32 %v3997, 2147483648
    %v4006 = vxor.u32 %v3998, 2147483648
    %v4007 = vxor.u32 %v3999, 2147483648
    %v4008 = vxor.u32 %v4000, 2147483648
    %v4009 = vxor.u32 %v4001, 2147483648
    %v4010 = vmul.f32 %v4002, 1.442695
    %v4011 = vpow.pop %v4010
    %v4012 = vmul.f32 %v4003, 1.442695
    %v4013 = vpow.pop %v4012
    %v4014 = vmul.f32 %v4004, 1.442695
    %v4015 = vpow.pop %v4014
    %v4016 = vmul.f32 %v4005, 1.442695
    %v4017 = vpow.pop %v4016
    %v4018 = vmul.f32 %v4006, 1.442695
    %v4019 = vpow.pop %v4018
    %v4020 = vmul.f32 %v4007, 1.442695
    %v4021 = vpow.pop %v4020
    %v4022 = vmul.f32 %v4008, 1.442695
    %v4023 = vpow.pop %v4022
    %v4024 = vmul.f32 %v4009, 1.442695
    %v4025 = vpow.pop %v4024
    %v4026 = vadd.f32 %v4011, 1.0
    %v4027 = vadd.f32 %v4013, 1.0
    %v4028 = vadd.f32 %v4015, 1.0
    %v4029 = vadd.f32 %v4017, 1.0
    %v4030 = vadd.f32 %v4019, 1.0
    %v4031 = vadd.f32 %v4021, 1.0
    %v4032 = vadd.f32 %v4023, 1.0
    %v4033 = vadd.f32 %v4025, 1.0
    %v4034 = vrcp.pop %v4026
    %v4035 = vmul.f32 1.0, %v4034
    %v4036 = vrcp.pop %v4027
    %v4037 = vmul.f32 1.0, %v4036
    %v4038 = vrcp.pop %v4028
    %v4039 = vmul.f32 1.0, %v4038
    %v4040 = vrcp.pop %v4029
    %v4041 = vmul.f32 1.0, %v4040
    %v4042 = vrcp.pop %v4030
    %v4043 = vmul.f32 1.0, %v4042
    %v4044 = vrcp.pop %v4031
    %v4045 = vmul.f32 1.0, %v4044
    %v4046 = vrcp.pop %v4032
    %v4047 = vmul.f32 1.0, %v4046
    %v4048 = vrcp.pop %v4033
    %v4049 = vmul.f32 1.0, %v4048
    %v4050 = vmul.f32 %v3943, %v4035
    %v4051 = vmul.f32 %v3945, %v4037
    %v4052 = vmul.f32 %v3986, %v4039
    %v4053 = vmul.f32 %v3988, %v4041
    %v4054 = vmul.f32 %v3947, %v4043
    %v4055 = vmul.f32 %v3949, %v4045
    %v4056 = vmul.f32 %v3990, %v4047
    %v4057 = vmul.f32 %v3992, %v4049
    %v4058 = vpack.c.bf16 %v4054, %v4050
    %v4059 = vpack.c.bf16 %v4055, %v4051
    %v4060 = vpack.c.bf16 %v4056, %v4052
    %v4061 = vpack.c.bf16 %v4057, %v4053
    %s4062 = scalar_lea.vmem [#allocation17], 256
    %v4063 = vld [vmem:[%s4062] sm:$0xf]
    %v4064 = vld [vmem:[%s4062 + $0x4] sm:$0xf]
    %v4065 = vld [vmem:[%s4062 + $0x8] sm:$0xf]
    %v4066 = vld [vmem:[%s4062 + $0xc] sm:$0xf]
    %v4067 = vld [vmem:[%s4062 + $0x10] sm:$0xf]
    %v4068 = vld [vmem:[%s4062 + $0x14] sm:$0xf]
    %v4069 = vld [vmem:[%s4062 + $0x18] sm:$0xf]
    %v4070 = vld [vmem:[%s4062 + $0x1c] sm:$0xf]
    %v4071 = vld [vmem:[%s4062 + $0x20] sm:$0xf]
    %v4072 = vld [vmem:[%s4062 + $0x24] sm:$0xf]
    %v4073 = vld [vmem:[%s4062 + $0x28] sm:$0xf]
    %v4074 = vld [vmem:[%s4062 + $0x2c] sm:$0xf]
    %v4075 = vld [vmem:[%s4062 + $0x30] sm:$0xf]
    %v4076 = vld [vmem:[%s4062 + $0x34] sm:$0xf]
    %v4077 = vld [vmem:[%s4062 + $0x38] sm:$0xf]
    %v4078 = vld [vmem:[%s4062 + $0x3c] sm:$0xf]
    %v4079 = vld [vmem:[%s4062 + $0x40] sm:$0xf]
    %v4080 = vld [vmem:[%s4062 + $0x44] sm:$0xf]
    %v4081 = vld [vmem:[%s4062 + $0x48] sm:$0xf]
    %v4082 = vld [vmem:[%s4062 + $0x4c] sm:$0xf]
    %v4083 = vld [vmem:[%s4062 + $0x50] sm:$0xf]
    %v4084 = vld [vmem:[%s4062 + $0x54] sm:$0xf]
    %v4085 = vld [vmem:[%s4062 + $0x58] sm:$0xf]
    %v4086 = vld [vmem:[%s4062 + $0x5c] sm:$0xf]
    %v4087 = vld [vmem:[%s4062 + $0x60] sm:$0xf]
    %v4088 = vld [vmem:[%s4062 + $0x64] sm:$0xf]
    %v4089 = vld [vmem:[%s4062 + $0x68] sm:$0xf]
    %v4090 = vld [vmem:[%s4062 + $0x6c] sm:$0xf]
    %v4091 = vld [vmem:[%s4062 + $0x70] sm:$0xf]
    %v4092 = vld [vmem:[%s4062 + $0x74] sm:$0xf]
    %v4093 = vld [vmem:[%s4062 + $0x78] sm:$0xf]
    %v4094 = vld [vmem:[%s4062 + $0x7c] sm:$0xf]
    %v4095 = vld [vmem:[%s4062 + $0x80] sm:$0xf]
    %v4096 = vld [vmem:[%s4062 + $0x84] sm:$0xf]
    %v4097 = vld [vmem:[%s4062 + $0x88] sm:$0xf]
    %v4098 = vld [vmem:[%s4062 + $0x8c] sm:$0xf]
    %v4099 = vld [vmem:[%s4062 + $0x90] sm:$0xf]
    %v4100 = vld [vmem:[%s4062 + $0x94] sm:$0xf]
    %v4101 = vld [vmem:[%s4062 + $0x98] sm:$0xf]
    %v4102 = vld [vmem:[%s4062 + $0x9c] sm:$0xf]
    %v4103 = vld [vmem:[%s4062 + $0xa0] sm:$0xf]
    %v4104 = vld [vmem:[%s4062 + $0xa4] sm:$0xf]
    %v4105 = vld [vmem:[%s4062 + $0xa8] sm:$0xf]
    %v4106 = vld [vmem:[%s4062 + $0xac] sm:$0xf]
    %v4107 = vld [vmem:[%s4062 + $0xb0] sm:$0xf]
    %v4108 = vld [vmem:[%s4062 + $0xb4] sm:$0xf]
    %v4109 = vld [vmem:[%s4062 + $0xb8] sm:$0xf]
    %v4110 = vld [vmem:[%s4062 + $0xbc] sm:$0xf]
    %v4111 = vld [vmem:[%s4062 + $0xc0] sm:$0xf]
    %v4112 = vld [vmem:[%s4062 + $0xc4] sm:$0xf]
    %v4113 = vld [vmem:[%s4062 + $0xc8] sm:$0xf]
    %v4114 = vld [vmem:[%s4062 + $0xcc] sm:$0xf]
    %v4115 = vld [vmem:[%s4062 + $0xd0] sm:$0xf]
    %v4116 = vld [vmem:[%s4062 + $0xd4] sm:$0xf]
    %v4117 = vld [vmem:[%s4062 + $0xd8] sm:$0xf]
    %v4118 = vld [vmem:[%s4062 + $0xdc] sm:$0xf]
    %v4119 = vld [vmem:[%s4062 + $0xe0] sm:$0xf]
    %v4120 = vld [vmem:[%s4062 + $0xe4] sm:$0xf]
    %v4121 = vld [vmem:[%s4062 + $0xe8] sm:$0xf]
    %v4122 = vld [vmem:[%s4062 + $0xec] sm:$0xf]
    %v4123 = vld [vmem:[%s4062 + $0xf0] sm:$0xf]
    %v4124 = vld [vmem:[%s4062 + $0xf4] sm:$0xf]
    %v4125 = vld [vmem:[%s4062 + $0xf8] sm:$0xf]
    %v4126 = vld [vmem:[%s4062 + $0xfc] sm:$0xf]
    %s4127 = scalar_lea.vmem %s14, 1
    %v4128 = vld [vmem:[%s4127] sm:$0x1]
    %v4130 = vlaneseq
    %v4131 = vshrl.u32 %v4130, 7
    %v4132 = vsub.s32 0, %v4131
    %v4133 = vrot.slane %v4128, %v4132
    %v4199 = vunpack.c.l.b16 %v4063
    %v4200 = vunpack.c.l.b16 %v4064
    %v4201 = vunpack.c.l.b16 %v4065
    %v4202 = vunpack.c.l.b16 %v4066
    %v4203 = vunpack.c.l.b16 %v4067
    %v4204 = vunpack.c.l.b16 %v4068
    %v4205 = vunpack.c.l.b16 %v4069
    %v4206 = vunpack.c.l.b16 %v4070
    %v4207 = vunpack.c.l.b16 %v4071
    %v4208 = vunpack.c.l.b16 %v4072
    %v4209 = vunpack.c.l.b16 %v4073
    %v4210 = vunpack.c.l.b16 %v4074
    %v4211 = vunpack.c.l.b16 %v4075
    %v4212 = vunpack.c.l.b16 %v4076
    %v4213 = vunpack.c.l.b16 %v4077
    %v4214 = vunpack.c.l.b16 %v4078
    %v4215 = vunpack.c.l.b16 %v4079
    %v4216 = vunpack.c.l.b16 %v4080
    %v4217 = vunpack.c.l.b16 %v4081
    %v4218 = vunpack.c.l.b16 %v4082
    %v4219 = vunpack.c.l.b16 %v4083
    %v4220 = vunpack.c.l.b16 %v4084
    %v4221 = vunpack.c.l.b16 %v4085
    %v4222 = vunpack.c.l.b16 %v4086
    %v4223 = vunpack.c.l.b16 %v4087
    %v4224 = vunpack.c.l.b16 %v4088
    %v4225 = vunpack.c.l.b16 %v4089
    %v4226 = vunpack.c.l.b16 %v4090
    %v4227 = vunpack.c.l.b16 %v4091
    %v4228 = vunpack.c.l.b16 %v4092
    %v4229 = vunpack.c.l.b16 %v4093
    %v4230 = vunpack.c.l.b16 %v4094
    %v4231 = vunpack.c.l.b16 %v4095
    %v4232 = vunpack.c.l.b16 %v4096
    %v4233 = vunpack.c.l.b16 %v4097
    %v4234 = vunpack.c.l.b16 %v4098
    %v4235 = vunpack.c.l.b16 %v4099
    %v4236 = vunpack.c.l.b16 %v4100
    %v4237 = vunpack.c.l.b16 %v4101
    %v4238 = vunpack.c.l.b16 %v4102
    %v4239 = vunpack.c.l.b16 %v4103
    %v4240 = vunpack.c.l.b16 %v4104
    %v4241 = vunpack.c.l.b16 %v4105
    %v4242 = vunpack.c.l.b16 %v4106
    %v4243 = vunpack.c.l.b16 %v4107
    %v4244 = vunpack.c.l.b16 %v4108
    %v4245 = vunpack.c.l.b16 %v4109
    %v4246 = vunpack.c.l.b16 %v4110
    %v4247 = vunpack.c.l.b16 %v4111
    %v4248 = vunpack.c.l.b16 %v4112
    %v4249 = vunpack.c.l.b16 %v4113
    %v4250 = vunpack.c.l.b16 %v4114
    %v4251 = vunpack.c.l.b16 %v4115
    %v4252 = vunpack.c.l.b16 %v4116
    %v4253 = vunpack.c.l.b16 %v4117
    %v4254 = vunpack.c.l.b16 %v4118
    %v4255 = vunpack.c.l.b16 %v4119
    %v4256 = vunpack.c.l.b16 %v4120
    %v4257 = vunpack.c.l.b16 %v4121
    %v4258 = vunpack.c.l.b16 %v4122
    %v4259 = vunpack.c.l.b16 %v4123
    %v4260 = vunpack.c.l.b16 %v4124
    %v4261 = vunpack.c.l.b16 %v4125
    %v4262 = vunpack.c.l.b16 %v4126
    %v4263 = vpack.c.b16 %v4200, %v4199
    %v4264 = vpack.c.b16 %v4202, %v4201
    %v4265 = vpack.c.b16 %v4204, %v4203
    %v4266 = vpack.c.b16 %v4206, %v4205
    %v4267 = vpack.c.b16 %v4208, %v4207
    %v4268 = vpack.c.b16 %v4210, %v4209
    %v4269 = vpack.c.b16 %v4212, %v4211
    %v4270 = vpack.c.b16 %v4214, %v4213
    %v4271 = vpack.c.b16 %v4216, %v4215
    %v4272 = vpack.c.b16 %v4218, %v4217
    %v4273 = vpack.c.b16 %v4220, %v4219
    %v4274 = vpack.c.b16 %v4222, %v4221
    %v4275 = vpack.c.b16 %v4224, %v4223
    %v4276 = vpack.c.b16 %v4226, %v4225
    %v4277 = vpack.c.b16 %v4228, %v4227
    %v4278 = vpack.c.b16 %v4230, %v4229
    %v4279 = vpack.c.b16 %v4232, %v4231
    %v4280 = vpack.c.b16 %v4234, %v4233
    %v4281 = vpack.c.b16 %v4236, %v4235
    %v4282 = vpack.c.b16 %v4238, %v4237
    %v4283 = vpack.c.b16 %v4240, %v4239
    %v4284 = vpack.c.b16 %v4242, %v4241
    %v4285 = vpack.c.b16 %v4244, %v4243
    %v4286 = vpack.c.b16 %v4246, %v4245
    %v4287 = vpack.c.b16 %v4248, %v4247
    %v4288 = vpack.c.b16 %v4250, %v4249
    %v4289 = vpack.c.b16 %v4252, %v4251
    %v4290 = vpack.c.b16 %v4254, %v4253
    %v4291 = vpack.c.b16 %v4256, %v4255
    %v4292 = vpack.c.b16 %v4258, %v4257
    %v4293 = vpack.c.b16 %v4260, %v4259
    %v4294 = vpack.c.b16 %v4262, %v4261
    %4327 = vmatprep.subr.bf16.mxu0 0
    %4328 = vmatpush1.bf16.msra.mxu0 %v4270
    %4329 = vmatprep.subr.bf16.mxu0 0
    %4330 = vmatpush1.bf16.msra.mxu0 %v4269
    %4331 = vmatprep.subr.bf16.mxu0 0
    %4332 = vmatpush1.bf16.msra.mxu0 %v4268
    %4333 = vmatprep.subr.bf16.mxu0 0
    %4334 = vmatpush1.bf16.msra.mxu0 %v4267
    %4335 = vmatprep.subr.bf16.mxu0 0
    %4336 = vmatpush1.bf16.msra.mxu0 %v4266
    %4337 = vmatprep.subr.bf16.mxu0 0
    %4338 = vmatpush1.bf16.msra.mxu0 %v4265
    %4339 = vmatprep.subr.bf16.mxu0 0
    %4340 = vmatpush1.bf16.msra.mxu0 %v4264
    %4341 = vmatprep.subr.bf16.mxu0 0
    %4342 = vmatpush1.bf16.msra.mxu0 %v4263
    %4343 = vmatprep.subr.bf16.mxu0 0
    %4344 = vmatpush2.bf16.msra.mxu0 %v4278
    %4345 = vmatprep.subr.bf16.mxu0 0
    %4346 = vmatpush2.bf16.msra.mxu0 %v4277
    %4347 = vmatprep.subr.bf16.mxu0 0
    %4348 = vmatpush2.bf16.msra.mxu0 %v4276
    %4349 = vmatprep.subr.bf16.mxu0 0
    %4350 = vmatpush2.bf16.msra.mxu0 %v4275
    %4351 = vmatprep.subr.bf16.mxu0 0
    %4352 = vmatpush2.bf16.msra.mxu0 %v4274
    %4353 = vmatprep.subr.bf16.mxu0 0
    %4354 = vmatpush2.bf16.msra.mxu0 %v4273
    %4355 = vmatprep.subr.bf16.mxu0 0
    %4356 = vmatpush2.bf16.msra.mxu0 %v4272
    %4357 = vmatprep.subr.bf16.mxu0 0
    %4358 = vmatpush2.bf16.msra.mxu0 %v4271
    %4359 = vmatprep.mubr.bf16.mxu0 %v4059
    %4360 = vmatmul.mubr.bf16.gmra.mxu0 %v4058
    %v4361 = vpop.f32.mrf.mxu0
    %v4362 = vadd.f32 %v4133, %v4361
    %v4363 = vpop.f32.mrf.mxu0
    %v4364 = vpop.f32.mrf.mxu0
    %v4365 = vadd.f32 %v4133, %v4364
    %v4366 = vpop.f32.mrf.mxu0
    %4367 = vdwg.mxu0
    %4368 = vmatprep.subr.bf16.mxu0 0
    %4369 = vmatpush1.bf16.msra.mxu0 %v4286
    %4370 = vmatprep.subr.bf16.mxu0 0
    %4371 = vmatpush1.bf16.msra.mxu0 %v4285
    %4372 = vmatprep.subr.bf16.mxu0 0
    %4373 = vmatpush1.bf16.msra.mxu0 %v4284
    %4374 = vmatprep.subr.bf16.mxu0 0
    %4375 = vmatpush1.bf16.msra.mxu0 %v4283
    %4376 = vmatprep.subr.bf16.mxu0 0
    %4377 = vmatpush1.bf16.msra.mxu0 %v4282
    %4378 = vmatprep.subr.bf16.mxu0 0
    %4379 = vmatpush1.bf16.msra.mxu0 %v4281
    %4380 = vmatprep.subr.bf16.mxu0 0
    %4381 = vmatpush1.bf16.msra.mxu0 %v4280
    %4382 = vmatprep.subr.bf16.mxu0 0
    %4383 = vmatpush1.bf16.msra.mxu0 %v4279
    %4384 = vmatprep.subr.bf16.mxu0 0
    %4385 = vmatpush2.bf16.msra.mxu0 %v4294
    %4386 = vmatprep.subr.bf16.mxu0 0
    %4387 = vmatpush2.bf16.msra.mxu0 %v4293
    %4388 = vmatprep.subr.bf16.mxu0 0
    %4389 = vmatpush2.bf16.msra.mxu0 %v4292
    %4390 = vmatprep.subr.bf16.mxu0 0
    %4391 = vmatpush2.bf16.msra.mxu0 %v4291
    %4392 = vmatprep.subr.bf16.mxu0 0
    %4393 = vmatpush2.bf16.msra.mxu0 %v4290
    %4394 = vmatprep.subr.bf16.mxu0 0
    %4395 = vmatpush2.bf16.msra.mxu0 %v4289
    %4396 = vmatprep.subr.bf16.mxu0 0
    %4397 = vmatpush2.bf16.msra.mxu0 %v4288
    %4398 = vmatprep.subr.bf16.mxu0 0
    %4399 = vmatpush2.bf16.msra.mxu0 %v4287
    %4400 = vmatprep.mubr.bf16.mxu0 %v4061
    %4401 = vmatmul.mubr.bf16.gmra.mxu0 %v4060
    %v4402 = vpop.f32.mrf.mxu0
    %v4403 = vadd.f32 %v4362, %v4402
    %v4404 = vpop.f32.mrf.mxu0
    %v4405 = vpop.f32.mrf.mxu0
    %v4406 = vadd.f32 %v4365, %v4405
    %v4407 = vpop.f32.mrf.mxu0
    %4408 = vdwg.mxu0
    %v4409 = vadd.f32 %v3647, %v4403
    %v4410 = vadd.f32 %v3648, %v4406
    %v4411 = vld [vmem:[%s15] sm:$0x1]
    %v4412 = vld [vmem:[%s16] sm:$0x1]
    %4413 = vadd.xlane.f32.xlu0 %v4409
    %v4414 = vpop.xlane.xlu0 %4413
    %4415 = vadd.xlane.f32.xlu0 %v4410
    %v4416 = vpop.xlane.xlu0 %4415
    %v4417 = vmul.f32 %v4414, %v217
    %v4418 = vmul.f32 %v4416, %v217
    %v4419 = vsub.f32 %v4409, %v4417
    %v4420 = vsub.f32 %v4410, %v4418
    %v4421 = vmul.f32 %v4419, %v4419
    %v4422 = vmul.f32 %v4420, %v4420
    %4423 = vadd.xlane.f32.xlu0 %v4421
    %v4424 = vpop.xlane.xlu0 %4423
    %4425 = vadd.xlane.f32.xlu0 %v4422
    %v4426 = vpop.xlane.xlu0 %4425
    %v4427 = vmul.f32 %v4424, %v217
    %v4428 = vmul.f32 %v4426, %v217
    %v4429 = vadd.f32 %v4427, 1e-05
    %v4430 = vadd.f32 %v4428, 1e-05
    %v4431 = vrsqrt.pop %v4429
    %v4432 = vrsqrt.pop %v4430
    %v4433 = vmul.f32 %v4419, %v4431
    %v4434 = vmul.f32 %v4420, %v4432
    %v4436 = vlaneseq
    %v4437 = vshrl.u32 %v4436, 7
    %v4438 = vsub.s32 0, %v4437
    %v4439 = vrot.slane %v4411, %v4438
    %v4441 = vmul.f32 %v4433, %v4439
    %v4442 = vmul.f32 %v4434, %v4439
    %v4444 = vlaneseq
    %v4445 = vshrl.u32 %v4444, 7
    %v4446 = vsub.s32 0, %v4445
    %v4447 = vrot.slane %v4412, %v4446
    %v4449 = vadd.f32 %v4441, %v4447
    %v4450 = vadd.f32 %v4442, %v4447
    %v4451 = vld [vmem:[%s2] sm:$0x3]
    %vm4452 = vcmask 130048
    %v4454 = vsel %vm4452, %v4451, 0
    %4456 = vmatprep.subr.mxu0 0.0
    %4457 = vmatpush1.msra.mxu0 0.0
    %4458 = vmatprep.subr.mxu0 0.0
    %4459 = vmatpush1.msra.mxu0 0.0
    %4460 = vmatprep.subr.mxu0 0.0
    %4461 = vmatpush1.msra.mxu0 0.0
    %4462 = vmatprep.subr.mxu0 0.0
    %4463 = vmatpush1.msra.mxu0 0.0
    %4464 = vmatprep.subr.mxu0 0.0
    %4465 = vmatpush1.msra.mxu0 0.0
    %4466 = vmatprep.subr.mxu0 0.0
    %4467 = vmatpush1.msra.mxu0 0.0
    %4468 = vmatprep.subr.mxu0 0.0
    %4469 = vmatpush1.msra.mxu0 0.0
    %4470 = vmatprep.subr.mxu0 0.0
    %4471 = vmatpush1.msra.mxu0 0.0
    %4472 = vmatprep.subr.mxu0 0.0
    %4473 = vmatpush1.msra.mxu0 0.0
    %4474 = vmatprep.subr.mxu0 0.0
    %4475 = vmatpush1.msra.mxu0 0.0
    %4476 = vmatprep.subr.mxu0 0.0
    %4477 = vmatpush1.msra.mxu0 0.0
    %4478 = vmatprep.subr.mxu0 0.0
    %4479 = vmatpush1.msra.mxu0 0.0
    %4480 = vmatprep.subr.mxu0 0.0
    %4481 = vmatpush1.msra.mxu0 0.0
    %4482 = vmatprep.subr.mxu0 0.0
    %4483 = vmatpush1.msra.mxu0 0.0
    %4484 = vmatprep.subr.mxu0 0.0
    %4485 = vmatpush1.msra.mxu0 %v4450
    %4486 = vmatprep.subr.mxu0 0.0
    %4487 = vmatpush1.msra.mxu0 %v4449
    %4488 = vmatprep.subr.mxu0 0.0
    %4489 = vmatpush2.msra.mxu0 0.0
    %4490 = vmatprep.subr.mxu0 0.0
    %4491 = vmatpush2.msra.mxu0 0.0
    %4492 = vmatprep.subr.mxu0 0.0
    %4493 = vmatpush2.msra.mxu0 0.0
    %4494 = vmatprep.subr.mxu0 0.0
    %4495 = vmatpush2.msra.mxu0 0.0
    %4496 = vmatprep.subr.mxu0 0.0
    %4497 = vmatpush2.msra.mxu0 0.0
    %4498 = vmatprep.subr.mxu0 0.0
    %4499 = vmatpush2.msra.mxu0 0.0
    %4500 = vmatprep.subr.mxu0 0.0
    %4501 = vmatpush2.msra.mxu0 0.0
    %4502 = vmatprep.subr.mxu0 0.0
    %4503 = vmatpush2.msra.mxu0 0.0
    %4504 = vmatprep.subr.mxu0 0.0
    %4505 = vmatpush2.msra.mxu0 0.0
    %4506 = vmatprep.subr.mxu0 0.0
    %4507 = vmatpush2.msra.mxu0 0.0
    %4508 = vmatprep.subr.mxu0 0.0
    %4509 = vmatpush2.msra.mxu0 0.0
    %4510 = vmatprep.subr.mxu0 0.0
    %4511 = vmatpush2.msra.mxu0 0.0
    %4512 = vmatprep.subr.mxu0 0.0
    %4513 = vmatpush2.msra.mxu0 0.0
    %4514 = vmatprep.subr.mxu0 0.0
    %4515 = vmatpush2.msra.mxu0 0.0
    %4516 = vmatprep.subr.mxu0 0.0
    %4517 = vmatpush2.msra.mxu0 0.0
    %4518 = vmatprep.subr.mxu0 0.0
    %4519 = vmatpush2.msra.mxu0 0.0
    %4520 = vmatprep.mubr.f32.mxu0 0.0
    %4521 = vmatmul.mubr.f32.gmra.mxu0 %v4454
    %v4522 = vpop.f32.mrf.mxu0
    %v4523 = vadd.f32 0.0, %v4522
    %v4524 = vpop.f32.mrf.mxu0
    %4525 = vdwg.mxu0
    %v4526 = vpack.c.bf16 %v4523, %v4523
    %v4527 = vld [vmem:[#allocation19] sm:$0xf]
    %v4528 = vld [vmem:[#allocation19 + $0x4] sm:$0xf]
    %v4529 = vld [vmem:[#allocation19 + $0x8] sm:$0xf]
    %v4530 = vld [vmem:[#allocation19 + $0xc] sm:$0xf]
    %v4531 = vld [vmem:[#allocation19 + $0x10] sm:$0xf]
    %v4532 = vld [vmem:[#allocation19 + $0x14] sm:$0xf]
    %v4533 = vld [vmem:[#allocation19 + $0x18] sm:$0xf]
    %v4534 = vld [vmem:[#allocation19 + $0x1c] sm:$0xf]
    %v4535 = vld [vmem:[#allocation19 + $0x20] sm:$0xf]
    %v4536 = vld [vmem:[#allocation19 + $0x24] sm:$0xf]
    %v4537 = vld [vmem:[#allocation19 + $0x28] sm:$0xf]
    %v4538 = vld [vmem:[#allocation19 + $0x2c] sm:$0xf]
    %v4539 = vld [vmem:[#allocation19 + $0x30] sm:$0xf]
    %v4540 = vld [vmem:[#allocation19 + $0x34] sm:$0xf]
    %v4541 = vld [vmem:[#allocation19 + $0x38] sm:$0xf]
    %v4542 = vld [vmem:[#allocation19 + $0x3c] sm:$0xf]
    %v4559 = vunpack.c.l.b16 %v4527
    %v4560 = vunpack.c.l.b16 %v4528
    %v4561 = vunpack.c.l.b16 %v4529
    %v4562 = vunpack.c.l.b16 %v4530
    %v4563 = vunpack.c.l.b16 %v4531
    %v4564 = vunpack.c.l.b16 %v4532
    %v4565 = vunpack.c.l.b16 %v4533
    %v4566 = vunpack.c.l.b16 %v4534
    %v4567 = vunpack.c.l.b16 %v4535
    %v4568 = vunpack.c.l.b16 %v4536
    %v4569 = vunpack.c.l.b16 %v4537
    %v4570 = vunpack.c.l.b16 %v4538
    %v4571 = vunpack.c.l.b16 %v4539
    %v4572 = vunpack.c.l.b16 %v4540
    %v4573 = vunpack.c.l.b16 %v4541
    %v4574 = vunpack.c.l.b16 %v4542
    %v4575 = vpack.c.b16 %v4560, %v4559
    %v4576 = vpack.c.b16 %v4562, %v4561
    %v4577 = vpack.c.b16 %v4564, %v4563
    %v4578 = vpack.c.b16 %v4566, %v4565
    %v4579 = vpack.c.b16 %v4568, %v4567
    %v4580 = vpack.c.b16 %v4570, %v4569
    %v4581 = vpack.c.b16 %v4572, %v4571
    %v4582 = vpack.c.b16 %v4574, %v4573
    %4591 = vmatprep.subr.bf16.mxu0 0
    %4592 = vmatpush1.bf16.msra.mxu0 %v4582
    %4593 = vmatprep.subr.bf16.mxu0 0
    %4594 = vmatpush1.bf16.msra.mxu0 %v4581
    %4595 = vmatprep.subr.bf16.mxu0 0
    %4596 = vmatpush1.bf16.msra.mxu0 %v4580
    %4597 = vmatprep.subr.bf16.mxu0 0
    %4598 = vmatpush1.bf16.msra.mxu0 %v4579
    %4599 = vmatprep.subr.bf16.mxu0 0
    %4600 = vmatpush1.bf16.msra.mxu0 %v4578
    %4601 = vmatprep.subr.bf16.mxu0 0
    %4602 = vmatpush1.bf16.msra.mxu0 %v4577
    %4603 = vmatprep.subr.bf16.mxu0 0
    %4604 = vmatpush1.bf16.msra.mxu0 %v4576
    %4605 = vmatprep.subr.bf16.mxu0 0
    %4606 = vmatpush1.bf16.msra.mxu0 %v4575
    %4607 = vmatprep.subr.bf16.mxu0 0
    %4608 = vmatpush2.bf16.msra.mxu0 0
    %4609 = vmatprep.subr.bf16.mxu0 0
    %4610 = vmatpush2.bf16.msra.mxu0 0
    %4611 = vmatprep.subr.bf16.mxu0 0
    %4612 = vmatpush2.bf16.msra.mxu0 0
    %4613 = vmatprep.subr.bf16.mxu0 0
    %4614 = vmatpush2.bf16.msra.mxu0 0
    %4615 = vmatprep.subr.bf16.mxu0 0
    %4616 = vmatpush2.bf16.msra.mxu0 0
    %4617 = vmatprep.subr.bf16.mxu0 0
    %4618 = vmatpush2.bf16.msra.mxu0 0
    %4619 = vmatprep.subr.bf16.mxu0 0
    %4620 = vmatpush2.bf16.msra.mxu0 0
    %4621 = vmatprep.subr.bf16.mxu0 0
    %4622 = vmatpush2.bf16.msra.mxu0 0
    %4623 = vmatprep.mubr.bf16.mxu0 0
    %4624 = vmatmul.mubr.bf16.gmra.mxu0 %v4526
    %v4625 = vpop.f32.mrf.mxu0
    %v4626 = vadd.f32 0.0, %v4625
    %v4627 = vpop.f32.mrf.mxu0
    %v4628 = vpop.f32.mrf.mxu0
    %v4629 = vpop.f32.mrf.mxu0
    %4630 = vdwg.mxu0
    %4631 = vst [vmem:[#allocation20] sm:$0x3] %v4626
    // Predicated region
    $region118: #{tpu_custom_call.1} parent=1 // pred_check
      _
    $region119: #{tpu_custom_call.1} parent=1 // pred_check_branch
      %4633 = sbr.rel (0) target = $region121
    $region120: #{tpu_custom_call.1} parent=1 // pred_region
      %s4635 = ssub.s32 32, 32
      %4636 = vsyncadd [#allocation4], %s4635
      %s4638 = sshll.u32 [#allocation20], 4
      %s4639 = int_to_ptr.vmem [resolvable:$true] %s4638
      %4641 = dma.vmem_to_hbm [thread:$0]  %s4639, 32, %s18, [#allocation4]
    $region121: #{tpu_custom_call.1} parent=1 // pred_fallthru
      _
    // Predicated region
    $region122: #{tpu_custom_call.1} parent=1 // pred_check
      _
    $region123: #{tpu_custom_call.1} parent=1 // pred_check_branch
      %4643 = sbr.rel (0) target = $region125
    $region124: #{tpu_custom_call.1} parent=1 // pred_region
      %4644 = dma.done [#allocation4], 32
    $region125: #{tpu_custom_call.1} parent=1 // pred_fallthru
      _
    %4645 = vsyncpa [#allocation3], 1
    %4646 = vsyncpa [#allocation6], 1
    %4647 = vsyncpa [#allocation9], 1
    %4648 = vsyncpa [#allocation12], 1
    %4649 = vsyncpa [#allocation15], 1
    %4650 = vsyncpa [#allocation18], 1
    %4651 = vsyncpa [#allocation4], 1

</llo_original>
